<compile_context>
chip_gen: v5e
topology: v5e:2x2
jax: 0.10.0
libtpu: 0.0.40
codegen_flags: <defaults>
</compile_context>

<pallas_src>
import numpy as np
import jax
import jax.numpy as jnp
from jax import lax
from jax.experimental import pallas as pl
from jax.experimental.pallas import tpu as pltpu  # noqa: F401  (not needed: no grid/scratch)

# Fixed architecture constants implied by the module (28x28 single-channel input).
_H_IN = 28
_H1 = 14            # spatial after conv1 (stride 2, pad 1)
_H2 = 7             # spatial after conv2 (stride 2, pad 1)
_KT = 9             # 3x3 kernel taps
_P3 = _H2 * _H2     # 49 positions contracted by the final 7x7 valid conv
_C1, _C2, _C3 = 16, 32, 64


# --------------------------------------------------------------------------- #
# Fused kernel: all three convs + biases + ReLUs, everything VMEM-resident.
# --------------------------------------------------------------------------- #
def _encoder_kernel(p1_ref, w1_ref, b1_ref, s2_ref, w2_ref, b2_ref,
                    w3_ref, b3_ref, out_ref):
    f32 = jnp.float32
    npos2 = _H2 * _H2

    # ---- layer 1: one small GEMM (K = B*9, un-padded), fused bias + ReLU ----
    h1 = jnp.dot(p1_ref[...], w1_ref[...], preferred_element_type=f32)
    h1 = jnp.maximum(h1 + b1_ref[...], 0.0)                       # [196, B*16]

    # ---- layer 2: all 9 stride-2 taps gathered by one 0/1 selection GEMM ----
    # (zero rows of s2 implement the spatial zero padding), then 9 per-tap
    # channel-mixing GEMMs accumulated, fused bias + ReLU.
    g = jnp.dot(s2_ref[...], h1, preferred_element_type=f32)      # [441, B*16]
    acc2 = jnp.dot(g[0:npos2, :], w2_ref[0], preferred_element_type=f32)
    for t in range(1, _KT):
        acc2 = acc2 + jnp.dot(g[t * npos2:(t + 1) * npos2, :], w2_ref[t],
                              preferred_element_type=f32)
    h2 = jnp.maximum(acc2 + b2_ref[...], 0.0)                     # [49, B*32]

    # ---- layer 3: 7x7 valid conv == full contraction over 49 positions ----
    acc3 = jnp.dot(h2[0:1, :], w3_ref[0], preferred_element_type=f32)
    for p in range(1, _P3):
        acc3 = acc3 + jnp.dot(h2[p:p + 1, :], w3_ref[p],
                              preferred_element_type=f32)
    out_ref[...] = acc3 + b3_ref[...]                             # [1, B*64]


# --------------------------------------------------------------------------- #
# Host-side helpers.
# --------------------------------------------------------------------------- #
def _layer1_patches(x):
    """x: [B,1,28,28] -> P1 [196, B*9]; row = i*14+j, col = b*9 + (di*3+dj)."""
    B = x.shape[0]
    xp = jnp.pad(x[:, 0], ((0, 0), (1, 1), (1, 1)))               # [B, 30, 30]
    taps = jnp.stack(
        [xp[:, di:di + 2 * _H1:2, dj:dj + 2 * _H1:2]
         for di in range(3) for dj in range(3)], axis=-1)          # [B,14,14,9]
    return taps.transpose(1, 2, 0, 3).reshape(_H1 * _H1, B * _KT)


def _build_gather_matrix():
    """0/1 matrix mapping the 14x14 layer-1 map onto all 9 stride-2 taps."""
    s2 = np.zeros((_KT * _H2 * _H2, _H1 * _H1), np.float32)
    for di in range(3):
        for dj in range(3):
            t = di * 3 + dj
            for i in range(_H2):
                for j in range(_H2):
                    r, c = 2 * i + di - 1, 2 * j + dj - 1
                    if 0 <= r < _H1 and 0 <= c < _H1:
                        s2[t * _H2 * _H2 + i * _H2 + j, r * _H1 + c] = 1.0
    return jnp.asarray(s2)


def pack_params(params, batch):
    """One-time weight packing (outside the per-forward path)."""
    (w1, b1), (w2, b2), (w3, b3) = params
    eye_b = jnp.eye(batch, dtype=jnp.float32)
    w1m = w1.reshape(_C1, _KT).T                                  # [9, 16]
    w2m = w2.reshape(_C2, _C1, _KT).transpose(2, 1, 0)            # [9, 16, 32]
    w3m = w3.reshape(_C3, _C2, _P3).transpose(2, 1, 0)            # [49, 32, 64]
    return dict(
        w1=jnp.kron(eye_b, w1m),                                  # [B*9,  B*16]
        b1=jnp.tile(b1, batch)[None, :],                          # [1,    B*16]
        s2=_build_gather_matrix(),                                # [441,  196]
        w2=jnp.stack([jnp.kron(eye_b, w2m[t]) for t in range(_KT)]),   # [9,  B*16, B*32]
        b2=jnp.tile(b2, batch)[None, :],                          # [1,    B*32]
        w3=jnp.stack([jnp.kron(eye_b, w3m[p]) for p in range(_P3)]),   # [49, B*32, B*64]
        b3=jnp.tile(b3, batch)[None, :],                          # [1,    B*64]
    )


@jax.jit
def convolutional_encoder(x, packed):
    """Forward pass. x: [B,1,28,28] (NCHW) -> [B,64,1,1] (NCHW)."""
    B, Cin, H, W = x.shape
    assert Cin == 1 and H == _H_IN and W == _H_IN, (Cin, H, W)
    p1 = _layer1_patches(x.astype(jnp.float32))                   # [196, B*9]

    flops = 2 * (p1.shape[0] * p1.shape[1] * B * _C1
                 + packed["s2"].shape[0] * packed["s2"].shape[1] * B * _C1
                 + _KT * _H2 * _H2 * (B * _C1) * (B * _C2)
                 + _P3 * (B * _C2) * (B * _C3))
    bytes_accessed = 4 * (sum(int(np.prod(a.shape)) for a in packed.values())
                          + int(np.prod(p1.shape)) + B * _C3)

    out = pl.pallas_call(
        _encoder_kernel,
        out_shape=jax.ShapeDtypeStruct((1, B * _C3), jnp.float32),
        cost_estimate=pl.CostEstimate(flops=flops, transcendentals=0,
                                      bytes_accessed=bytes_accessed),
    )(p1, packed["w1"], packed["b1"], packed["s2"], packed["w2"],
      packed["b2"], packed["w3"], packed["b3"])
    return out.reshape(B, _C3, 1, 1)


# --------------------------------------------------------------------------- #
# Parameter init (PyTorch Conv2d-style) and pure-JAX reference.
# --------------------------------------------------------------------------- #
def init_conv_params(key, cout, cin, kh, kw):
    fan_in = cin * kh * kw
    bound = 1.0 / np.sqrt(fan_in)
    k_w, k_b = jax.random.split(key)
    w = jax.random.uniform(k_w, (cout, cin, kh, kw), jnp.float32, -bound, bound)
    b = jax.random.uniform(k_b, (cout,), jnp.float32, -bound, bound)
    return w, b


def _reference(x, params):
    def conv(x, w, b, stride, padding):
        y = lax.conv_general_dilated(
            x, w, window_strides=(stride, stride),
            padding=[(padding, padding), (padding, padding)],
            dimension_numbers=("NCHW", "OIHW", "NCHW"))
        return y + b[None, :, None, None]
    (w1, b1), (w2, b2), (w3, b3) = params
    h = jax.nn.relu(conv(x, w1, b1, 2, 1))
    h = jax.nn.relu(conv(h, w2, b2, 2, 1))
    return conv(h, w3, b3, 1, 0)


if __name__ == "__main__":
    key = jax.random.PRNGKey(0)
    k_in, k1, k2, k3 = jax.random.split(key, 4)

    # The final 7x7 valid conv implies a 28x28 (MNIST-style) single-channel
    # input: 28 -> 14 -> 7 -> 1.
    x = jax.random.normal(k_in, (2, 1, 28, 28), jnp.float32)
    params = (
        init_conv_params(k1, _C1, 1, 3, 3),
        init_conv_params(k2, _C2, _C1, 3, 3),
        init_conv_params(k3, _C3, _C2, 7, 7),
    )
    packed = pack_params(params, batch=x.shape[0])   # one-time weight packing

    out = jax.block_until_ready(convolutional_encoder(x, packed))
    assert out.shape == (2, 64, 1, 1), out.shape

    ref = jax.block_until_ready(_reference(x, params))
    np.testing.assert_allclose(np.asarray(out), np.asarray(ref),
                               rtol=1e-4, atol=1e-4)
    print("KERNEL_OK")
</pallas_src>

<mosaic_0001>
module attributes {stable_mosaic.version = 11 : i64} {
  func.func @_encoder_kernel(%arg0: memref<196x18xf32, #tpu.memory_space<vmem>>, %arg1: memref<18x32xf32, #tpu.memory_space<vmem>>, %arg2: memref<1x32xf32, #tpu.memory_space<vmem>>, %arg3: memref<441x196xf32, #tpu.memory_space<vmem>>, %arg4: memref<9x32x64xf32, #tpu.memory_space<vmem>>, %arg5: memref<1x64xf32, #tpu.memory_space<vmem>>, %arg6: memref<49x64x128xf32, #tpu.memory_space<vmem>>, %arg7: memref<1x128xf32, #tpu.memory_space<vmem>>, %arg8: memref<1x128xf32, #tpu.memory_space<vmem>>) attributes {dimension_semantics = [], scalar_prefetch = 0 : i64, scratch_operands = 0 : i64, tpu.core_type = #tpu.core_type<tc>} {
    %c0 = arith.constant 0 : index
    %c0_0 = arith.constant 0 : index
    %0 = vector.load %arg0[%c0, %c0_0] : memref<196x18xf32, #tpu.memory_space<vmem>>, vector<196x18xf32>
    %c0_1 = arith.constant 0 : index
    %c0_2 = arith.constant 0 : index
    %1 = vector.load %arg1[%c0_1, %c0_2] : memref<18x32xf32, #tpu.memory_space<vmem>>, vector<18x32xf32>
    %cst = arith.constant dense<0.000000e+00> : vector<196x32xf32>
    %2 = tpu.matmul %0, %1, %cst {dimension_numbers = #tpu.dot_dimension_numbers<[1], [0], [0], [1], [0, 0, 1, 1], [], []>} : vector<196x18xf32>, vector<18x32xf32>, vector<196x32xf32> -> vector<196x32xf32>
    %c0_3 = arith.constant 0 : index
    %c0_4 = arith.constant 0 : index
    %3 = vector.load %arg2[%c0_3, %c0_4] : memref<1x32xf32, #tpu.memory_space<vmem>>, vector<1x32xf32>
    %4 = vector.broadcast %3 : vector<1x32xf32> to vector<196x32xf32>
    %5 = arith.addf %2, %4 : vector<196x32xf32>
    %cst_5 = arith.constant 0.000000e+00 : f32
    %6 = vector.broadcast %cst_5 : f32 to vector<196x32xf32>
    %7 = arith.maximumf %5, %6 : vector<196x32xf32>
    %c0_6 = arith.constant 0 : index
    %c0_7 = arith.constant 0 : index
    %8 = vector.load %arg3[%c0_6, %c0_7] : memref<441x196xf32, #tpu.memory_space<vmem>>, vector<441x196xf32>
    %cst_8 = arith.constant dense<0.000000e+00> : vector<441x32xf32>
    %9 = tpu.matmul %8, %7, %cst_8 {dimension_numbers = #tpu.dot_dimension_numbers<[1], [0], [0], [1], [0, 0, 1, 1], [], []>} : vector<441x196xf32>, vector<196x32xf32>, vector<441x32xf32> -> vector<441x32xf32>
    %10 = vector.extract_strided_slice %9 {offsets = [0, 0], sizes = [49, 32], strides = [1, 1]} : vector<441x32xf32> to vector<49x32xf32>
    %c0_9 = arith.constant 0 : index
    %c0_10 = arith.constant 0 : index
    %c0_11 = arith.constant 0 : index
    %11 = vector.load %arg4[%c0_9, %c0_10, %c0_11] : memref<9x32x64xf32, #tpu.memory_space<vmem>>, vector<1x32x64xf32>
    %12 = vector.shape_cast %11 : vector<1x32x64xf32> to vector<32x64xf32>
    %cst_12 = arith.constant dense<0.000000e+00> : vector<49x64xf32>
    %13 = tpu.matmul %10, %12, %cst_12 {dimension_numbers = #tpu.dot_dimension_numbers<[1], [0], [0], [1], [0, 0, 1, 1], [], []>} : vector<49x32xf32>, vector<32x64xf32>, vector<49x64xf32> -> vector<49x64xf32>
    %14 = vector.extract_strided_slice %9 {offsets = [49, 0], sizes = [49, 32], strides = [1, 1]} : vector<441x32xf32> to vector<49x32xf32>
    %c1 = arith.constant 1 : index
    %c0_13 = arith.constant 0 : index
    %c0_14 = arith.constant 0 : index
    %15 = vector.load %arg4[%c1, %c0_13, %c0_14] : memref<9x32x64xf32, #tpu.memory_space<vmem>>, vector<1x32x64xf32>
    %16 = vector.shape_cast %15 : vector<1x32x64xf32> to vector<32x64xf32>
    %cst_15 = arith.constant dense<0.000000e+00> : vector<49x64xf32>
    %17 = tpu.matmul %14, %16, %cst_15 {dimension_numbers = #tpu.dot_dimension_numbers<[1], [0], [0], [1], [0, 0, 1, 1], [], []>} : vector<49x32xf32>, vector<32x64xf32>, vector<49x64xf32> -> vector<49x64xf32>
    %18 = arith.addf %13, %17 : vector<49x64xf32>
    %19 = vector.extract_strided_slice %9 {offsets = [98, 0], sizes = [49, 32], strides = [1, 1]} : vector<441x32xf32> to vector<49x32xf32>
    %c2 = arith.constant 2 : index
    %c0_16 = arith.constant 0 : index
    %c0_17 = arith.constant 0 : index
    %20 = vector.load %arg4[%c2, %c0_16, %c0_17] : memref<9x32x64xf32, #tpu.memory_space<vmem>>, vector<1x32x64xf32>
    %21 = vector.shape_cast %20 : vector<1x32x64xf32> to vector<32x64xf32>
    %cst_18 = arith.constant dense<0.000000e+00> : vector<49x64xf32>
    %22 = tpu.matmul %19, %21, %cst_18 {dimension_numbers = #tpu.dot_dimension_numbers<[1], [0], [0], [1], [0, 0, 1, 1], [], []>} : vector<49x32xf32>, vector<32x64xf32>, vector<49x64xf32> -> vector<49x64xf32>
    %23 = arith.addf %18, %22 : vector<49x64xf32>
    %24 = vector.extract_strided_slice %9 {offsets = [147, 0], sizes = [49, 32], strides = [1, 1]} : vector<441x32xf32> to vector<49x32xf32>
    %c3 = arith.constant 3 : index
    %c0_19 = arith.constant 0 : index
    %c0_20 = arith.constant 0 : index
    %25 = vector.load %arg4[%c3, %c0_19, %c0_20] : memref<9x32x64xf32, #tpu.memory_space<vmem>>, vector<1x32x64xf32>
    %26 = vector.shape_cast %25 : vector<1x32x64xf32> to vector<32x64xf32>
    %cst_21 = arith.constant dense<0.000000e+00> : vector<49x64xf32>
    %27 = tpu.matmul %24, %26, %cst_21 {dimension_numbers = #tpu.dot_dimension_numbers<[1], [0], [0], [1], [0, 0, 1, 1], [], []>} : vector<49x32xf32>, vector<32x64xf32>, vector<49x64xf32> -> vector<49x64xf32>
    %28 = arith.addf %23, %27 : vector<49x64xf32>
    %29 = vector.extract_strided_slice %9 {offsets = [196, 0], sizes = [49, 32], strides = [1, 1]} : vector<441x32xf32> to vector<49x32xf32>
    %c4 = arith.constant 4 : index
    %c0_22 = arith.constant 0 : index
    %c0_23 = arith.constant 0 : index
    %30 = vector.load %arg4[%c4, %c0_22, %c0_23] : memref<9x32x64xf32, #tpu.memory_space<vmem>>, vector<1x32x64xf32>
    %31 = vector.shape_cast %30 : vector<1x32x64xf32> to vector<32x64xf32>
    %cst_24 = arith.constant dense<0.000000e+00> : vector<49x64xf32>
    %32 = tpu.matmul %29, %31, %cst_24 {dimension_numbers = #tpu.dot_dimension_numbers<[1], [0], [0], [1], [0, 0, 1, 1], [], []>} : vector<49x32xf32>, vector<32x64xf32>, vector<49x64xf32> -> vector<49x64xf32>
    %33 = arith.addf %28, %32 : vector<49x64xf32>
    %34 = vector.extract_strided_slice %9 {offsets = [245, 0], sizes = [49, 32], strides = [1, 1]} : vector<441x32xf32> to vector<49x32xf32>
    %c5 = arith.constant 5 : index
    %c0_25 = arith.constant 0 : index
    %c0_26 = arith.constant 0 : index
    %35 = vector.load %arg4[%c5, %c0_25, %c0_26] : memref<9x32x64xf32, #tpu.memory_space<vmem>>, vector<1x32x64xf32>
    %36 = vector.shape_cast %35 : vector<1x32x64xf32> to vector<32x64xf32>
    %cst_27 = arith.constant dense<0.000000e+00> : vector<49x64xf32>
    %37 = tpu.matmul %34, %36, %cst_27 {dimension_numbers = #tpu.dot_dimension_numbers<[1], [0], [0], [1], [0, 0, 1, 1], [], []>} : vector<49x32xf32>, vector<32x64xf32>, vector<49x64xf32> -> vector<49x64xf32>
    %38 = arith.addf %33, %37 : vector<49x64xf32>
    %39 = vector.extract_strided_slice %9 {offsets = [294, 0], sizes = [49, 32], strides = [1, 1]} : vector<441x32xf32> to vector<49x32xf32>
    %c6 = arith.constant 6 : index
    %c0_28 = arith.constant 0 : index
    %c0_29 = arith.constant 0 : index
    %40 = vector.load %arg4[%c6, %c0_28, %c0_29] : memref<9x32x64xf32, #tpu.memory_space<vmem>>, vector<1x32x64xf32>
    %41 = vector.shape_cast %40 : vector<1x32x64xf32> to vector<32x64xf32>
    %cst_30 = arith.constant dense<0.000000e+00> : vector<49x64xf32>
    %42 = tpu.matmul %39, %41, %cst_30 {dimension_numbers = #tpu.dot_dimension_numbers<[1], [0], [0], [1], [0, 0, 1, 1], [], []>} : vector<49x32xf32>, vector<32x64xf32>, vector<49x64xf32> -> vector<49x64xf32>
    %43 = arith.addf %38, %42 : vector<49x64xf32>
    %44 = vector.extract_strided_slice %9 {offsets = [343, 0], sizes = [49, 32], strides = [1, 1]} : vector<441x32xf32> to vector<49x32xf32>
    %c7 = arith.constant 7 : index
    %c0_31 = arith.constant 0 : index
    %c0_32 = arith.constant 0 : index
    %45 = vector.load %arg4[%c7, %c0_31, %c0_32] : memref<9x32x64xf32, #tpu.memory_space<vmem>>, vector<1x32x64xf32>
    %46 = vector.shape_cast %45 : vector<1x32x64xf32> to vector<32x64xf32>
    %cst_33 = arith.constant dense<0.000000e+00> : vector<49x64xf32>
    %47 = tpu.matmul %44, %46, %cst_33 {dimension_numbers = #tpu.dot_dimension_numbers<[1], [0], [0], [1], [0, 0, 1, 1], [], []>} : vector<49x32xf32>, vector<32x64xf32>, vector<49x64xf32> -> vector<49x64xf32>
    %48 = arith.addf %43, %47 : vector<49x64xf32>
    %49 = vector.extract_strided_slice %9 {offsets = [392, 0], sizes = [49, 32], strides = [1, 1]} : vector<441x32xf32> to vector<49x32xf32>
    %c8 = arith.constant 8 : index
    %c0_34 = arith.constant 0 : index
    %c0_35 = arith.constant 0 : index
    %50 = vector.load %arg4[%c8, %c0_34, %c0_35] : memref<9x32x64xf32, #tpu.memory_space<vmem>>, vector<1x32x64xf32>
    %51 = vector.shape_cast %50 : vector<1x32x64xf32> to vector<32x64xf32>
    %cst_36 = arith.constant dense<0.000000e+00> : vector<49x64xf32>
    %52 = tpu.matmul %49, %51, %cst_36 {dimension_numbers = #tpu.dot_dimension_numbers<[1], [0], [0], [1], [0, 0, 1, 1], [], []>} : vector<49x32xf32>, vector<32x64xf32>, vector<49x64xf32> -> vector<49x64xf32>
    %53 = arith.addf %48, %52 : vector<49x64xf32>
    %c0_37 = arith.constant 0 : index
    %c0_38 = arith.constant 0 : index
    %54 = vector.load %arg5[%c0_37, %c0_38] : memref<1x64xf32, #tpu.memory_space<vmem>>, vector<1x64xf32>
    %55 = vector.broadcast %54 : vector<1x64xf32> to vector<49x64xf32>
    %56 = arith.addf %53, %55 : vector<49x64xf32>
    %cst_39 = arith.constant 0.000000e+00 : f32
    %57 = vector.broadcast %cst_39 : f32 to vector<49x64xf32>
    %58 = arith.maximumf %56, %57 : vector<49x64xf32>
    %59 = vector.extract_strided_slice %58 {offsets = [0, 0], sizes = [1, 64], strides = [1, 1]} : vector<49x64xf32> to vector<1x64xf32>
    %c0_40 = arith.constant 0 : index
    %c0_41 = arith.constant 0 : index
    %c0_42 = arith.constant 0 : index
    %60 = vector.load %arg6[%c0_40, %c0_41, %c0_42] : memref<49x64x128xf32, #tpu.memory_space<vmem>>, vector<1x64x128xf32>
    %61 = vector.shape_cast %60 : vector<1x64x128xf32> to vector<64x128xf32>
    %cst_43 = arith.constant dense<0.000000e+00> : vector<1x128xf32>
    %62 = tpu.matmul %59, %61, %cst_43 {dimension_numbers = #tpu.dot_dimension_numbers<[1], [0], [0], [1], [0, 0, 1, 1], [], []>} : vector<1x64xf32>, vector<64x128xf32>, vector<1x128xf32> -> vector<1x128xf32>
    %63 = vector.extract_strided_slice %58 {offsets = [1, 0], sizes = [1, 64], strides = [1, 1]} : vector<49x64xf32> to vector<1x64xf32>
    %c1_44 = arith.constant 1 : index
    %c0_45 = arith.constant 0 : index
    %c0_46 = arith.constant 0 : index
    %64 = vector.load %arg6[%c1_44, %c0_45, %c0_46] : memref<49x64x128xf32, #tpu.memory_space<vmem>>, vector<1x64x128xf32>
    %65 = vector.shape_cast %64 : vector<1x64x128xf32> to vector<64x128xf32>
    %cst_47 = arith.constant dense<0.000000e+00> : vector<1x128xf32>
    %66 = tpu.matmul %63, %65, %cst_47 {dimension_numbers = #tpu.dot_dimension_numbers<[1], [0], [0], [1], [0, 0, 1, 1], [], []>} : vector<1x64xf32>, vector<64x128xf32>, vector<1x128xf32> -> vector<1x128xf32>
    %67 = arith.addf %62, %66 : vector<1x128xf32>
    %68 = vector.extract_strided_slice %58 {offsets = [2, 0], sizes = [1, 64], strides = [1, 1]} : vector<49x64xf32> to vector<1x64xf32>
    %c2_48 = arith.constant 2 : index
    %c0_49 = arith.constant 0 : index
    %c0_50 = arith.constant 0 : index
    %69 = vector.load %arg6[%c2_48, %c0_49, %c0_50] : memref<49x64x128xf32, #tpu.memory_space<vmem>>, vector<1x64x128xf32>
    %70 = vector.shape_cast %69 : vector<1x64x128xf32> to vector<64x128xf32>
    %cst_51 = arith.constant dense<0.000000e+00> : vector<1x128xf32>
    %71 = tpu.matmul %68, %70, %cst_51 {dimension_numbers = #tpu.dot_dimension_numbers<[1], [0], [0], [1], [0, 0, 1, 1], [], []>} : vector<1x64xf32>, vector<64x128xf32>, vector<1x128xf32> -> vector<1x128xf32>
    %72 = arith.addf %67, %71 : vector<1x128xf32>
    %73 = vector.extract_strided_slice %58 {offsets = [3, 0], sizes = [1, 64], strides = [1, 1]} : vector<49x64xf32> to vector<1x64xf32>
    %c3_52 = arith.constant 3 : index
    %c0_53 = arith.constant 0 : index
    %c0_54 = arith.constant 0 : index
    %74 = vector.load %arg6[%c3_52, %c0_53, %c0_54] : memref<49x64x128xf32, #tpu.memory_space<vmem>>, vector<1x64x128xf32>
    %75 = vector.shape_cast %74 : vector<1x64x128xf32> to vector<64x128xf32>
    %cst_55 = arith.constant dense<0.000000e+00> : vector<1x128xf32>
    %76 = tpu.matmul %73, %75, %cst_55 {dimension_numbers = #tpu.dot_dimension_numbers<[1], [0], [0], [1], [0, 0, 1, 1], [], []>} : vector<1x64xf32>, vector<64x128xf32>, vector<1x128xf32> -> vector<1x128xf32>
    %77 = arith.addf %72, %76 : vector<1x128xf32>
    %78 = vector.extract_strided_slice %58 {offsets = [4, 0], sizes = [1, 64], strides = [1, 1]} : vector<49x64xf32> to vector<1x64xf32>
    %c4_56 = arith.constant 4 : index
    %c0_57 = arith.constant 0 : index
    %c0_58 = arith.constant 0 : index
    %79 = vector.load %arg6[%c4_56, %c0_57, %c0_58] : memref<49x64x128xf32, #tpu.memory_space<vmem>>, vector<1x64x128xf32>
    %80 = vector.shape_cast %79 : vector<1x64x128xf32> to vector<64x128xf32>
    %cst_59 = arith.constant dense<0.000000e+00> : vector<1x128xf32>
    %81 = tpu.matmul %78, %80, %cst_59 {dimension_numbers = #tpu.dot_dimension_numbers<[1], [0], [0], [1], [0, 0, 1, 1], [], []>} : vector<1x64xf32>, vector<64x128xf32>, vector<1x128xf32> -> vector<1x128xf32>
    %82 = arith.addf %77, %81 : vector<1x128xf32>
    %83 = vector.extract_strided_slice %58 {offsets = [5, 0], sizes = [1, 64], strides = [1, 1]} : vector<49x64xf32> to vector<1x64xf32>
    %c5_60 = arith.constant 5 : index
    %c0_61 = arith.constant 0 : index
    %c0_62 = arith.constant 0 : index
    %84 = vector.load %arg6[%c5_60, %c0_61, %c0_62] : memref<49x64x128xf32, #tpu.memory_space<vmem>>, vector<1x64x128xf32>
    %85 = vector.shape_cast %84 : vector<1x64x128xf32> to vector<64x128xf32>
    %cst_63 = arith.constant dense<0.000000e+00> : vector<1x128xf32>
    %86 = tpu.matmul %83, %85, %cst_63 {dimension_numbers = #tpu.dot_dimension_numbers<[1], [0], [0], [1], [0, 0, 1, 1], [], []>} : vector<1x64xf32>, vector<64x128xf32>, vector<1x128xf32> -> vector<1x128xf32>
    %87 = arith.addf %82, %86 : vector<1x128xf32>
    %88 = vector.extract_strided_slice %58 {offsets = [6, 0], sizes = [1, 64], strides = [1, 1]} : vector<49x64xf32> to vector<1x64xf32>
    %c6_64 = arith.constant 6 : index
    %c0_65 = arith.constant 0 : index
    %c0_66 = arith.constant 0 : index
    %89 = vector.load %arg6[%c6_64, %c0_65, %c0_66] : memref<49x64x128xf32, #tpu.memory_space<vmem>>, vector<1x64x128xf32>
    %90 = vector.shape_cast %89 : vector<1x64x128xf32> to vector<64x128xf32>
    %cst_67 = arith.constant dense<0.000000e+00> : vector<1x128xf32>
    %91 = tpu.matmul %88, %90, %cst_67 {dimension_numbers = #tpu.dot_dimension_numbers<[1], [0], [0], [1], [0, 0, 1, 1], [], []>} : vector<1x64xf32>, vector<64x128xf32>, vector<1x128xf32> -> vector<1x128xf32>
    %92 = arith.addf %87, %91 : vector<1x128xf32>
    %93 = vector.extract_strided_slice %58 {offsets = [7, 0], sizes = [1, 64], strides = [1, 1]} : vector<49x64xf32> to vector<1x64xf32>
    %c7_68 = arith.constant 7 : index
    %c0_69 = arith.constant 0 : index
    %c0_70 = arith.constant 0 : index
    %94 = vector.load %arg6[%c7_68, %c0_69, %c0_70] : memref<49x64x128xf32, #tpu.memory_space<vmem>>, vector<1x64x128xf32>
    %95 = vector.shape_cast %94 : vector<1x64x128xf32> to vector<64x128xf32>
    %cst_71 = arith.constant dense<0.000000e+00> : vector<1x128xf32>
    %96 = tpu.matmul %93, %95, %cst_71 {dimension_numbers = #tpu.dot_dimension_numbers<[1], [0], [0], [1], [0, 0, 1, 1], [], []>} : vector<1x64xf32>, vector<64x128xf32>, vector<1x128xf32> -> vector<1x128xf32>
    %97 = arith.addf %92, %96 : vector<1x128xf32>
    %98 = vector.extract_strided_slice %58 {offsets = [8, 0], sizes = [1, 64], strides = [1, 1]} : vector<49x64xf32> to vector<1x64xf32>
    %c8_72 = arith.constant 8 : index
    %c0_73 = arith.constant 0 : index
    %c0_74 = arith.constant 0 : index
    %99 = vector.load %arg6[%c8_72, %c0_73, %c0_74] : memref<49x64x128xf32, #tpu.memory_space<vmem>>, vector<1x64x128xf32>
    %100 = vector.shape_cast %99 : vector<1x64x128xf32> to vector<64x128xf32>
    %cst_75 = arith.constant dense<0.000000e+00> : vector<1x128xf32>
    %101 = tpu.matmul %98, %100, %cst_75 {dimension_numbers = #tpu.dot_dimension_numbers<[1], [0], [0], [1], [0, 0, 1, 1], [], []>} : vector<1x64xf32>, vector<64x128xf32>, vector<1x128xf32> -> vector<1x128xf32>
    %102 = arith.addf %97, %101 : vector<1x128xf32>
    %103 = vector.extract_strided_slice %58 {offsets = [9, 0], sizes = [1, 64], strides = [1, 1]} : vector<49x64xf32> to vector<1x64xf32>
    %c9 = arith.constant 9 : index
    %c0_76 = arith.constant 0 : index
    %c0_77 = arith.constant 0 : index
    %104 = vector.load %arg6[%c9, %c0_76, %c0_77] : memref<49x64x128xf32, #tpu.memory_space<vmem>>, vector<1x64x128xf32>
    %105 = vector.shape_cast %104 : vector<1x64x128xf32> to vector<64x128xf32>
    %cst_78 = arith.constant dense<0.000000e+00> : vector<1x128xf32>
    %106 = tpu.matmul %103, %105, %cst_78 {dimension_numbers = #tpu.dot_dimension_numbers<[1], [0], [0], [1], [0, 0, 1, 1], [], []>} : vector<1x64xf32>, vector<64x128xf32>, vector<1x128xf32> -> vector<1x128xf32>
    %107 = arith.addf %102, %106 : vector<1x128xf32>
    %108 = vector.extract_strided_slice %58 {offsets = [10, 0], sizes = [1, 64], strides = [1, 1]} : vector<49x64xf32> to vector<1x64xf32>
    %c10 = arith.constant 10 : index
    %c0_79 = arith.constant 0 : index
    %c0_80 = arith.constant 0 : index
    %109 = vector.load %arg6[%c10, %c0_79, %c0_80] : memref<49x64x128xf32, #tpu.memory_space<vmem>>, vector<1x64x128xf32>
    %110 = vector.shape_cast %109 : vector<1x64x128xf32> to vector<64x128xf32>
    %cst_81 = arith.constant dense<0.000000e+00> : vector<1x128xf32>
    %111 = tpu.matmul %108, %110, %cst_81 {dimension_numbers = #tpu.dot_dimension_numbers<[1], [0], [0], [1], [0, 0, 1, 1], [], []>} : vector<1x64xf32>, vector<64x128xf32>, vector<1x128xf32> -> vector<1x128xf32>
    %112 = arith.addf %107, %111 : vector<1x128xf32>
    %113 = vector.extract_strided_slice %58 {offsets = [11, 0], sizes = [1, 64], strides = [1, 1]} : vector<49x64xf32> to vector<1x64xf32>
    %c11 = arith.constant 11 : index
    %c0_82 = arith.constant 0 : index
    %c0_83 = arith.constant 0 : index
    %114 = vector.load %arg6[%c11, %c0_82, %c0_83] : memref<49x64x128xf32, #tpu.memory_space<vmem>>, vector<1x64x128xf32>
    %115 = vector.shape_cast %114 : vector<1x64x128xf32> to vector<64x128xf32>
    %cst_84 = arith.constant dense<0.000000e+00> : vector<1x128xf32>
    %116 = tpu.matmul %113, %115, %cst_84 {dimension_numbers = #tpu.dot_dimension_numbers<[1], [0], [0], [1], [0, 0, 1, 1], [], []>} : vector<1x64xf32>, vector<64x128xf32>, vector<1x128xf32> -> vector<1x128xf32>
    %117 = arith.addf %112, %116 : vector<1x128xf32>
    %118 = vector.extract_strided_slice %58 {offsets = [12, 0], sizes = [1, 64], strides = [1, 1]} : vector<49x64xf32> to vector<1x64xf32>
    %c12 = arith.constant 12 : index
    %c0_85 = arith.constant 0 : index
    %c0_86 = arith.constant 0 : index
    %119 = vector.load %arg6[%c12, %c0_85, %c0_86] : memref<49x64x128xf32, #tpu.memory_space<vmem>>, vector<1x64x128xf32>
    %120 = vector.shape_cast %119 : vector<1x64x128xf32> to vector<64x128xf32>
    %cst_87 = arith.constant dense<0.000000e+00> : vector<1x128xf32>
    %121 = tpu.matmul %118, %120, %cst_87 {dimension_numbers = #tpu.dot_dimension_numbers<[1], [0], [0], [1], [0, 0, 1, 1], [], []>} : vector<1x64xf32>, vector<64x128xf32>, vector<1x128xf32> -> vector<1x128xf32>
    %122 = arith.addf %117, %121 : vector<1x128xf32>
    %123 = vector.extract_strided_slice %58 {offsets = [13, 0], sizes = [1, 64], strides = [1, 1]} : vector<49x64xf32> to vector<1x64xf32>
    %c13 = arith.constant 13 : index
    %c0_88 = arith.constant 0 : index
    %c0_89 = arith.constant 0 : index
    %124 = vector.load %arg6[%c13, %c0_88, %c0_89] : memref<49x64x128xf32, #tpu.memory_space<vmem>>, vector<1x64x128xf32>
    %125 = vector.shape_cast %124 : vector<1x64x128xf32> to vector<64x128xf32>
    %cst_90 = arith.constant dense<0.000000e+00> : vector<1x128xf32>
    %126 = tpu.matmul %123, %125, %cst_90 {dimension_numbers = #tpu.dot_dimension_numbers<[1], [0], [0], [1], [0, 0, 1, 1], [], []>} : vector<1x64xf32>, vector<64x128xf32>, vector<1x128xf32> -> vector<1x128xf32>
    %127 = arith.addf %122, %126 : vector<1x128xf32>
    %128 = vector.extract_strided_slice %58 {offsets = [14, 0], sizes = [1, 64], strides = [1, 1]} : vector<49x64xf32> to vector<1x64xf32>
    %c14 = arith.constant 14 : index
    %c0_91 = arith.constant 0 : index
    %c0_92 = arith.constant 0 : index
    %129 = vector.load %arg6[%c14, %c0_91, %c0_92] : memref<49x64x128xf32, #tpu.memory_space<vmem>>, vector<1x64x128xf32>
    %130 = vector.shape_cast %129 : vector<1x64x128xf32> to vector<64x128xf32>
    %cst_93 = arith.constant dense<0.000000e+00> : vector<1x128xf32>
    %131 = tpu.matmul %128, %130, %cst_93 {dimension_numbers = #tpu.dot_dimension_numbers<[1], [0], [0], [1], [0, 0, 1, 1], [], []>} : vector<1x64xf32>, vector<64x128xf32>, vector<1x128xf32> -> vector<1x128xf32>
    %132 = arith.addf %127, %131 : vector<1x128xf32>
    %133 = vector.extract_strided_slice %58 {offsets = [15, 0], sizes = [1, 64], strides = [1, 1]} : vector<49x64xf32> to vector<1x64xf32>
    %c15 = arith.constant 15 : index
    %c0_94 = arith.constant 0 : index
    %c0_95 = arith.constant 0 : index
    %134 = vector.load %arg6[%c15, %c0_94, %c0_95] : memref<49x64x128xf32, #tpu.memory_space<vmem>>, vector<1x64x128xf32>
    %135 = vector.shape_cast %134 : vector<1x64x128xf32> to vector<64x128xf32>
    %cst_96 = arith.constant dense<0.000000e+00> : vector<1x128xf32>
    %136 = tpu.matmul %133, %135, %cst_96 {dimension_numbers = #tpu.dot_dimension_numbers<[1], [0], [0], [1], [0, 0, 1, 1], [], []>} : vector<1x64xf32>, vector<64x128xf32>, vector<1x128xf32> -> vector<1x128xf32>
    %137 = arith.addf %132, %136 : vector<1x128xf32>
    %138 = vector.extract_strided_slice %58 {offsets = [16, 0], sizes = [1, 64], strides = [1, 1]} : vector<49x64xf32> to vector<1x64xf32>
    %c16 = arith.constant 16 : index
    %c0_97 = arith.constant 0 : index
    %c0_98 = arith.constant 0 : index
    %139 = vector.load %arg6[%c16, %c0_97, %c0_98] : memref<49x64x128xf32, #tpu.memory_space<vmem>>, vector<1x64x128xf32>
    %140 = vector.shape_cast %139 : vector<1x64x128xf32> to vector<64x128xf32>
    %cst_99 = arith.constant dense<0.000000e+00> : vector<1x128xf32>
    %141 = tpu.matmul %138, %140, %cst_99 {dimension_numbers = #tpu.dot_dimension_numbers<[1], [0], [0], [1], [0, 0, 1, 1], [], []>} : vector<1x64xf32>, vector<64x128xf32>, vector<1x128xf32> -> vector<1x128xf32>
    %142 = arith.addf %137, %141 : vector<1x128xf32>
    %143 = vector.extract_strided_slice %58 {offsets = [17, 0], sizes = [1, 64], strides = [1, 1]} : vector<49x64xf32> to vector<1x64xf32>
    %c17 = arith.constant 17 : index
    %c0_100 = arith.constant 0 : index
    %c0_101 = arith.constant 0 : index
    %144 = vector.load %arg6[%c17, %c0_100, %c0_101] : memref<49x64x128xf32, #tpu.memory_space<vmem>>, vector<1x64x128xf32>
    %145 = vector.shape_cast %144 : vector<1x64x128xf32> to vector<64x128xf32>
    %cst_102 = arith.constant dense<0.000000e+00> : vector<1x128xf32>
    %146 = tpu.matmul %143, %145, %cst_102 {dimension_numbers = #tpu.dot_dimension_numbers<[1], [0], [0], [1], [0, 0, 1, 1], [], []>} : vector<1x64xf32>, vector<64x128xf32>, vector<1x128xf32> -> vector<1x128xf32>
    %147 = arith.addf %142, %146 : vector<1x128xf32>
    %148 = vector.extract_strided_slice %58 {offsets = [18, 0], sizes = [1, 64], strides = [1, 1]} : vector<49x64xf32> to vector<1x64xf32>
    %c18 = arith.constant 18 : index
    %c0_103 = arith.constant 0 : index
    %c0_104 = arith.constant 0 : index
    %149 = vector.load %arg6[%c18, %c0_103, %c0_104] : memref<49x64x128xf32, #tpu.memory_space<vmem>>, vector<1x64x128xf32>
    %150 = vector.shape_cast %149 : vector<1x64x128xf32> to vector<64x128xf32>
    %cst_105 = arith.constant dense<0.000000e+00> : vector<1x128xf32>
    %151 = tpu.matmul %148, %150, %cst_105 {dimension_numbers = #tpu.dot_dimension_numbers<[1], [0], [0], [1], [0, 0, 1, 1], [], []>} : vector<1x64xf32>, vector<64x128xf32>, vector<1x128xf32> -> vector<1x128xf32>
    %152 = arith.addf %147, %151 : vector<1x128xf32>
    %153 = vector.extract_strided_slice %58 {offsets = [19, 0], sizes = [1, 64], strides = [1, 1]} : vector<49x64xf32> to vector<1x64xf32>
    %c19 = arith.constant 19 : index
    %c0_106 = arith.constant 0 : index
    %c0_107 = arith.constant 0 : index
    %154 = vector.load %arg6[%c19, %c0_106, %c0_107] : memref<49x64x128xf32, #tpu.memory_space<vmem>>, vector<1x64x128xf32>
    %155 = vector.shape_cast %154 : vector<1x64x128xf32> to vector<64x128xf32>
    %cst_108 = arith.constant dense<0.000000e+00> : vector<1x128xf32>
    %156 = tpu.matmul %153, %155, %cst_108 {dimension_numbers = #tpu.dot_dimension_numbers<[1], [0], [0], [1], [0, 0, 1, 1], [], []>} : vector<1x64xf32>, vector<64x128xf32>, vector<1x128xf32> -> vector<1x128xf32>
    %157 = arith.addf %152, %156 : vector<1x128xf32>
    %158 = vector.extract_strided_slice %58 {offsets = [20, 0], sizes = [1, 64], strides = [1, 1]} : vector<49x64xf32> to vector<1x64xf32>
    %c20 = arith.constant 20 : index
    %c0_109 = arith.constant 0 : index
    %c0_110 = arith.constant 0 : index
    %159 = vector.load %arg6[%c20, %c0_109, %c0_110] : memref<49x64x128xf32, #tpu.memory_space<vmem>>, vector<1x64x128xf32>
    %160 = vector.shape_cast %159 : vector<1x64x128xf32> to vector<64x128xf32>
    %cst_111 = arith.constant dense<0.000000e+00> : vector<1x128xf32>
    %161 = tpu.matmul %158, %160, %cst_111 {dimension_numbers = #tpu.dot_dimension_numbers<[1], [0], [0], [1], [0, 0, 1, 1], [], []>} : vector<1x64xf32>, vector<64x128xf32>, vector<1x128xf32> -> vector<1x128xf32>
    %162 = arith.addf %157, %161 : vector<1x128xf32>
    %163 = vector.extract_strided_slice %58 {offsets = [21, 0], sizes = [1, 64], strides = [1, 1]} : vector<49x64xf32> to vector<1x64xf32>
    %c21 = arith.constant 21 : index
    %c0_112 = arith.constant 0 : index
    %c0_113 = arith.constant 0 : index
    %164 = vector.load %arg6[%c21, %c0_112, %c0_113] : memref<49x64x128xf32, #tpu.memory_space<vmem>>, vector<1x64x128xf32>
    %165 = vector.shape_cast %164 : vector<1x64x128xf32> to vector<64x128xf32>
    %cst_114 = arith.constant dense<0.000000e+00> : vector<1x128xf32>
    %166 = tpu.matmul %163, %165, %cst_114 {dimension_numbers = #tpu.dot_dimension_numbers<[1], [0], [0], [1], [0, 0, 1, 1], [], []>} : vector<1x64xf32>, vector<64x128xf32>, vector<1x128xf32> -> vector<1x128xf32>
    %167 = arith.addf %162, %166 : vector<1x128xf32>
    %168 = vector.extract_strided_slice %58 {offsets = [22, 0], sizes = [1, 64], strides = [1, 1]} : vector<49x64xf32> to vector<1x64xf32>
    %c22 = arith.constant 22 : index
    %c0_115 = arith.constant 0 : index
    %c0_116 = arith.constant 0 : index
    %169 = vector.load %arg6[%c22, %c0_115, %c0_116] : memref<49x64x128xf32, #tpu.memory_space<vmem>>, vector<1x64x128xf32>
    %170 = vector.shape_cast %169 : vector<1x64x128xf32> to vector<64x128xf32>
    %cst_117 = arith.constant dense<0.000000e+00> : vector<1x128xf32>
    %171 = tpu.matmul %168, %170, %cst_117 {dimension_numbers = #tpu.dot_dimension_numbers<[1], [0], [0], [1], [0, 0, 1, 1], [], []>} : vector<1x64xf32>, vector<64x128xf32>, vector<1x128xf32> -> vector<1x128xf32>
    %172 = arith.addf %167, %171 : vector<1x128xf32>
    %173 = vector.extract_strided_slice %58 {offsets = [23, 0], sizes = [1, 64], strides = [1, 1]} : vector<49x64xf32> to vector<1x64xf32>
    %c23 = arith.constant 23 : index
    %c0_118 = arith.constant 0 : index
    %c0_119 = arith.constant 0 : index
    %174 = vector.load %arg6[%c23, %c0_118, %c0_119] : memref<49x64x128xf32, #tpu.memory_space<vmem>>, vector<1x64x128xf32>
    %175 = vector.shape_cast %174 : vector<1x64x128xf32> to vector<64x128xf32>
    %cst_120 = arith.constant dense<0.000000e+00> : vector<1x128xf32>
    %176 = tpu.matmul %173, %175, %cst_120 {dimension_numbers = #tpu.dot_dimension_numbers<[1], [0], [0], [1], [0, 0, 1, 1], [], []>} : vector<1x64xf32>, vector<64x128xf32>, vector<1x128xf32> -> vector<1x128xf32>
    %177 = arith.addf %172, %176 : vector<1x128xf32>
    %178 = vector.extract_strided_slice %58 {offsets = [24, 0], sizes = [1, 64], strides = [1, 1]} : vector<49x64xf32> to vector<1x64xf32>
    %c24 = arith.constant 24 : index
    %c0_121 = arith.constant 0 : index
    %c0_122 = arith.constant 0 : index
    %179 = vector.load %arg6[%c24, %c0_121, %c0_122] : memref<49x64x128xf32, #tpu.memory_space<vmem>>, vector<1x64x128xf32>
    %180 = vector.shape_cast %179 : vector<1x64x128xf32> to vector<64x128xf32>
    %cst_123 = arith.constant dense<0.000000e+00> : vector<1x128xf32>
    %181 = tpu.matmul %178, %180, %cst_123 {dimension_numbers = #tpu.dot_dimension_numbers<[1], [0], [0], [1], [0, 0, 1, 1], [], []>} : vector<1x64xf32>, vector<64x128xf32>, vector<1x128xf32> -> vector<1x128xf32>
    %182 = arith.addf %177, %181 : vector<1x128xf32>
    %183 = vector.extract_strided_slice %58 {offsets = [25, 0], sizes = [1, 64], strides = [1, 1]} : vector<49x64xf32> to vector<1x64xf32>
    %c25 = arith.constant 25 : index
    %c0_124 = arith.constant 0 : index
    %c0_125 = arith.constant 0 : index
    %184 = vector.load %arg6[%c25, %c0_124, %c0_125] : memref<49x64x128xf32, #tpu.memory_space<vmem>>, vector<1x64x128xf32>
    %185 = vector.shape_cast %184 : vector<1x64x128xf32> to vector<64x128xf32>
    %cst_126 = arith.constant dense<0.000000e+00> : vector<1x128xf32>
    %186 = tpu.matmul %183, %185, %cst_126 {dimension_numbers = #tpu.dot_dimension_numbers<[1], [0], [0], [1], [0, 0, 1, 1], [], []>} : vector<1x64xf32>, vector<64x128xf32>, vector<1x128xf32> -> vector<1x128xf32>
    %187 = arith.addf %182, %186 : vector<1x128xf32>
    %188 = vector.extract_strided_slice %58 {offsets = [26, 0], sizes = [1, 64], strides = [1, 1]} : vector<49x64xf32> to vector<1x64xf32>
    %c26 = arith.constant 26 : index
    %c0_127 = arith.constant 0 : index
    %c0_128 = arith.constant 0 : index
    %189 = vector.load %arg6[%c26, %c0_127, %c0_128] : memref<49x64x128xf32, #tpu.memory_space<vmem>>, vector<1x64x128xf32>
    %190 = vector.shape_cast %189 : vector<1x64x128xf32> to vector<64x128xf32>
    %cst_129 = arith.constant dense<0.000000e+00> : vector<1x128xf32>
    %191 = tpu.matmul %188, %190, %cst_129 {dimension_numbers = #tpu.dot_dimension_numbers<[1], [0], [0], [1], [0, 0, 1, 1], [], []>} : vector<1x64xf32>, vector<64x128xf32>, vector<1x128xf32> -> vector<1x128xf32>
    %192 = arith.addf %187, %191 : vector<1x128xf32>
    %193 = vector.extract_strided_slice %58 {offsets = [27, 0], sizes = [1, 64], strides = [1, 1]} : vector<49x64xf32> to vector<1x64xf32>
    %c27 = arith.constant 27 : index
    %c0_130 = arith.constant 0 : index
    %c0_131 = arith.constant 0 : index
    %194 = vector.load %arg6[%c27, %c0_130, %c0_131] : memref<49x64x128xf32, #tpu.memory_space<vmem>>, vector<1x64x128xf32>
    %195 = vector.shape_cast %194 : vector<1x64x128xf32> to vector<64x128xf32>
    %cst_132 = arith.constant dense<0.000000e+00> : vector<1x128xf32>
    %196 = tpu.matmul %193, %195, %cst_132 {dimension_numbers = #tpu.dot_dimension_numbers<[1], [0], [0], [1], [0, 0, 1, 1], [], []>} : vector<1x64xf32>, vector<64x128xf32>, vector<1x128xf32> -> vector<1x128xf32>
    %197 = arith.addf %192, %196 : vector<1x128xf32>
    %198 = vector.extract_strided_slice %58 {offsets = [28, 0], sizes = [1, 64], strides = [1, 1]} : vector<49x64xf32> to vector<1x64xf32>
    %c28 = arith.constant 28 : index
    %c0_133 = arith.constant 0 : index
    %c0_134 = arith.constant 0 : index
    %199 = vector.load %arg6[%c28, %c0_133, %c0_134] : memref<49x64x128xf32, #tpu.memory_space<vmem>>, vector<1x64x128xf32>
    %200 = vector.shape_cast %199 : vector<1x64x128xf32> to vector<64x128xf32>
    %cst_135 = arith.constant dense<0.000000e+00> : vector<1x128xf32>
    %201 = tpu.matmul %198, %200, %cst_135 {dimension_numbers = #tpu.dot_dimension_numbers<[1], [0], [0], [1], [0, 0, 1, 1], [], []>} : vector<1x64xf32>, vector<64x128xf32>, vector<1x128xf32> -> vector<1x128xf32>
    %202 = arith.addf %197, %201 : vector<1x128xf32>
    %203 = vector.extract_strided_slice %58 {offsets = [29, 0], sizes = [1, 64], strides = [1, 1]} : vector<49x64xf32> to vector<1x64xf32>
    %c29 = arith.constant 29 : index
    %c0_136 = arith.constant 0 : index
    %c0_137 = arith.constant 0 : index
    %204 = vector.load %arg6[%c29, %c0_136, %c0_137] : memref<49x64x128xf32, #tpu.memory_space<vmem>>, vector<1x64x128xf32>
    %205 = vector.shape_cast %204 : vector<1x64x128xf32> to vector<64x128xf32>
    %cst_138 = arith.constant dense<0.000000e+00> : vector<1x128xf32>
    %206 = tpu.matmul %203, %205, %cst_138 {dimension_numbers = #tpu.dot_dimension_numbers<[1], [0], [0], [1], [0, 0, 1, 1], [], []>} : vector<1x64xf32>, vector<64x128xf32>, vector<1x128xf32> -> vector<1x128xf32>
    %207 = arith.addf %202, %206 : vector<1x128xf32>
    %208 = vector.extract_strided_slice %58 {offsets = [30, 0], sizes = [1, 64], strides = [1, 1]} : vector<49x64xf32> to vector<1x64xf32>
    %c30 = arith.constant 30 : index
    %c0_139 = arith.constant 0 : index
    %c0_140 = arith.constant 0 : index
    %209 = vector.load %arg6[%c30, %c0_139, %c0_140] : memref<49x64x128xf32, #tpu.memory_space<vmem>>, vector<1x64x128xf32>
    %210 = vector.shape_cast %209 : vector<1x64x128xf32> to vector<64x128xf32>
    %cst_141 = arith.constant dense<0.000000e+00> : vector<1x128xf32>
    %211 = tpu.matmul %208, %210, %cst_141 {dimension_numbers = #tpu.dot_dimension_numbers<[1], [0], [0], [1], [0, 0, 1, 1], [], []>} : vector<1x64xf32>, vector<64x128xf32>, vector<1x128xf32> -> vector<1x128xf32>
    %212 = arith.addf %207, %211 : vector<1x128xf32>
    %213 = vector.extract_strided_slice %58 {offsets = [31, 0], sizes = [1, 64], strides = [1, 1]} : vector<49x64xf32> to vector<1x64xf32>
    %c31 = arith.constant 31 : index
    %c0_142 = arith.constant 0 : index
    %c0_143 = arith.constant 0 : index
    %214 = vector.load %arg6[%c31, %c0_142, %c0_143] : memref<49x64x128xf32, #tpu.memory_space<vmem>>, vector<1x64x128xf32>
    %215 = vector.shape_cast %214 : vector<1x64x128xf32> to vector<64x128xf32>
    %cst_144 = arith.constant dense<0.000000e+00> : vector<1x128xf32>
    %216 = tpu.matmul %213, %215, %cst_144 {dimension_numbers = #tpu.dot_dimension_numbers<[1], [0], [0], [1], [0, 0, 1, 1], [], []>} : vector<1x64xf32>, vector<64x128xf32>, vector<1x128xf32> -> vector<1x128xf32>
    %217 = arith.addf %212, %216 : vector<1x128xf32>
    %218 = vector.extract_strided_slice %58 {offsets = [32, 0], sizes = [1, 64], strides = [1, 1]} : vector<49x64xf32> to vector<1x64xf32>
    %c32 = arith.constant 32 : index
    %c0_145 = arith.constant 0 : index
    %c0_146 = arith.constant 0 : index
    %219 = vector.load %arg6[%c32, %c0_145, %c0_146] : memref<49x64x128xf32, #tpu.memory_space<vmem>>, vector<1x64x128xf32>
    %220 = vector.shape_cast %219 : vector<1x64x128xf32> to vector<64x128xf32>
    %cst_147 = arith.constant dense<0.000000e+00> : vector<1x128xf32>
    %221 = tpu.matmul %218, %220, %cst_147 {dimension_numbers = #tpu.dot_dimension_numbers<[1], [0], [0], [1], [0, 0, 1, 1], [], []>} : vector<1x64xf32>, vector<64x128xf32>, vector<1x128xf32> -> vector<1x128xf32>
    %222 = arith.addf %217, %221 : vector<1x128xf32>
    %223 = vector.extract_strided_slice %58 {offsets = [33, 0], sizes = [1, 64], strides = [1, 1]} : vector<49x64xf32> to vector<1x64xf32>
    %c33 = arith.constant 33 : index
    %c0_148 = arith.constant 0 : index
    %c0_149 = arith.constant 0 : index
    %224 = vector.load %arg6[%c33, %c0_148, %c0_149] : memref<49x64x128xf32, #tpu.memory_space<vmem>>, vector<1x64x128xf32>
    %225 = vector.shape_cast %224 : vector<1x64x128xf32> to vector<64x128xf32>
    %cst_150 = arith.constant dense<0.000000e+00> : vector<1x128xf32>
    %226 = tpu.matmul %223, %225, %cst_150 {dimension_numbers = #tpu.dot_dimension_numbers<[1], [0], [0], [1], [0, 0, 1, 1], [], []>} : vector<1x64xf32>, vector<64x128xf32>, vector<1x128xf32> -> vector<1x128xf32>
    %227 = arith.addf %222, %226 : vector<1x128xf32>
    %228 = vector.extract_strided_slice %58 {offsets = [34, 0], sizes = [1, 64], strides = [1, 1]} : vector<49x64xf32> to vector<1x64xf32>
    %c34 = arith.constant 34 : index
    %c0_151 = arith.constant 0 : index
    %c0_152 = arith.constant 0 : index
    %229 = vector.load %arg6[%c34, %c0_151, %c0_152] : memref<49x64x128xf32, #tpu.memory_space<vmem>>, vector<1x64x128xf32>
    %230 = vector.shape_cast %229 : vector<1x64x128xf32> to vector<64x128xf32>
    %cst_153 = arith.constant dense<0.000000e+00> : vector<1x128xf32>
    %231 = tpu.matmul %228, %230, %cst_153 {dimension_numbers = #tpu.dot_dimension_numbers<[1], [0], [0], [1], [0, 0, 1, 1], [], []>} : vector<1x64xf32>, vector<64x128xf32>, vector<1x128xf32> -> vector<1x128xf32>
    %232 = arith.addf %227, %231 : vector<1x128xf32>
    %233 = vector.extract_strided_slice %58 {offsets = [35, 0], sizes = [1, 64], strides = [1, 1]} : vector<49x64xf32> to vector<1x64xf32>
    %c35 = arith.constant 35 : index
    %c0_154 = arith.constant 0 : index
    %c0_155 = arith.constant 0 : index
    %234 = vector.load %arg6[%c35, %c0_154, %c0_155] : memref<49x64x128xf32, #tpu.memory_space<vmem>>, vector<1x64x128xf32>
    %235 = vector.shape_cast %234 : vector<1x64x128xf32> to vector<64x128xf32>
    %cst_156 = arith.constant dense<0.000000e+00> : vector<1x128xf32>
    %236 = tpu.matmul %233, %235, %cst_156 {dimension_numbers = #tpu.dot_dimension_numbers<[1], [0], [0], [1], [0, 0, 1, 1], [], []>} : vector<1x64xf32>, vector<64x128xf32>, vector<1x128xf32> -> vector<1x128xf32>
    %237 = arith.addf %232, %236 : vector<1x128xf32>
    %238 = vector.extract_strided_slice %58 {offsets = [36, 0], sizes = [1, 64], strides = [1, 1]} : vector<49x64xf32> to vector<1x64xf32>
    %c36 = arith.constant 36 : index
    %c0_157 = arith.constant 0 : index
    %c0_158 = arith.constant 0 : index
    %239 = vector.load %arg6[%c36, %c0_157, %c0_158] : memref<49x64x128xf32, #tpu.memory_space<vmem>>, vector<1x64x128xf32>
    %240 = vector.shape_cast %239 : vector<1x64x128xf32> to vector<64x128xf32>
    %cst_159 = arith.constant dense<0.000000e+00> : vector<1x128xf32>
    %241 = tpu.matmul %238, %240, %cst_159 {dimension_numbers = #tpu.dot_dimension_numbers<[1], [0], [0], [1], [0, 0, 1, 1], [], []>} : vector<1x64xf32>, vector<64x128xf32>, vector<1x128xf32> -> vector<1x128xf32>
    %242 = arith.addf %237, %241 : vector<1x128xf32>
    %243 = vector.extract_strided_slice %58 {offsets = [37, 0], sizes = [1, 64], strides = [1, 1]} : vector<49x64xf32> to vector<1x64xf32>
    %c37 = arith.constant 37 : index
    %c0_160 = arith.constant 0 : index
    %c0_161 = arith.constant 0 : index
    %244 = vector.load %arg6[%c37, %c0_160, %c0_161] : memref<49x64x128xf32, #tpu.memory_space<vmem>>, vector<1x64x128xf32>
    %245 = vector.shape_cast %244 : vector<1x64x128xf32> to vector<64x128xf32>
    %cst_162 = arith.constant dense<0.000000e+00> : vector<1x128xf32>
    %246 = tpu.matmul %243, %245, %cst_162 {dimension_numbers = #tpu.dot_dimension_numbers<[1], [0], [0], [1], [0, 0, 1, 1], [], []>} : vector<1x64xf32>, vector<64x128xf32>, vector<1x128xf32> -> vector<1x128xf32>
    %247 = arith.addf %242, %246 : vector<1x128xf32>
    %248 = vector.extract_strided_slice %58 {offsets = [38, 0], sizes = [1, 64], strides = [1, 1]} : vector<49x64xf32> to vector<1x64xf32>
    %c38 = arith.constant 38 : index
    %c0_163 = arith.constant 0 : index
    %c0_164 = arith.constant 0 : index
    %249 = vector.load %arg6[%c38, %c0_163, %c0_164] : memref<49x64x128xf32, #tpu.memory_space<vmem>>, vector<1x64x128xf32>
    %250 = vector.shape_cast %249 : vector<1x64x128xf32> to vector<64x128xf32>
    %cst_165 = arith.constant dense<0.000000e+00> : vector<1x128xf32>
    %251 = tpu.matmul %248, %250, %cst_165 {dimension_numbers = #tpu.dot_dimension_numbers<[1], [0], [0], [1], [0, 0, 1, 1], [], []>} : vector<1x64xf32>, vector<64x128xf32>, vector<1x128xf32> -> vector<1x128xf32>
    %252 = arith.addf %247, %251 : vector<1x128xf32>
    %253 = vector.extract_strided_slice %58 {offsets = [39, 0], sizes = [1, 64], strides = [1, 1]} : vector<49x64xf32> to vector<1x64xf32>
    %c39 = arith.constant 39 : index
    %c0_166 = arith.constant 0 : index
    %c0_167 = arith.constant 0 : index
    %254 = vector.load %arg6[%c39, %c0_166, %c0_167] : memref<49x64x128xf32, #tpu.memory_space<vmem>>, vector<1x64x128xf32>
    %255 = vector.shape_cast %254 : vector<1x64x128xf32> to vector<64x128xf32>
    %cst_168 = arith.constant dense<0.000000e+00> : vector<1x128xf32>
    %256 = tpu.matmul %253, %255, %cst_168 {dimension_numbers = #tpu.dot_dimension_numbers<[1], [0], [0], [1], [0, 0, 1, 1], [], []>} : vector<1x64xf32>, vector<64x128xf32>, vector<1x128xf32> -> vector<1x128xf32>
    %257 = arith.addf %252, %256 : vector<1x128xf32>
    %258 = vector.extract_strided_slice %58 {offsets = [40, 0], sizes = [1, 64], strides = [1, 1]} : vector<49x64xf32> to vector<1x64xf32>
    %c40 = arith.constant 40 : index
    %c0_169 = arith.constant 0 : index
    %c0_170 = arith.constant 0 : index
    %259 = vector.load %arg6[%c40, %c0_169, %c0_170] : memref<49x64x128xf32, #tpu.memory_space<vmem>>, vector<1x64x128xf32>
    %260 = vector.shape_cast %259 : vector<1x64x128xf32> to vector<64x128xf32>
    %cst_171 = arith.constant dense<0.000000e+00> : vector<1x128xf32>
    %261 = tpu.matmul %258, %260, %cst_171 {dimension_numbers = #tpu.dot_dimension_numbers<[1], [0], [0], [1], [0, 0, 1, 1], [], []>} : vector<1x64xf32>, vector<64x128xf32>, vector<1x128xf32> -> vector<1x128xf32>
    %262 = arith.addf %257, %261 : vector<1x128xf32>
    %263 = vector.extract_strided_slice %58 {offsets = [41, 0], sizes = [1, 64], strides = [1, 1]} : vector<49x64xf32> to vector<1x64xf32>
    %c41 = arith.constant 41 : index
    %c0_172 = arith.constant 0 : index
    %c0_173 = arith.constant 0 : index
    %264 = vector.load %arg6[%c41, %c0_172, %c0_173] : memref<49x64x128xf32, #tpu.memory_space<vmem>>, vector<1x64x128xf32>
    %265 = vector.shape_cast %264 : vector<1x64x128xf32> to vector<64x128xf32>
    %cst_174 = arith.constant dense<0.000000e+00> : vector<1x128xf32>
    %266 = tpu.matmul %263, %265, %cst_174 {dimension_numbers = #tpu.dot_dimension_numbers<[1], [0], [0], [1], [0, 0, 1, 1], [], []>} : vector<1x64xf32>, vector<64x128xf32>, vector<1x128xf32> -> vector<1x128xf32>
    %267 = arith.addf %262, %266 : vector<1x128xf32>
    %268 = vector.extract_strided_slice %58 {offsets = [42, 0], sizes = [1, 64], strides = [1, 1]} : vector<49x64xf32> to vector<1x64xf32>
    %c42 = arith.constant 42 : index
    %c0_175 = arith.constant 0 : index
    %c0_176 = arith.constant 0 : index
    %269 = vector.load %arg6[%c42, %c0_175, %c0_176] : memref<49x64x128xf32, #tpu.memory_space<vmem>>, vector<1x64x128xf32>
    %270 = vector.shape_cast %269 : vector<1x64x128xf32> to vector<64x128xf32>
    %cst_177 = arith.constant dense<0.000000e+00> : vector<1x128xf32>
    %271 = tpu.matmul %268, %270, %cst_177 {dimension_numbers = #tpu.dot_dimension_numbers<[1], [0], [0], [1], [0, 0, 1, 1], [], []>} : vector<1x64xf32>, vector<64x128xf32>, vector<1x128xf32> -> vector<1x128xf32>
    %272 = arith.addf %267, %271 : vector<1x128xf32>
    %273 = vector.extract_strided_slice %58 {offsets = [43, 0], sizes = [1, 64], strides = [1, 1]} : vector<49x64xf32> to vector<1x64xf32>
    %c43 = arith.constant 43 : index
    %c0_178 = arith.constant 0 : index
    %c0_179 = arith.constant 0 : index
    %274 = vector.load %arg6[%c43, %c0_178, %c0_179] : memref<49x64x128xf32, #tpu.memory_space<vmem>>, vector<1x64x128xf32>
    %275 = vector.shape_cast %274 : vector<1x64x128xf32> to vector<64x128xf32>
    %cst_180 = arith.constant dense<0.000000e+00> : vector<1x128xf32>
    %276 = tpu.matmul %273, %275, %cst_180 {dimension_numbers = #tpu.dot_dimension_numbers<[1], [0], [0], [1], [0, 0, 1, 1], [], []>} : vector<1x64xf32>, vector<64x128xf32>, vector<1x128xf32> -> vector<1x128xf32>
    %277 = arith.addf %272, %276 : vector<1x128xf32>
    %278 = vector.extract_strided_slice %58 {offsets = [44, 0], sizes = [1, 64], strides = [1, 1]} : vector<49x64xf32> to vector<1x64xf32>
    %c44 = arith.constant 44 : index
    %c0_181 = arith.constant 0 : index
    %c0_182 = arith.constant 0 : index
    %279 = vector.load %arg6[%c44, %c0_181, %c0_182] : memref<49x64x128xf32, #tpu.memory_space<vmem>>, vector<1x64x128xf32>
    %280 = vector.shape_cast %279 : vector<1x64x128xf32> to vector<64x128xf32>
    %cst_183 = arith.constant dense<0.000000e+00> : vector<1x128xf32>
    %281 = tpu.matmul %278, %280, %cst_183 {dimension_numbers = #tpu.dot_dimension_numbers<[1], [0], [0], [1], [0, 0, 1, 1], [], []>} : vector<1x64xf32>, vector<64x128xf32>, vector<1x128xf32> -> vector<1x128xf32>
    %282 = arith.addf %277, %281 : vector<1x128xf32>
    %283 = vector.extract_strided_slice %58 {offsets = [45, 0], sizes = [1, 64], strides = [1, 1]} : vector<49x64xf32> to vector<1x64xf32>
    %c45 = arith.constant 45 : index
    %c0_184 = arith.constant 0 : index
    %c0_185 = arith.constant 0 : index
    %284 = vector.load %arg6[%c45, %c0_184, %c0_185] : memref<49x64x128xf32, #tpu.memory_space<vmem>>, vector<1x64x128xf32>
    %285 = vector.shape_cast %284 : vector<1x64x128xf32> to vector<64x128xf32>
    %cst_186 = arith.constant dense<0.000000e+00> : vector<1x128xf32>
    %286 = tpu.matmul %283, %285, %cst_186 {dimension_numbers = #tpu.dot_dimension_numbers<[1], [0], [0], [1], [0, 0, 1, 1], [], []>} : vector<1x64xf32>, vector<64x128xf32>, vector<1x128xf32> -> vector<1x128xf32>
    %287 = arith.addf %282, %286 : vector<1x128xf32>
    %288 = vector.extract_strided_slice %58 {offsets = [46, 0], sizes = [1, 64], strides = [1, 1]} : vector<49x64xf32> to vector<1x64xf32>
    %c46 = arith.constant 46 : index
    %c0_187 = arith.constant 0 : index
    %c0_188 = arith.constant 0 : index
    %289 = vector.load %arg6[%c46, %c0_187, %c0_188] : memref<49x64x128xf32, #tpu.memory_space<vmem>>, vector<1x64x128xf32>
    %290 = vector.shape_cast %289 : vector<1x64x128xf32> to vector<64x128xf32>
    %cst_189 = arith.constant dense<0.000000e+00> : vector<1x128xf32>
    %291 = tpu.matmul %288, %290, %cst_189 {dimension_numbers = #tpu.dot_dimension_numbers<[1], [0], [0], [1], [0, 0, 1, 1], [], []>} : vector<1x64xf32>, vector<64x128xf32>, vector<1x128xf32> -> vector<1x128xf32>
    %292 = arith.addf %287, %291 : vector<1x128xf32>
    %293 = vector.extract_strided_slice %58 {offsets = [47, 0], sizes = [1, 64], strides = [1, 1]} : vector<49x64xf32> to vector<1x64xf32>
    %c47 = arith.constant 47 : index
    %c0_190 = arith.constant 0 : index
    %c0_191 = arith.constant 0 : index
    %294 = vector.load %arg6[%c47, %c0_190, %c0_191] : memref<49x64x128xf32, #tpu.memory_space<vmem>>, vector<1x64x128xf32>
    %295 = vector.shape_cast %294 : vector<1x64x128xf32> to vector<64x128xf32>
    %cst_192 = arith.constant dense<0.000000e+00> : vector<1x128xf32>
    %296 = tpu.matmul %293, %295, %cst_192 {dimension_numbers = #tpu.dot_dimension_numbers<[1], [0], [0], [1], [0, 0, 1, 1], [], []>} : vector<1x64xf32>, vector<64x128xf32>, vector<1x128xf32> -> vector<1x128xf32>
    %297 = arith.addf %292, %296 : vector<1x128xf32>
    %298 = vector.extract_strided_slice %58 {offsets = [48, 0], sizes = [1, 64], strides = [1, 1]} : vector<49x64xf32> to vector<1x64xf32>
    %c48 = arith.constant 48 : index
    %c0_193 = arith.constant 0 : index
    %c0_194 = arith.constant 0 : index
    %299 = vector.load %arg6[%c48, %c0_193, %c0_194] : memref<49x64x128xf32, #tpu.memory_space<vmem>>, vector<1x64x128xf32>
    %300 = vector.shape_cast %299 : vector<1x64x128xf32> to vector<64x128xf32>
    %cst_195 = arith.constant dense<0.000000e+00> : vector<1x128xf32>
    %301 = tpu.matmul %298, %300, %cst_195 {dimension_numbers = #tpu.dot_dimension_numbers<[1], [0], [0], [1], [0, 0, 1, 1], [], []>} : vector<1x64xf32>, vector<64x128xf32>, vector<1x128xf32> -> vector<1x128xf32>
    %302 = arith.addf %297, %301 : vector<1x128xf32>
    %c0_196 = arith.constant 0 : index
    %c0_197 = arith.constant 0 : index
    %303 = vector.load %arg7[%c0_196, %c0_197] : memref<1x128xf32, #tpu.memory_space<vmem>>, vector<1x128xf32>
    %304 = arith.addf %302, %303 : vector<1x128xf32>
    %c0_198 = arith.constant 0 : index
    %c0_199 = arith.constant 0 : index
    %305 = vector.load %arg8[%c0_198, %c0_199] : memref<1x128xf32, #tpu.memory_space<vmem>>, vector<1x128xf32>
    tpu.vector_store %arg8[%c0_198, %c0_199], %304 {strides = array<i32>} : memref<1x128xf32, #tpu.memory_space<vmem>>, vector<1x128xf32>,
    return
  }
}

</mosaic_0001>

<llo_original>
// kernel: convolutional_encoder.1
$region0: #{convolutional_encoder.1}
  #allocation0 [shape = 'u32[]', space=smem, size = 0x4, offset = 0x4, fixed_abs, tag = 'smem constant byte address 0x4 - core index']
  #allocation1 [shape = 'u32[72,128]{1,0:T(1,128)}', space=vmem, size = 0x9000, scoped, tag = 'internal scratch']
  %s0 = inlined_call_operand.vmem [shape: f32[196,18], index: 0, kind: input, shape index: {}]
  %s1 = inlined_call_operand.vmem [shape: f32[18,32], index: 1, kind: input, shape index: {}]
  %s2 = inlined_call_operand.vmem [shape: f32[1,32], index: 2, kind: input, shape index: {}]
  %s3 = inlined_call_operand.vmem [shape: f32[441,196], index: 3, kind: input, shape index: {}]
  %s4 = inlined_call_operand.hbm [shape: f32[9,32,64], index: 4, kind: input, shape index: {}]
  %s5 = inlined_call_operand.vmem [shape: f32[1,64], index: 5, kind: input, shape index: {}]
  %s6 = inlined_call_operand.vmem [shape: f32[49,64,128], index: 6, kind: input, shape index: {}]
  %s7 = inlined_call_operand.vmem [shape: f32[1,128], index: 7, kind: input, shape index: {}]
  %s8 = inlined_call_operand.vmem [shape: f32[1,128], index: 8, kind: output, shape index: {}]
  %s9 = sld [smem:[#allocation0]]
  $region46: #{convolutional_encoder.1} parent=0
    _
  %s11 = ssub.s32 1, %s9
  %s12 = scalar_select 0, %s11, %s9
  $region1: #{convolutional_encoder.1} parent=0
    #allocation2 [shape = 'u8[147456]{0}', space=vmem, size = 0x24000, scoped, tag = 'input window, operand 4, single buffered']
    #allocation3 [shape = 's32[1]{0}', space=sflag, size = 0x4, scoped, tag = 'scoped memory for convolutional_encoder.1']
    %13 = vsyncpa [#allocation3], 0
    // Predicated region
    $region2: #{convolutional_encoder.1} parent=1 // pred_check
      _
    $region3: #{convolutional_encoder.1} parent=1 // pred_check_branch
      %15 = sbr.rel (0) target = $region5
    $region4: #{convolutional_encoder.1} parent=1 // pred_region
      _
    $region5: #{convolutional_encoder.1} parent=1 // pred_fallthru
      _
    // Predicated region
    $region6: #{convolutional_encoder.1} parent=1 // pred_check
      _
    $region7: #{convolutional_encoder.1} parent=1 // pred_check_branch
      %17 = sbr.rel (0) target = $region9
    $region8: #{convolutional_encoder.1} parent=1 // pred_region
      _
    $region9: #{convolutional_encoder.1} parent=1 // pred_fallthru
      _
    // Predicated region
    $region10: #{convolutional_encoder.1} parent=1 // pred_check
      _
    $region11: #{convolutional_encoder.1} parent=1 // pred_check_branch
      %19 = sbr.rel (0) target = $region13
    $region12: #{convolutional_encoder.1} parent=1 // pred_region
      _
    $region13: #{convolutional_encoder.1} parent=1 // pred_fallthru
      _
    // Predicated region
    $region14: #{convolutional_encoder.1} parent=1 // pred_check
      _
    $region15: #{convolutional_encoder.1} parent=1 // pred_check_branch
      %21 = sbr.rel (0) target = $region17
    $region16: #{convolutional_encoder.1} parent=1 // pred_region
      _
    $region17: #{convolutional_encoder.1} parent=1 // pred_fallthru
      _
    // Predicated region
    $region18: #{convolutional_encoder.1} parent=1 // pred_check
      _
    $region19: #{convolutional_encoder.1} parent=1 // pred_check_branch
      %23 = sbr.rel (0) target = $region21
    $region20: #{convolutional_encoder.1} parent=1 // pred_region
      %25 = vsyncadd [#allocation3], 0
      %s26 = sshll.u32 %s4, 4
      %s27 = int_to_ptr.hbm [resolvable:$true] %s26
      %s28 = sshll.u32 [#allocation2], 4
      %s29 = int_to_ptr.vmem [resolvable:$true] %s28
      %34 = dma.hbm_to_vmem [thread:$0]  %s27, 4608, %s29, [#allocation3], 128, 128, 8
    $region21: #{convolutional_encoder.1} parent=1 // pred_fallthru
      _
    // Predicated region
    $region22: #{convolutional_encoder.1} parent=1 // pred_check
      _
    $region23: #{convolutional_encoder.1} parent=1 // pred_check_branch
      %36 = sbr.rel (0) target = $region25
    $region24: #{convolutional_encoder.1} parent=1 // pred_region
      _
    $region25: #{convolutional_encoder.1} parent=1 // pred_fallthru
      _
    // Predicated region
    $region26: #{convolutional_encoder.1} parent=1 // pred_check
      _
    $region27: #{convolutional_encoder.1} parent=1 // pred_check_branch
      %38 = sbr.rel (0) target = $region29
    $region28: #{convolutional_encoder.1} parent=1 // pred_region
      _
    $region29: #{convolutional_encoder.1} parent=1 // pred_fallthru
      _
    // Predicated region
    $region30: #{convolutional_encoder.1} parent=1 // pred_check
      _
    $region31: #{convolutional_encoder.1} parent=1 // pred_check_branch
      %40 = sbr.rel (0) target = $region33
    $region32: #{convolutional_encoder.1} parent=1 // pred_region
      _
    $region33: #{convolutional_encoder.1} parent=1 // pred_fallthru
      _
    // Predicated region
    $region34: #{convolutional_encoder.1} parent=1 // pred_check
      _
    $region35: #{convolutional_encoder.1} parent=1 // pred_check_branch
      %42 = sbr.rel (0) target = $region37
    $region36: #{convolutional_encoder.1} parent=1 // pred_region
      %44 = dma.done [#allocation3], 4608
    $region37: #{convolutional_encoder.1} parent=1 // pred_fallthru
      _
    %v45 = vld [vmem:[%s0] sm:$0xff]
    %v46 = vld [vmem:[%s0 + $0x8] sm:$0xff]
    %v47 = vld [vmem:[%s0 + $0x10] sm:$0xff]
    %v48 = vld [vmem:[%s0 + $0x18] sm:$0xff]
    %v49 = vld [vmem:[%s0 + $0x20] sm:$0xff]
    %v50 = vld [vmem:[%s0 + $0x28] sm:$0xff]
    %v51 = vld [vmem:[%s0 + $0x30] sm:$0xff]
    %v52 = vld [vmem:[%s0 + $0x38] sm:$0xff]
    %v53 = vld [vmem:[%s0 + $0x40] sm:$0xff]
    %v54 = vld [vmem:[%s0 + $0x48] sm:$0xff]
    %v55 = vld [vmem:[%s0 + $0x50] sm:$0xff]
    %v56 = vld [vmem:[%s0 + $0x58] sm:$0xff]
    %v57 = vld [vmem:[%s0 + $0x60] sm:$0xff]
    %v58 = vld [vmem:[%s0 + $0x68] sm:$0xff]
    %v59 = vld [vmem:[%s0 + $0x70] sm:$0xff]
    %v60 = vld [vmem:[%s0 + $0x78] sm:$0xff]
    %v61 = vld [vmem:[%s0 + $0x80] sm:$0xff]
    %v62 = vld [vmem:[%s0 + $0x88] sm:$0xff]
    %v63 = vld [vmem:[%s0 + $0x90] sm:$0xff]
    %v64 = vld [vmem:[%s0 + $0x98] sm:$0xff]
    %v65 = vld [vmem:[%s0 + $0xa0] sm:$0xff]
    %v66 = vld [vmem:[%s0 + $0xa8] sm:$0xff]
    %v67 = vld [vmem:[%s0 + $0xb0] sm:$0xff]
    %v68 = vld [vmem:[%s0 + $0xb8] sm:$0xff]
    %v69 = vld [vmem:[%s0 + $0xc0] sm:$0xf]
    %v70 = vld [vmem:[%s1] sm:$0xff]
    %v71 = vld [vmem:[%s1 + $0x8] sm:$0xff]
    %v72 = vld [vmem:[%s1 + $0x10] sm:$0x3]
    %v73 = vld [vmem:[%s2] sm:$0x1]
    %v75 = vperm.slane %v73, 0
    %vm77 = vcmask 146432
    %v79 = vsel %vm77, %v45, 0
    %v82 = vsel %vm77, %v46, 0
    %v85 = vsel %vm77, %v47, 0
    %v88 = vsel %vm77, %v48, 0
    %v91 = vsel %vm77, %v49, 0
    %v94 = vsel %vm77, %v50, 0
    %v97 = vsel %vm77, %v51, 0
    %v100 = vsel %vm77, %v52, 0
    %v103 = vsel %vm77, %v53, 0
    %v106 = vsel %vm77, %v54, 0
    %v109 = vsel %vm77, %v55, 0
    %v112 = vsel %vm77, %v56, 0
    %v115 = vsel %vm77, %v57, 0
    %v118 = vsel %vm77, %v58, 0
    %v121 = vsel %vm77, %v59, 0
    %v124 = vsel %vm77, %v60, 0
    %v127 = vsel %vm77, %v61, 0
    %v130 = vsel %vm77, %v62, 0
    %v133 = vsel %vm77, %v63, 0
    %v136 = vsel %vm77, %v64, 0
    %v139 = vsel %vm77, %v65, 0
    %v142 = vsel %vm77, %v66, 0
    %v145 = vsel %vm77, %v67, 0
    %v148 = vsel %vm77, %v68, 0
    %v151 = vsel %vm77, %v69, 0
    %vm153 = vcmask 1041408
    %v155 = vsel %vm153, %v72, 0
    %157 = vmatpush.msra.mxu0 0.0
    %158 = vmatpush.msra.mxu0 0.0
    %159 = vmatpush.msra.mxu0 0.0
    %160 = vmatpush.msra.mxu0 0.0
    %161 = vmatpush.msra.mxu0 0.0
    %162 = vmatpush.msra.mxu0 0.0
    %163 = vmatpush.msra.mxu0 0.0
    %164 = vmatpush.msra.mxu0 0.0
    %165 = vmatpush.msra.mxu0 0.0
    %166 = vmatpush.msra.mxu0 0.0
    %167 = vmatpush.msra.mxu0 0.0
    %168 = vmatpush.msra.mxu0 0.0
    %169 = vmatpush.msra.mxu0 0.0
    %170 = vmatpush.msra.mxu0 %v155
    %171 = vmatpush.msra.mxu0 %v71
    %172 = vmatpush.msra.mxu0 %v70
    %173 = vmatmul.f32.gmra.mxu0 %v79
    %v174 = vpop.f32.mrf.mxu0
    %v175 = vadd.f32 %v75, %v174
    %176 = vmatmul.f32.gmra.mxu0 %v82
    %v177 = vpop.f32.mrf.mxu0
    %v178 = vadd.f32 %v75, %v177
    %179 = vmatmul.f32.gmra.mxu0 %v85
    %v180 = vpop.f32.mrf.mxu0
    %v181 = vadd.f32 %v75, %v180
    %182 = vmatmul.f32.gmra.mxu0 %v88
    %v183 = vpop.f32.mrf.mxu0
    %v184 = vadd.f32 %v75, %v183
    %185 = vmatmul.f32.gmra.mxu0 %v91
    %v186 = vpop.f32.mrf.mxu0
    %v187 = vadd.f32 %v75, %v186
    %188 = vmatmul.f32.gmra.mxu0 %v94
    %v189 = vpop.f32.mrf.mxu0
    %v190 = vadd.f32 %v75, %v189
    %191 = vmatmul.f32.gmra.mxu0 %v97
    %v192 = vpop.f32.mrf.mxu0
    %v193 = vadd.f32 %v75, %v192
    %194 = vmatmul.f32.gmra.mxu0 %v100
    %v195 = vpop.f32.mrf.mxu0
    %v196 = vadd.f32 %v75, %v195
    %197 = vmatmul.f32.gmra.mxu0 %v103
    %v198 = vpop.f32.mrf.mxu0
    %v199 = vadd.f32 %v75, %v198
    %200 = vmatmul.f32.gmra.mxu0 %v106
    %v201 = vpop.f32.mrf.mxu0
    %v202 = vadd.f32 %v75, %v201
    %203 = vmatmul.f32.gmra.mxu0 %v109
    %v204 = vpop.f32.mrf.mxu0
    %v205 = vadd.f32 %v75, %v204
    %206 = vmatmul.f32.gmra.mxu0 %v112
    %v207 = vpop.f32.mrf.mxu0
    %v208 = vadd.f32 %v75, %v207
    %209 = vmatmul.f32.gmra.mxu0 %v115
    %v210 = vpop.f32.mrf.mxu0
    %v211 = vadd.f32 %v75, %v210
    %212 = vmatmul.f32.gmra.mxu0 %v118
    %v213 = vpop.f32.mrf.mxu0
    %v214 = vadd.f32 %v75, %v213
    %215 = vmatmul.f32.gmra.mxu0 %v121
    %v216 = vpop.f32.mrf.mxu0
    %v217 = vadd.f32 %v75, %v216
    %218 = vmatmul.f32.gmra.mxu0 %v124
    %v219 = vpop.f32.mrf.mxu0
    %v220 = vadd.f32 %v75, %v219
    %221 = vmatmul.f32.gmra.mxu0 %v127
    %v222 = vpop.f32.mrf.mxu0
    %v223 = vadd.f32 %v75, %v222
    %224 = vmatmul.f32.gmra.mxu0 %v130
    %v225 = vpop.f32.mrf.mxu0
    %v226 = vadd.f32 %v75, %v225
    %227 = vmatmul.f32.gmra.mxu0 %v133
    %v228 = vpop.f32.mrf.mxu0
    %v229 = vadd.f32 %v75, %v228
    %230 = vmatmul.f32.gmra.mxu0 %v136
    %v231 = vpop.f32.mrf.mxu0
    %v232 = vadd.f32 %v75, %v231
    %233 = vmatmul.f32.gmra.mxu0 %v139
    %v234 = vpop.f32.mrf.mxu0
    %v235 = vadd.f32 %v75, %v234
    %236 = vmatmul.f32.gmra.mxu0 %v142
    %v237 = vpop.f32.mrf.mxu0
    %v238 = vadd.f32 %v75, %v237
    %239 = vmatmul.f32.gmra.mxu0 %v145
    %v240 = vpop.f32.mrf.mxu0
    %v241 = vadd.f32 %v75, %v240
    %242 = vmatmul.f32.gmra.mxu0 %v148
    %v243 = vpop.f32.mrf.mxu0
    %v244 = vadd.f32 %v75, %v243
    %245 = vmatmul.f32.gmra.mxu0 %v151
    %v246 = vpop.f32.mrf.mxu0
    %v247 = vadd.f32 %v75, %v246
    %248 = vdwg.mxu0
    %v249 = vmax.f32 %v175, 0.0
    %v250 = vmax.f32 %v178, 0.0
    %v251 = vmax.f32 %v181, 0.0
    %v252 = vmax.f32 %v184, 0.0
    %v253 = vmax.f32 %v187, 0.0
    %v254 = vmax.f32 %v190, 0.0
    %v255 = vmax.f32 %v193, 0.0
    %v256 = vmax.f32 %v196, 0.0
    %v257 = vmax.f32 %v199, 0.0
    %v258 = vmax.f32 %v202, 0.0
    %v259 = vmax.f32 %v205, 0.0
    %v260 = vmax.f32 %v208, 0.0
    %v261 = vmax.f32 %v211, 0.0
    %v262 = vmax.f32 %v214, 0.0
    %v263 = vmax.f32 %v217, 0.0
    %v264 = vmax.f32 %v220, 0.0
    %v265 = vmax.f32 %v223, 0.0
    %v266 = vmax.f32 %v226, 0.0
    %v267 = vmax.f32 %v229, 0.0
    %v268 = vmax.f32 %v232, 0.0
    %v269 = vmax.f32 %v235, 0.0
    %v270 = vmax.f32 %v238, 0.0
    %v271 = vmax.f32 %v241, 0.0
    %v272 = vmax.f32 %v244, 0.0
    %v273 = vmax.f32 %v247, 0.0
    %v274 = vld [vmem:[%s3] sm:$0xff]
    %v275 = vld [vmem:[%s3 + $0x8] sm:$0xff]
    %v276 = vld [vmem:[%s3 + $0x10] sm:$0xff]
    %v277 = vld [vmem:[%s3 + $0x18] sm:$0xff]
    %v278 = vld [vmem:[%s3 + $0x20] sm:$0xff]
    %v279 = vld [vmem:[%s3 + $0x28] sm:$0xff]
    %v280 = vld [vmem:[%s3 + $0x30] sm:$0xff]
    %v281 = vld [vmem:[%s3 + $0x38] sm:$0xff]
    %v282 = vld [vmem:[%s3 + $0x40] sm:$0xff]
    %v283 = vld [vmem:[%s3 + $0x48] sm:$0xff]
    %v284 = vld [vmem:[%s3 + $0x50] sm:$0xff]
    %v285 = vld [vmem:[%s3 + $0x58] sm:$0xff]
    %v286 = vld [vmem:[%s3 + $0x60] sm:$0xff]
    %v287 = vld [vmem:[%s3 + $0x68] sm:$0xff]
    %v288 = vld [vmem:[%s3 + $0x70] sm:$0xff]
    %v289 = vld [vmem:[%s3 + $0x78] sm:$0xff]
    %v290 = vld [vmem:[%s3 + $0x80] sm:$0xff]
    %v291 = vld [vmem:[%s3 + $0x88] sm:$0xff]
    %v292 = vld [vmem:[%s3 + $0x90] sm:$0xff]
    %v293 = vld [vmem:[%s3 + $0x98] sm:$0xff]
    %v294 = vld [vmem:[%s3 + $0xa0] sm:$0xff]
    %v295 = vld [vmem:[%s3 + $0xa8] sm:$0xff]
    %v296 = vld [vmem:[%s3 + $0xb0] sm:$0xff]
    %v297 = vld [vmem:[%s3 + $0xb8] sm:$0xff]
    %v298 = vld [vmem:[%s3 + $0xc0] sm:$0xff]
    %v299 = vld [vmem:[%s3 + $0xc8] sm:$0xff]
    %v300 = vld [vmem:[%s3 + $0xd0] sm:$0xff]
    %v301 = vld [vmem:[%s3 + $0xd8] sm:$0xff]
    %v302 = vld [vmem:[%s3 + $0xe0] sm:$0xff]
    %v303 = vld [vmem:[%s3 + $0xe8] sm:$0xff]
    %v304 = vld [vmem:[%s3 + $0xf0] sm:$0xff]
    %v305 = vld [vmem:[%s3 + $0xf8] sm:$0xff]
    %v306 = vld [vmem:[%s3 + $0x100] sm:$0xff]
    %v307 = vld [vmem:[%s3 + $0x108] sm:$0xff]
    %v308 = vld [vmem:[%s3 + $0x110] sm:$0xff]
    %v309 = vld [vmem:[%s3 + $0x118] sm:$0xff]
    %v310 = vld [vmem:[%s3 + $0x120] sm:$0xff]
    %v311 = vld [vmem:[%s3 + $0x128] sm:$0xff]
    %v312 = vld [vmem:[%s3 + $0x130] sm:$0xff]
    %v313 = vld [vmem:[%s3 + $0x138] sm:$0xff]
    %v314 = vld [vmem:[%s3 + $0x140] sm:$0xff]
    %v315 = vld [vmem:[%s3 + $0x148] sm:$0xff]
    %v316 = vld [vmem:[%s3 + $0x150] sm:$0xff]
    %v317 = vld [vmem:[%s3 + $0x158] sm:$0xff]
    %v318 = vld [vmem:[%s3 + $0x160] sm:$0xff]
    %v319 = vld [vmem:[%s3 + $0x168] sm:$0xff]
    %v320 = vld [vmem:[%s3 + $0x170] sm:$0xff]
    %v321 = vld [vmem:[%s3 + $0x178] sm:$0xff]
    %v322 = vld [vmem:[%s3 + $0x180] sm:$0xff]
    %v323 = vld [vmem:[%s3 + $0x188] sm:$0xff]
    %v324 = vld [vmem:[%s3 + $0x190] sm:$0xff]
    %v325 = vld [vmem:[%s3 + $0x198] sm:$0xff]
    %v326 = vld [vmem:[%s3 + $0x1a0] sm:$0xff]
    %v327 = vld [vmem:[%s3 + $0x1a8] sm:$0xff]
    %v328 = vld [vmem:[%s3 + $0x1b0] sm:$0xff]
    %v329 = vld [vmem:[%s3 + $0x1b8] sm:$0xff]
    %v330 = vld [vmem:[%s3 + $0x1c0] sm:$0xff]
    %v331 = vld [vmem:[%s3 + $0x1c8] sm:$0xff]
    %v332 = vld [vmem:[%s3 + $0x1d0] sm:$0xff]
    %v333 = vld [vmem:[%s3 + $0x1d8] sm:$0xff]
    %v334 = vld [vmem:[%s3 + $0x1e0] sm:$0xff]
    %v335 = vld [vmem:[%s3 + $0x1e8] sm:$0xff]
    %v336 = vld [vmem:[%s3 + $0x1f0] sm:$0xff]
    %v337 = vld [vmem:[%s3 + $0x1f8] sm:$0xff]
    %v338 = vld [vmem:[%s3 + $0x200] sm:$0xff]
    %v339 = vld [vmem:[%s3 + $0x208] sm:$0xff]
    %v340 = vld [vmem:[%s3 + $0x210] sm:$0xff]
    %v341 = vld [vmem:[%s3 + $0x218] sm:$0xff]
    %v342 = vld [vmem:[%s3 + $0x220] sm:$0xff]
    %v343 = vld [vmem:[%s3 + $0x228] sm:$0xff]
    %v344 = vld [vmem:[%s3 + $0x230] sm:$0xff]
    %v345 = vld [vmem:[%s3 + $0x238] sm:$0xff]
    %v346 = vld [vmem:[%s3 + $0x240] sm:$0xff]
    %v347 = vld [vmem:[%s3 + $0x248] sm:$0xff]
    %v348 = vld [vmem:[%s3 + $0x250] sm:$0xff]
    %v349 = vld [vmem:[%s3 + $0x258] sm:$0xff]
    %v350 = vld [vmem:[%s3 + $0x260] sm:$0xff]
    %v351 = vld [vmem:[%s3 + $0x268] sm:$0xff]
    %v352 = vld [vmem:[%s3 + $0x270] sm:$0xff]
    %v353 = vld [vmem:[%s3 + $0x278] sm:$0xff]
    %v354 = vld [vmem:[%s3 + $0x280] sm:$0xff]
    %v355 = vld [vmem:[%s3 + $0x288] sm:$0xff]
    %v356 = vld [vmem:[%s3 + $0x290] sm:$0xff]
    %v357 = vld [vmem:[%s3 + $0x298] sm:$0xff]
    %v358 = vld [vmem:[%s3 + $0x2a0] sm:$0xff]
    %v359 = vld [vmem:[%s3 + $0x2a8] sm:$0xff]
    %v360 = vld [vmem:[%s3 + $0x2b0] sm:$0xff]
    %v361 = vld [vmem:[%s3 + $0x2b8] sm:$0xff]
    %v362 = vld [vmem:[%s3 + $0x2c0] sm:$0xff]
    %v363 = vld [vmem:[%s3 + $0x2c8] sm:$0xff]
    %v364 = vld [vmem:[%s3 + $0x2d0] sm:$0xff]
    %v365 = vld [vmem:[%s3 + $0x2d8] sm:$0xff]
    %v366 = vld [vmem:[%s3 + $0x2e0] sm:$0xff]
    %v367 = vld [vmem:[%s3 + $0x2e8] sm:$0xff]
    %v368 = vld [vmem:[%s3 + $0x2f0] sm:$0xff]
    %v369 = vld [vmem:[%s3 + $0x2f8] sm:$0xff]
    %v370 = vld [vmem:[%s3 + $0x300] sm:$0xff]
    %v371 = vld [vmem:[%s3 + $0x308] sm:$0xff]
    %v372 = vld [vmem:[%s3 + $0x310] sm:$0xff]
    %v373 = vld [vmem:[%s3 + $0x318] sm:$0xff]
    %v374 = vld [vmem:[%s3 + $0x320] sm:$0xff]
    %v375 = vld [vmem:[%s3 + $0x328] sm:$0xff]
    %v376 = vld [vmem:[%s3 + $0x330] sm:$0xff]
    %v377 = vld [vmem:[%s3 + $0x338] sm:$0xff]
    %v378 = vld [vmem:[%s3 + $0x340] sm:$0xff]
    %v379 = vld [vmem:[%s3 + $0x348] sm:$0xff]
    %v380 = vld [vmem:[%s3 + $0x350] sm:$0xff]
    %v381 = vld [vmem:[%s3 + $0x358] sm:$0xff]
    %v382 = vld [vmem:[%s3 + $0x360] sm:$0xff]
    %v383 = vld [vmem:[%s3 + $0x368] sm:$0xff]
    %v384 = vld [vmem:[%s3 + $0x370] sm:$0x1]
    %v385 = vld [vmem:[%s3 + $0x378] sm:$0x1]
    %vm386 = vcmask 556032
    %v388 = vsel %vm386, %v275, 0
    %v391 = vsel %vm386, %v277, 0
    %v394 = vsel %vm386, %v279, 0
    %v397 = vsel %vm386, %v281, 0
    %v400 = vsel %vm386, %v283, 0
    %v403 = vsel %vm386, %v285, 0
    %v406 = vsel %vm386, %v287, 0
    %v409 = vsel %vm386, %v289, 0
    %v412 = vsel %vm386, %v291, 0
    %v415 = vsel %vm386, %v293, 0
    %v418 = vsel %vm386, %v295, 0
    %v421 = vsel %vm386, %v297, 0
    %v424 = vsel %vm386, %v299, 0
    %v427 = vsel %vm386, %v301, 0
    %v430 = vsel %vm386, %v303, 0
    %v433 = vsel %vm386, %v305, 0
    %v436 = vsel %vm386, %v307, 0
    %v439 = vsel %vm386, %v309, 0
    %v442 = vsel %vm386, %v311, 0
    %v445 = vsel %vm386, %v313, 0
    %v448 = vsel %vm386, %v315, 0
    %v451 = vsel %vm386, %v317, 0
    %v454 = vsel %vm386, %v319, 0
    %v457 = vsel %vm386, %v321, 0
    %v460 = vsel %vm386, %v323, 0
    %v463 = vsel %vm386, %v325, 0
    %v466 = vsel %vm386, %v327, 0
    %v469 = vsel %vm386, %v329, 0
    %v472 = vsel %vm386, %v331, 0
    %v475 = vsel %vm386, %v333, 0
    %v478 = vsel %vm386, %v335, 0
    %v481 = vsel %vm386, %v337, 0
    %v484 = vsel %vm386, %v339, 0
    %v487 = vsel %vm386, %v341, 0
    %v490 = vsel %vm386, %v343, 0
    %v493 = vsel %vm386, %v345, 0
    %v496 = vsel %vm386, %v347, 0
    %v499 = vsel %vm386, %v349, 0
    %v502 = vsel %vm386, %v351, 0
    %v505 = vsel %vm386, %v353, 0
    %v508 = vsel %vm386, %v355, 0
    %v511 = vsel %vm386, %v357, 0
    %v514 = vsel %vm386, %v359, 0
    %v517 = vsel %vm386, %v361, 0
    %v520 = vsel %vm386, %v363, 0
    %v523 = vsel %vm386, %v365, 0
    %v526 = vsel %vm386, %v367, 0
    %v529 = vsel %vm386, %v369, 0
    %v532 = vsel %vm386, %v371, 0
    %v535 = vsel %vm386, %v373, 0
    %v538 = vsel %vm386, %v375, 0
    %v541 = vsel %vm386, %v377, 0
    %v544 = vsel %vm386, %v379, 0
    %v547 = vsel %vm386, %v381, 0
    %v550 = vsel %vm386, %v383, 0
    %v553 = vsel %vm386, %v385, 0
    %vm555 = vcmask 1043456
    %v557 = vsel %vm555, %v273, 0
    %559 = vmatpush.msra.mxu0 %v264
    %560 = vmatpush.msra.mxu0 %v263
    %561 = vmatpush.msra.mxu0 %v262
    %562 = vmatpush.msra.mxu0 %v261
    %563 = vmatpush.msra.mxu0 %v260
    %564 = vmatpush.msra.mxu0 %v259
    %565 = vmatpush.msra.mxu0 %v258
    %566 = vmatpush.msra.mxu0 %v257
    %567 = vmatpush.msra.mxu0 %v256
    %568 = vmatpush.msra.mxu0 %v255
    %569 = vmatpush.msra.mxu0 %v254
    %570 = vmatpush.msra.mxu0 %v253
    %571 = vmatpush.msra.mxu0 %v252
    %572 = vmatpush.msra.mxu0 %v251
    %573 = vmatpush.msra.mxu0 %v250
    %574 = vmatpush.msra.mxu0 %v249
    %575 = vmatmul.f32.gmra.mxu0 %v274
    %v576 = vpop.f32.mrf.mxu0
    %v577 = vadd.f32 0.0, %v576
    %578 = vmatmul.f32.gmra.mxu0 %v276
    %v579 = vpop.f32.mrf.mxu0
    %v580 = vadd.f32 0.0, %v579
    %581 = vmatmul.f32.gmra.mxu0 %v278
    %v582 = vpop.f32.mrf.mxu0
    %v583 = vadd.f32 0.0, %v582
    %584 = vmatmul.f32.gmra.mxu0 %v280
    %v585 = vpop.f32.mrf.mxu0
    %v586 = vadd.f32 0.0, %v585
    %587 = vmatmul.f32.gmra.mxu0 %v282
    %v588 = vpop.f32.mrf.mxu0
    %v589 = vadd.f32 0.0, %v588
    %590 = vmatmul.f32.gmra.mxu0 %v284
    %v591 = vpop.f32.mrf.mxu0
    %v592 = vadd.f32 0.0, %v591
    %593 = vmatmul.f32.gmra.mxu0 %v286
    %v594 = vpop.f32.mrf.mxu0
    %v595 = vadd.f32 0.0, %v594
    %596 = vmatmul.f32.gmra.mxu0 %v288
    %v597 = vpop.f32.mrf.mxu0
    %v598 = vadd.f32 0.0, %v597
    %599 = vmatmul.f32.gmra.mxu0 %v290
    %v600 = vpop.f32.mrf.mxu0
    %v601 = vadd.f32 0.0, %v600
    %602 = vmatmul.f32.gmra.mxu0 %v292
    %v603 = vpop.f32.mrf.mxu0
    %v604 = vadd.f32 0.0, %v603
    %605 = vmatmul.f32.gmra.mxu0 %v294
    %v606 = vpop.f32.mrf.mxu0
    %v607 = vadd.f32 0.0, %v606
    %608 = vmatmul.f32.gmra.mxu0 %v296
    %v609 = vpop.f32.mrf.mxu0
    %v610 = vadd.f32 0.0, %v609
    %611 = vmatmul.f32.gmra.mxu0 %v298
    %v612 = vpop.f32.mrf.mxu0
    %v613 = vadd.f32 0.0, %v612
    %614 = vmatmul.f32.gmra.mxu0 %v300
    %v615 = vpop.f32.mrf.mxu0
    %v616 = vadd.f32 0.0, %v615
    %617 = vmatmul.f32.gmra.mxu0 %v302
    %v618 = vpop.f32.mrf.mxu0
    %v619 = vadd.f32 0.0, %v618
    %620 = vmatmul.f32.gmra.mxu0 %v304
    %v621 = vpop.f32.mrf.mxu0
    %v622 = vadd.f32 0.0, %v621
    %623 = vmatmul.f32.gmra.mxu0 %v306
    %v624 = vpop.f32.mrf.mxu0
    %v625 = vadd.f32 0.0, %v624
    %626 = vmatmul.f32.gmra.mxu0 %v308
    %v627 = vpop.f32.mrf.mxu0
    %v628 = vadd.f32 0.0, %v627
    %629 = vmatmul.f32.gmra.mxu0 %v310
    %v630 = vpop.f32.mrf.mxu0
    %v631 = vadd.f32 0.0, %v630
    %632 = vmatmul.f32.gmra.mxu0 %v312
    %v633 = vpop.f32.mrf.mxu0
    %v634 = vadd.f32 0.0, %v633
    %635 = vmatmul.f32.gmra.mxu0 %v314
    %v636 = vpop.f32.mrf.mxu0
    %v637 = vadd.f32 0.0, %v636
    %638 = vmatmul.f32.gmra.mxu0 %v316
    %v639 = vpop.f32.mrf.mxu0
    %v640 = vadd.f32 0.0, %v639
    %641 = vmatmul.f32.gmra.mxu0 %v318
    %v642 = vpop.f32.mrf.mxu0
    %v643 = vadd.f32 0.0, %v642
    %644 = vmatmul.f32.gmra.mxu0 %v320
    %v645 = vpop.f32.mrf.mxu0
    %v646 = vadd.f32 0.0, %v645
    %647 = vmatmul.f32.gmra.mxu0 %v322
    %v648 = vpop.f32.mrf.mxu0
    %v649 = vadd.f32 0.0, %v648
    %650 = vmatmul.f32.gmra.mxu0 %v324
    %v651 = vpop.f32.mrf.mxu0
    %v652 = vadd.f32 0.0, %v651
    %653 = vmatmul.f32.gmra.mxu0 %v326
    %v654 = vpop.f32.mrf.mxu0
    %v655 = vadd.f32 0.0, %v654
    %656 = vmatmul.f32.gmra.mxu0 %v328
    %v657 = vpop.f32.mrf.mxu0
    %v658 = vadd.f32 0.0, %v657
    %659 = vmatmul.f32.gmra.mxu0 %v330
    %v660 = vpop.f32.mrf.mxu0
    %v661 = vadd.f32 0.0, %v660
    %662 = vmatmul.f32.gmra.mxu0 %v332
    %v663 = vpop.f32.mrf.mxu0
    %v664 = vadd.f32 0.0, %v663
    %665 = vmatmul.f32.gmra.mxu0 %v334
    %v666 = vpop.f32.mrf.mxu0
    %v667 = vadd.f32 0.0, %v666
    %668 = vmatmul.f32.gmra.mxu0 %v336
    %v669 = vpop.f32.mrf.mxu0
    %v670 = vadd.f32 0.0, %v669
    %671 = vmatmul.f32.gmra.mxu0 %v338
    %v672 = vpop.f32.mrf.mxu0
    %v673 = vadd.f32 0.0, %v672
    %674 = vmatmul.f32.gmra.mxu0 %v340
    %v675 = vpop.f32.mrf.mxu0
    %v676 = vadd.f32 0.0, %v675
    %677 = vmatmul.f32.gmra.mxu0 %v342
    %v678 = vpop.f32.mrf.mxu0
    %v679 = vadd.f32 0.0, %v678
    %680 = vmatmul.f32.gmra.mxu0 %v344
    %v681 = vpop.f32.mrf.mxu0
    %v682 = vadd.f32 0.0, %v681
    %683 = vmatmul.f32.gmra.mxu0 %v346
    %v684 = vpop.f32.mrf.mxu0
    %v685 = vadd.f32 0.0, %v684
    %686 = vmatmul.f32.gmra.mxu0 %v348
    %v687 = vpop.f32.mrf.mxu0
    %v688 = vadd.f32 0.0, %v687
    %689 = vmatmul.f32.gmra.mxu0 %v350
    %v690 = vpop.f32.mrf.mxu0
    %v691 = vadd.f32 0.0, %v690
    %692 = vmatmul.f32.gmra.mxu0 %v352
    %v693 = vpop.f32.mrf.mxu0
    %v694 = vadd.f32 0.0, %v693
    %695 = vmatmul.f32.gmra.mxu0 %v354
    %v696 = vpop.f32.mrf.mxu0
    %v697 = vadd.f32 0.0, %v696
    %698 = vmatmul.f32.gmra.mxu0 %v356
    %v699 = vpop.f32.mrf.mxu0
    %v700 = vadd.f32 0.0, %v699
    %701 = vmatmul.f32.gmra.mxu0 %v358
    %v702 = vpop.f32.mrf.mxu0
    %v703 = vadd.f32 0.0, %v702
    %704 = vmatmul.f32.gmra.mxu0 %v360
    %v705 = vpop.f32.mrf.mxu0
    %v706 = vadd.f32 0.0, %v705
    %707 = vmatmul.f32.gmra.mxu0 %v362
    %v708 = vpop.f32.mrf.mxu0
    %v709 = vadd.f32 0.0, %v708
    %710 = vmatmul.f32.gmra.mxu0 %v364
    %v711 = vpop.f32.mrf.mxu0
    %v712 = vadd.f32 0.0, %v711
    %713 = vmatmul.f32.gmra.mxu0 %v366
    %v714 = vpop.f32.mrf.mxu0
    %v715 = vadd.f32 0.0, %v714
    %716 = vmatmul.f32.gmra.mxu0 %v368
    %v717 = vpop.f32.mrf.mxu0
    %v718 = vadd.f32 0.0, %v717
    %719 = vmatmul.f32.gmra.mxu0 %v370
    %v720 = vpop.f32.mrf.mxu0
    %v721 = vadd.f32 0.0, %v720
    %722 = vmatmul.f32.gmra.mxu0 %v372
    %v723 = vpop.f32.mrf.mxu0
    %v724 = vadd.f32 0.0, %v723
    %725 = vmatmul.f32.gmra.mxu0 %v374
    %v726 = vpop.f32.mrf.mxu0
    %v727 = vadd.f32 0.0, %v726
    %728 = vmatmul.f32.gmra.mxu0 %v376
    %v729 = vpop.f32.mrf.mxu0
    %v730 = vadd.f32 0.0, %v729
    %731 = vmatmul.f32.gmra.mxu0 %v378
    %v732 = vpop.f32.mrf.mxu0
    %v733 = vadd.f32 0.0, %v732
    %734 = vmatmul.f32.gmra.mxu0 %v380
    %v735 = vpop.f32.mrf.mxu0
    %v736 = vadd.f32 0.0, %v735
    %737 = vmatmul.f32.gmra.mxu0 %v382
    %v738 = vpop.f32.mrf.mxu0
    %v739 = vadd.f32 0.0, %v738
    %740 = vmatmul.f32.gmra.mxu0 %v384
    %v741 = vpop.f32.mrf.mxu0
    %v742 = vadd.f32 0.0, %v741
    %743 = vdwg.mxu0
    %744 = vmatpush.msra.mxu0 0.0
    %745 = vmatpush.msra.mxu0 0.0
    %746 = vmatpush.msra.mxu0 0.0
    %747 = vmatpush.msra.mxu0 0.0
    %748 = vmatpush.msra.mxu0 0.0
    %749 = vmatpush.msra.mxu0 0.0
    %750 = vmatpush.msra.mxu0 0.0
    %751 = vmatpush.msra.mxu0 %v557
    %752 = vmatpush.msra.mxu0 %v272
    %753 = vmatpush.msra.mxu0 %v271
    %754 = vmatpush.msra.mxu0 %v270
    %755 = vmatpush.msra.mxu0 %v269
    %756 = vmatpush.msra.mxu0 %v268
    %757 = vmatpush.msra.mxu0 %v267
    %758 = vmatpush.msra.mxu0 %v266
    %759 = vmatpush.msra.mxu0 %v265
    %760 = vmatmul.f32.gmra.mxu0 %v388
    %v761 = vpop.f32.mrf.mxu0
    %v762 = vadd.f32 %v577, %v761
    %763 = vmatmul.f32.gmra.mxu0 %v391
    %v764 = vpop.f32.mrf.mxu0
    %v765 = vadd.f32 %v580, %v764
    %766 = vmatmul.f32.gmra.mxu0 %v394
    %v767 = vpop.f32.mrf.mxu0
    %v768 = vadd.f32 %v583, %v767
    %769 = vmatmul.f32.gmra.mxu0 %v397
    %v770 = vpop.f32.mrf.mxu0
    %v771 = vadd.f32 %v586, %v770
    %772 = vmatmul.f32.gmra.mxu0 %v400
    %v773 = vpop.f32.mrf.mxu0
    %v774 = vadd.f32 %v589, %v773
    %775 = vmatmul.f32.gmra.mxu0 %v403
    %v776 = vpop.f32.mrf.mxu0
    %v777 = vadd.f32 %v592, %v776
    %778 = vmatmul.f32.gmra.mxu0 %v406
    %v779 = vpop.f32.mrf.mxu0
    %v780 = vadd.f32 %v595, %v779
    %781 = vmatmul.f32.gmra.mxu0 %v409
    %v782 = vpop.f32.mrf.mxu0
    %v783 = vadd.f32 %v598, %v782
    %784 = vmatmul.f32.gmra.mxu0 %v412
    %v785 = vpop.f32.mrf.mxu0
    %v786 = vadd.f32 %v601, %v785
    %787 = vmatmul.f32.gmra.mxu0 %v415
    %v788 = vpop.f32.mrf.mxu0
    %v789 = vadd.f32 %v604, %v788
    %790 = vmatmul.f32.gmra.mxu0 %v418
    %v791 = vpop.f32.mrf.mxu0
    %v792 = vadd.f32 %v607, %v791
    %793 = vmatmul.f32.gmra.mxu0 %v421
    %v794 = vpop.f32.mrf.mxu0
    %v795 = vadd.f32 %v610, %v794
    %796 = vmatmul.f32.gmra.mxu0 %v424
    %v797 = vpop.f32.mrf.mxu0
    %v798 = vadd.f32 %v613, %v797
    %799 = vmatmul.f32.gmra.mxu0 %v427
    %v800 = vpop.f32.mrf.mxu0
    %v801 = vadd.f32 %v616, %v800
    %802 = vmatmul.f32.gmra.mxu0 %v430
    %v803 = vpop.f32.mrf.mxu0
    %v804 = vadd.f32 %v619, %v803
    %805 = vmatmul.f32.gmra.mxu0 %v433
    %v806 = vpop.f32.mrf.mxu0
    %v807 = vadd.f32 %v622, %v806
    %808 = vmatmul.f32.gmra.mxu0 %v436
    %v809 = vpop.f32.mrf.mxu0
    %v810 = vadd.f32 %v625, %v809
    %811 = vmatmul.f32.gmra.mxu0 %v439
    %v812 = vpop.f32.mrf.mxu0
    %v813 = vadd.f32 %v628, %v812
    %814 = vmatmul.f32.gmra.mxu0 %v442
    %v815 = vpop.f32.mrf.mxu0
    %v816 = vadd.f32 %v631, %v815
    %817 = vmatmul.f32.gmra.mxu0 %v445
    %v818 = vpop.f32.mrf.mxu0
    %v819 = vadd.f32 %v634, %v818
    %820 = vmatmul.f32.gmra.mxu0 %v448
    %v821 = vpop.f32.mrf.mxu0
    %v822 = vadd.f32 %v637, %v821
    %823 = vmatmul.f32.gmra.mxu0 %v451
    %v824 = vpop.f32.mrf.mxu0
    %v825 = vadd.f32 %v640, %v824
    %826 = vmatmul.f32.gmra.mxu0 %v454
    %v827 = vpop.f32.mrf.mxu0
    %v828 = vadd.f32 %v643, %v827
    %829 = vmatmul.f32.gmra.mxu0 %v457
    %v830 = vpop.f32.mrf.mxu0
    %v831 = vadd.f32 %v646, %v830
    %832 = vmatmul.f32.gmra.mxu0 %v460
    %v833 = vpop.f32.mrf.mxu0
    %v834 = vadd.f32 %v649, %v833
    %835 = vmatmul.f32.gmra.mxu0 %v463
    %v836 = vpop.f32.mrf.mxu0
    %v837 = vadd.f32 %v652, %v836
    %838 = vmatmul.f32.gmra.mxu0 %v466
    %v839 = vpop.f32.mrf.mxu0
    %v840 = vadd.f32 %v655, %v839
    %841 = vmatmul.f32.gmra.mxu0 %v469
    %v842 = vpop.f32.mrf.mxu0
    %v843 = vadd.f32 %v658, %v842
    %844 = vmatmul.f32.gmra.mxu0 %v472
    %v845 = vpop.f32.mrf.mxu0
    %v846 = vadd.f32 %v661, %v845
    %847 = vmatmul.f32.gmra.mxu0 %v475
    %v848 = vpop.f32.mrf.mxu0
    %v849 = vadd.f32 %v664, %v848
    %850 = vmatmul.f32.gmra.mxu0 %v478
    %v851 = vpop.f32.mrf.mxu0
    %v852 = vadd.f32 %v667, %v851
    %853 = vmatmul.f32.gmra.mxu0 %v481
    %v854 = vpop.f32.mrf.mxu0
    %v855 = vadd.f32 %v670, %v854
    %856 = vmatmul.f32.gmra.mxu0 %v484
    %v857 = vpop.f32.mrf.mxu0
    %v858 = vadd.f32 %v673, %v857
    %859 = vmatmul.f32.gmra.mxu0 %v487
    %v860 = vpop.f32.mrf.mxu0
    %v861 = vadd.f32 %v676, %v860
    %862 = vmatmul.f32.gmra.mxu0 %v490
    %v863 = vpop.f32.mrf.mxu0
    %v864 = vadd.f32 %v679, %v863
    %865 = vmatmul.f32.gmra.mxu0 %v493
    %v866 = vpop.f32.mrf.mxu0
    %v867 = vadd.f32 %v682, %v866
    %868 = vmatmul.f32.gmra.mxu0 %v496
    %v869 = vpop.f32.mrf.mxu0
    %v870 = vadd.f32 %v685, %v869
    %871 = vmatmul.f32.gmra.mxu0 %v499
    %v872 = vpop.f32.mrf.mxu0
    %v873 = vadd.f32 %v688, %v872
    %874 = vmatmul.f32.gmra.mxu0 %v502
    %v875 = vpop.f32.mrf.mxu0
    %v876 = vadd.f32 %v691, %v875
    %877 = vmatmul.f32.gmra.mxu0 %v505
    %v878 = vpop.f32.mrf.mxu0
    %v879 = vadd.f32 %v694, %v878
    %880 = vmatmul.f32.gmra.mxu0 %v508
    %v881 = vpop.f32.mrf.mxu0
    %v882 = vadd.f32 %v697, %v881
    %883 = vmatmul.f32.gmra.mxu0 %v511
    %v884 = vpop.f32.mrf.mxu0
    %v885 = vadd.f32 %v700, %v884
    %886 = vmatmul.f32.gmra.mxu0 %v514
    %v887 = vpop.f32.mrf.mxu0
    %v888 = vadd.f32 %v703, %v887
    %889 = vmatmul.f32.gmra.mxu0 %v517
    %v890 = vpop.f32.mrf.mxu0
    %v891 = vadd.f32 %v706, %v890
    %892 = vmatmul.f32.gmra.mxu0 %v520
    %v893 = vpop.f32.mrf.mxu0
    %v894 = vadd.f32 %v709, %v893
    %895 = vmatmul.f32.gmra.mxu0 %v523
    %v896 = vpop.f32.mrf.mxu0
    %v897 = vadd.f32 %v712, %v896
    %898 = vmatmul.f32.gmra.mxu0 %v526
    %v899 = vpop.f32.mrf.mxu0
    %v900 = vadd.f32 %v715, %v899
    %901 = vmatmul.f32.gmra.mxu0 %v529
    %v902 = vpop.f32.mrf.mxu0
    %v903 = vadd.f32 %v718, %v902
    %904 = vmatmul.f32.gmra.mxu0 %v532
    %v905 = vpop.f32.mrf.mxu0
    %v906 = vadd.f32 %v721, %v905
    %907 = vmatmul.f32.gmra.mxu0 %v535
    %v908 = vpop.f32.mrf.mxu0
    %v909 = vadd.f32 %v724, %v908
    %910 = vmatmul.f32.gmra.mxu0 %v538
    %v911 = vpop.f32.mrf.mxu0
    %v912 = vadd.f32 %v727, %v911
    %913 = vmatmul.f32.gmra.mxu0 %v541
    %v914 = vpop.f32.mrf.mxu0
    %v915 = vadd.f32 %v730, %v914
    %916 = vmatmul.f32.gmra.mxu0 %v544
    %v917 = vpop.f32.mrf.mxu0
    %v918 = vadd.f32 %v733, %v917
    %919 = vmatmul.f32.gmra.mxu0 %v547
    %v920 = vpop.f32.mrf.mxu0
    %v921 = vadd.f32 %v736, %v920
    %922 = vmatmul.f32.gmra.mxu0 %v550
    %v923 = vpop.f32.mrf.mxu0
    %v924 = vadd.f32 %v739, %v923
    %925 = vmatmul.f32.gmra.mxu0 %v553
    %v926 = vpop.f32.mrf.mxu0
    %v927 = vadd.f32 %v742, %v926
    %928 = vdwg.mxu0
    %v929 = vld [vmem:[#allocation2] sm:$0xff]
    %v930 = vld [vmem:[#allocation2 + $0x8] sm:$0xff]
    %v931 = vld [vmem:[#allocation2 + $0x10] sm:$0xff]
    %v932 = vld [vmem:[#allocation2 + $0x18] sm:$0xff]
    %s933 = scalar_lea.vmem [#allocation2], 32
    %v934 = vld [vmem:[%s933] sm:$0xff]
    %v935 = vld [vmem:[%s933 + $0x8] sm:$0xff]
    %v936 = vld [vmem:[%s933 + $0x10] sm:$0xff]
    %v937 = vld [vmem:[%s933 + $0x18] sm:$0xff]
    %vm945 = vcmask 1046528
    %v946 = vrot.slane %v780, 1
    %v947 = vrot.slane %v783, 1
    %v948 = vsel %vm945, %v946, %v947
    %v949 = vrot.slane %v786, 1
    %v950 = vsel %vm945, %v947, %v949
    %v951 = vrot.slane %v789, 1
    %v952 = vsel %vm945, %v949, %v951
    %v953 = vrot.slane %v792, 1
    %v954 = vsel %vm945, %v951, %v953
    %v955 = vrot.slane %v795, 1
    %v956 = vsel %vm945, %v953, %v955
    %v957 = vrot.slane %v798, 1
    %v958 = vsel %vm945, %v955, %v957
    %vm959 = vcmask 261120
    %v960 = vsel %vm959, %v948, 0
    %v962 = vsel %vm959, %v950, 0
    %v964 = vsel %vm959, %v952, 0
    %v966 = vsel %vm959, %v954, 0
    %v968 = vsel %vm959, %v956, 0
    %v970 = vsel %vm959, %v958, 0
    %v972 = vsel %vm959, %v957, 0
    %974 = vmatpush.msra.mxu0 0.0
    %975 = vmatpush.msra.mxu0 0.0
    %976 = vmatpush.msra.mxu0 0.0
    %977 = vmatpush.msra.mxu0 0.0
    %978 = vmatpush.msra.mxu0 0.0
    %979 = vmatpush.msra.mxu0 0.0
    %980 = vmatpush.msra.mxu0 0.0
    %981 = vmatpush.msra.mxu0 0.0
    %982 = vmatpush.msra.mxu0 0.0
    %983 = vmatpush.msra.mxu0 0.0
    %984 = vmatpush.msra.mxu0 0.0
    %985 = vmatpush.msra.mxu0 0.0
    %986 = vmatpush.msra.mxu0 %v937
    %987 = vmatpush.msra.mxu0 %v936
    %988 = vmatpush.msra.mxu0 %v935
    %989 = vmatpush.msra.mxu0 %v934
    %990 = vmatmul.f32.gmra.mxu0 %v960
    %v991 = vpop.f32.mrf.mxu0
    %v992 = vadd.f32 0.0, %v991
    %993 = vmatmul.f32.gmra.mxu0 %v962
    %v994 = vpop.f32.mrf.mxu0
    %v995 = vadd.f32 0.0, %v994
    %996 = vmatmul.f32.gmra.mxu0 %v964
    %v997 = vpop.f32.mrf.mxu0
    %v998 = vadd.f32 0.0, %v997
    %999 = vmatmul.f32.gmra.mxu0 %v966
    %v1000 = vpop.f32.mrf.mxu0
    %v1001 = vadd.f32 0.0, %v1000
    %1002 = vmatmul.f32.gmra.mxu0 %v968
    %v1003 = vpop.f32.mrf.mxu0
    %v1004 = vadd.f32 0.0, %v1003
    %1005 = vmatmul.f32.gmra.mxu0 %v970
    %v1006 = vpop.f32.mrf.mxu0
    %v1007 = vadd.f32 0.0, %v1006
    %1008 = vmatmul.f32.gmra.mxu0 %v972
    %v1009 = vpop.f32.mrf.mxu0
    %v1010 = vadd.f32 0.0, %v1009
    %1011 = vdwg.mxu0
    %v1013 = vsel %vm959, %v762, 0
    %v1016 = vsel %vm959, %v765, 0
    %v1019 = vsel %vm959, %v768, 0
    %v1022 = vsel %vm959, %v771, 0
    %v1025 = vsel %vm959, %v774, 0
    %v1028 = vsel %vm959, %v777, 0
    %v1030 = vsel %vm959, %v780, 0
    %1032 = vmatpush.msra.mxu0 0.0
    %1033 = vmatpush.msra.mxu0 0.0
    %1034 = vmatpush.msra.mxu0 0.0
    %1035 = vmatpush.msra.mxu0 0.0
    %1036 = vmatpush.msra.mxu0 0.0
    %1037 = vmatpush.msra.mxu0 0.0
    %1038 = vmatpush.msra.mxu0 0.0
    %1039 = vmatpush.msra.mxu0 0.0
    %1040 = vmatpush.msra.mxu0 0.0
    %1041 = vmatpush.msra.mxu0 0.0
    %1042 = vmatpush.msra.mxu0 0.0
    %1043 = vmatpush.msra.mxu0 0.0
    %1044 = vmatpush.msra.mxu0 %v932
    %1045 = vmatpush.msra.mxu0 %v931
    %1046 = vmatpush.msra.mxu0 %v930
    %1047 = vmatpush.msra.mxu0 %v929
    %1048 = vmatmul.f32.gmra.mxu0 %v1013
    %v1049 = vpop.f32.mrf.mxu0
    %v1050 = vadd.f32 %v992, %v1049
    %1051 = vmatmul.f32.gmra.mxu0 %v1016
    %v1052 = vpop.f32.mrf.mxu0
    %v1053 = vadd.f32 %v995, %v1052
    %1054 = vmatmul.f32.gmra.mxu0 %v1019
    %v1055 = vpop.f32.mrf.mxu0
    %v1056 = vadd.f32 %v998, %v1055
    %1057 = vmatmul.f32.gmra.mxu0 %v1022
    %v1058 = vpop.f32.mrf.mxu0
    %v1059 = vadd.f32 %v1001, %v1058
    %1060 = vmatmul.f32.gmra.mxu0 %v1025
    %v1061 = vpop.f32.mrf.mxu0
    %v1062 = vadd.f32 %v1004, %v1061
    %1063 = vmatmul.f32.gmra.mxu0 %v1028
    %v1064 = vpop.f32.mrf.mxu0
    %v1065 = vadd.f32 %v1007, %v1064
    %1066 = vmatmul.f32.gmra.mxu0 %v1030
    %v1067 = vpop.f32.mrf.mxu0
    %v1068 = vadd.f32 %v1010, %v1067
    %1069 = vdwg.mxu0
    %s1070 = scalar_lea.vmem [#allocation2], 64
    %v1071 = vld [vmem:[%s1070] sm:$0xff]
    %v1072 = vld [vmem:[%s1070 + $0x8] sm:$0xff]
    %v1073 = vld [vmem:[%s1070 + $0x10] sm:$0xff]
    %v1074 = vld [vmem:[%s1070 + $0x18] sm:$0xff]
    %vm1081 = vcmask 1045504
    %v1082 = vrot.slane %v798, 2
    %v1083 = vrot.slane %v801, 2
    %v1084 = vsel %vm1081, %v1082, %v1083
    %v1085 = vrot.slane %v804, 2
    %v1086 = vsel %vm1081, %v1083, %v1085
    %v1087 = vrot.slane %v807, 2
    %v1088 = vsel %vm1081, %v1085, %v1087
    %v1089 = vrot.slane %v810, 2
    %v1090 = vsel %vm1081, %v1087, %v1089
    %v1091 = vrot.slane %v813, 2
    %v1092 = vsel %vm1081, %v1089, %v1091
    %v1093 = vrot.slane %v816, 2
    %v1094 = vsel %vm1081, %v1091, %v1093
    %v1095 = vsel %vm959, %v1084, 0
    %v1097 = vsel %vm959, %v1086, 0
    %v1099 = vsel %vm959, %v1088, 0
    %v1101 = vsel %vm959, %v1090, 0
    %v1103 = vsel %vm959, %v1092, 0
    %v1105 = vsel %vm959, %v1094, 0
    %v1107 = vsel %vm959, %v1093, 0
    %1109 = vmatpush.msra.mxu0 0.0
    %1110 = vmatpush.msra.mxu0 0.0
    %1111 = vmatpush.msra.mxu0 0.0
    %1112 = vmatpush.msra.mxu0 0.0
    %1113 = vmatpush.msra.mxu0 0.0
    %1114 = vmatpush.msra.mxu0 0.0
    %1115 = vmatpush.msra.mxu0 0.0
    %1116 = vmatpush.msra.mxu0 0.0
    %1117 = vmatpush.msra.mxu0 0.0
    %1118 = vmatpush.msra.mxu0 0.0
    %1119 = vmatpush.msra.mxu0 0.0
    %1120 = vmatpush.msra.mxu0 0.0
    %1121 = vmatpush.msra.mxu0 %v1074
    %1122 = vmatpush.msra.mxu0 %v1073
    %1123 = vmatpush.msra.mxu0 %v1072
    %1124 = vmatpush.msra.mxu0 %v1071
    %1125 = vmatmul.f32.gmra.mxu0 %v1095
    %v1126 = vpop.f32.mrf.mxu0
    %v1127 = vadd.f32 0.0, %v1126
    %1128 = vmatmul.f32.gmra.mxu0 %v1097
    %v1129 = vpop.f32.mrf.mxu0
    %v1130 = vadd.f32 0.0, %v1129
    %1131 = vmatmul.f32.gmra.mxu0 %v1099
    %v1132 = vpop.f32.mrf.mxu0
    %v1133 = vadd.f32 0.0, %v1132
    %1134 = vmatmul.f32.gmra.mxu0 %v1101
    %v1135 = vpop.f32.mrf.mxu0
    %v1136 = vadd.f32 0.0, %v1135
    %1137 = vmatmul.f32.gmra.mxu0 %v1103
    %v1138 = vpop.f32.mrf.mxu0
    %v1139 = vadd.f32 0.0, %v1138
    %1140 = vmatmul.f32.gmra.mxu0 %v1105
    %v1141 = vpop.f32.mrf.mxu0
    %v1142 = vadd.f32 0.0, %v1141
    %1143 = vmatmul.f32.gmra.mxu0 %v1107
    %v1144 = vpop.f32.mrf.mxu0
    %v1145 = vadd.f32 0.0, %v1144
    %1146 = vdwg.mxu0
    %v1147 = vadd.f32 %v1050, %v1127
    %v1148 = vadd.f32 %v1053, %v1130
    %v1149 = vadd.f32 %v1056, %v1133
    %v1150 = vadd.f32 %v1059, %v1136
    %v1151 = vadd.f32 %v1062, %v1139
    %v1152 = vadd.f32 %v1065, %v1142
    %v1153 = vadd.f32 %v1068, %v1145
    %s1154 = scalar_lea.vmem [#allocation2], 96
    %v1155 = vld [vmem:[%s1154] sm:$0xff]
    %v1156 = vld [vmem:[%s1154 + $0x8] sm:$0xff]
    %v1157 = vld [vmem:[%s1154 + $0x10] sm:$0xff]
    %v1158 = vld [vmem:[%s1154 + $0x18] sm:$0xff]
    %vm1165 = vcmask 1044480
    %v1166 = vrot.slane %v816, 3
    %v1167 = vrot.slane %v819, 3
    %v1168 = vsel %vm1165, %v1166, %v1167
    %v1169 = vrot.slane %v822, 3
    %v1170 = vsel %vm1165, %v1167, %v1169
    %v1171 = vrot.slane %v825, 3
    %v1172 = vsel %vm1165, %v1169, %v1171
    %v1173 = vrot.slane %v828, 3
    %v1174 = vsel %vm1165, %v1171, %v1173
    %v1175 = vrot.slane %v831, 3
    %v1176 = vsel %vm1165, %v1173, %v1175
    %v1177 = vrot.slane %v834, 3
    %v1178 = vsel %vm1165, %v1175, %v1177
    %v1179 = vsel %vm959, %v1168, 0
    %v1181 = vsel %vm959, %v1170, 0
    %v1183 = vsel %vm959, %v1172, 0
    %v1185 = vsel %vm959, %v1174, 0
    %v1187 = vsel %vm959, %v1176, 0
    %v1189 = vsel %vm959, %v1178, 0
    %v1191 = vsel %vm959, %v1177, 0
    %1193 = vmatpush.msra.mxu0 0.0
    %1194 = vmatpush.msra.mxu0 0.0
    %1195 = vmatpush.msra.mxu0 0.0
    %1196 = vmatpush.msra.mxu0 0.0
    %1197 = vmatpush.msra.mxu0 0.0
    %1198 = vmatpush.msra.mxu0 0.0
    %1199 = vmatpush.msra.mxu0 0.0
    %1200 = vmatpush.msra.mxu0 0.0
    %1201 = vmatpush.msra.mxu0 0.0
    %1202 = vmatpush.msra.mxu0 0.0
    %1203 = vmatpush.msra.mxu0 0.0
    %1204 = vmatpush.msra.mxu0 0.0
    %1205 = vmatpush.msra.mxu0 %v1158
    %1206 = vmatpush.msra.mxu0 %v1157
    %1207 = vmatpush.msra.mxu0 %v1156
    %1208 = vmatpush.msra.mxu0 %v1155
    %1209 = vmatmul.f32.gmra.mxu0 %v1179
    %v1210 = vpop.f32.mrf.mxu0
    %v1211 = vadd.f32 0.0, %v1210
    %1212 = vmatmul.f32.gmra.mxu0 %v1181
    %v1213 = vpop.f32.mrf.mxu0
    %v1214 = vadd.f32 0.0, %v1213
    %1215 = vmatmul.f32.gmra.mxu0 %v1183
    %v1216 = vpop.f32.mrf.mxu0
    %v1217 = vadd.f32 0.0, %v1216
    %1218 = vmatmul.f32.gmra.mxu0 %v1185
    %v1219 = vpop.f32.mrf.mxu0
    %v1220 = vadd.f32 0.0, %v1219
    %1221 = vmatmul.f32.gmra.mxu0 %v1187
    %v1222 = vpop.f32.mrf.mxu0
    %v1223 = vadd.f32 0.0, %v1222
    %1224 = vmatmul.f32.gmra.mxu0 %v1189
    %v1225 = vpop.f32.mrf.mxu0
    %v1226 = vadd.f32 0.0, %v1225
    %1227 = vmatmul.f32.gmra.mxu0 %v1191
    %v1228 = vpop.f32.mrf.mxu0
    %v1229 = vadd.f32 0.0, %v1228
    %1230 = vdwg.mxu0
    %v1231 = vadd.f32 %v1147, %v1211
    %v1232 = vadd.f32 %v1148, %v1214
    %v1233 = vadd.f32 %v1149, %v1217
    %v1234 = vadd.f32 %v1150, %v1220
    %v1235 = vadd.f32 %v1151, %v1223
    %v1236 = vadd.f32 %v1152, %v1226
    %v1237 = vadd.f32 %v1153, %v1229
    %s1238 = scalar_lea.vmem [#allocation2], 128
    %v1239 = vld [vmem:[%s1238] sm:$0xff]
    %v1240 = vld [vmem:[%s1238 + $0x8] sm:$0xff]
    %v1241 = vld [vmem:[%s1238 + $0x10] sm:$0xff]
    %v1242 = vld [vmem:[%s1238 + $0x18] sm:$0xff]
    %v1249 = vrot.slane %v834, 4
    %v1250 = vrot.slane %v837, 4
    %v1251 = vsel %vm555, %v1249, %v1250
    %v1252 = vrot.slane %v840, 4
    %v1253 = vsel %vm555, %v1250, %v1252
    %v1254 = vrot.slane %v843, 4
    %v1255 = vsel %vm555, %v1252, %v1254
    %v1256 = vrot.slane %v846, 4
    %v1257 = vsel %vm555, %v1254, %v1256
    %v1258 = vrot.slane %v849, 4
    %v1259 = vsel %vm555, %v1256, %v1258
    %v1260 = vrot.slane %v852, 4
    %v1261 = vsel %vm555, %v1258, %v1260
    %v1262 = vsel %vm959, %v1251, 0
    %v1264 = vsel %vm959, %v1253, 0
    %v1266 = vsel %vm959, %v1255, 0
    %v1268 = vsel %vm959, %v1257, 0
    %v1270 = vsel %vm959, %v1259, 0
    %v1272 = vsel %vm959, %v1261, 0
    %v1274 = vsel %vm959, %v1260, 0
    %1276 = vmatpush.msra.mxu0 0.0
    %1277 = vmatpush.msra.mxu0 0.0
    %1278 = vmatpush.msra.mxu0 0.0
    %1279 = vmatpush.msra.mxu0 0.0
    %1280 = vmatpush.msra.mxu0 0.0
    %1281 = vmatpush.msra.mxu0 0.0
    %1282 = vmatpush.msra.mxu0 0.0
    %1283 = vmatpush.msra.mxu0 0.0
    %1284 = vmatpush.msra.mxu0 0.0
    %1285 = vmatpush.msra.mxu0 0.0
    %1286 = vmatpush.msra.mxu0 0.0
    %1287 = vmatpush.msra.mxu0 0.0
    %1288 = vmatpush.msra.mxu0 %v1242
    %1289 = vmatpush.msra.mxu0 %v1241
    %1290 = vmatpush.msra.mxu0 %v1240
    %1291 = vmatpush.msra.mxu0 %v1239
    %1292 = vmatmul.f32.gmra.mxu0 %v1262
    %v1293 = vpop.f32.mrf.mxu0
    %v1294 = vadd.f32 0.0, %v1293
    %1295 = vmatmul.f32.gmra.mxu0 %v1264
    %v1296 = vpop.f32.mrf.mxu0
    %v1297 = vadd.f32 0.0, %v1296
    %1298 = vmatmul.f32.gmra.mxu0 %v1266
    %v1299 = vpop.f32.mrf.mxu0
    %v1300 = vadd.f32 0.0, %v1299
    %1301 = vmatmul.f32.gmra.mxu0 %v1268
    %v1302 = vpop.f32.mrf.mxu0
    %v1303 = vadd.f32 0.0, %v1302
    %1304 = vmatmul.f32.gmra.mxu0 %v1270
    %v1305 = vpop.f32.mrf.mxu0
    %v1306 = vadd.f32 0.0, %v1305
    %1307 = vmatmul.f32.gmra.mxu0 %v1272
    %v1308 = vpop.f32.mrf.mxu0
    %v1309 = vadd.f32 0.0, %v1308
    %1310 = vmatmul.f32.gmra.mxu0 %v1274
    %v1311 = vpop.f32.mrf.mxu0
    %v1312 = vadd.f32 0.0, %v1311
    %1313 = vdwg.mxu0
    %v1314 = vadd.f32 %v1231, %v1294
    %v1315 = vadd.f32 %v1232, %v1297
    %v1316 = vadd.f32 %v1233, %v1300
    %v1317 = vadd.f32 %v1234, %v1303
    %v1318 = vadd.f32 %v1235, %v1306
    %v1319 = vadd.f32 %v1236, %v1309
    %v1320 = vadd.f32 %v1237, %v1312
    %s1321 = scalar_lea.vmem [#allocation2], 160
    %v1322 = vld [vmem:[%s1321] sm:$0xff]
    %v1323 = vld [vmem:[%s1321 + $0x8] sm:$0xff]
    %v1324 = vld [vmem:[%s1321 + $0x10] sm:$0xff]
    %v1325 = vld [vmem:[%s1321 + $0x18] sm:$0xff]
    %vm1332 = vcmask 1042432
    %v1333 = vrot.slane %v852, 5
    %v1334 = vrot.slane %v855, 5
    %v1335 = vsel %vm1332, %v1333, %v1334
    %v1336 = vrot.slane %v858, 5
    %v1337 = vsel %vm1332, %v1334, %v1336
    %v1338 = vrot.slane %v861, 5
    %v1339 = vsel %vm1332, %v1336, %v1338
    %v1340 = vrot.slane %v864, 5
    %v1341 = vsel %vm1332, %v1338, %v1340
    %v1342 = vrot.slane %v867, 5
    %v1343 = vsel %vm1332, %v1340, %v1342
    %v1344 = vrot.slane %v870, 5
    %v1345 = vsel %vm1332, %v1342, %v1344
    %v1346 = vsel %vm959, %v1335, 0
    %v1348 = vsel %vm959, %v1337, 0
    %v1350 = vsel %vm959, %v1339, 0
    %v1352 = vsel %vm959, %v1341, 0
    %v1354 = vsel %vm959, %v1343, 0
    %v1356 = vsel %vm959, %v1345, 0
    %v1358 = vsel %vm959, %v1344, 0
    %1360 = vmatpush.msra.mxu0 0.0
    %1361 = vmatpush.msra.mxu0 0.0
    %1362 = vmatpush.msra.mxu0 0.0
    %1363 = vmatpush.msra.mxu0 0.0
    %1364 = vmatpush.msra.mxu0 0.0
    %1365 = vmatpush.msra.mxu0 0.0
    %1366 = vmatpush.msra.mxu0 0.0
    %1367 = vmatpush.msra.mxu0 0.0
    %1368 = vmatpush.msra.mxu0 0.0
    %1369 = vmatpush.msra.mxu0 0.0
    %1370 = vmatpush.msra.mxu0 0.0
    %1371 = vmatpush.msra.mxu0 0.0
    %1372 = vmatpush.msra.mxu0 %v1325
    %1373 = vmatpush.msra.mxu0 %v1324
    %1374 = vmatpush.msra.mxu0 %v1323
    %1375 = vmatpush.msra.mxu0 %v1322
    %1376 = vmatmul.f32.gmra.mxu0 %v1346
    %v1377 = vpop.f32.mrf.mxu0
    %v1378 = vadd.f32 0.0, %v1377
    %1379 = vmatmul.f32.gmra.mxu0 %v1348
    %v1380 = vpop.f32.mrf.mxu0
    %v1381 = vadd.f32 0.0, %v1380
    %1382 = vmatmul.f32.gmra.mxu0 %v1350
    %v1383 = vpop.f32.mrf.mxu0
    %v1384 = vadd.f32 0.0, %v1383
    %1385 = vmatmul.f32.gmra.mxu0 %v1352
    %v1386 = vpop.f32.mrf.mxu0
    %v1387 = vadd.f32 0.0, %v1386
    %1388 = vmatmul.f32.gmra.mxu0 %v1354
    %v1389 = vpop.f32.mrf.mxu0
    %v1390 = vadd.f32 0.0, %v1389
    %1391 = vmatmul.f32.gmra.mxu0 %v1356
    %v1392 = vpop.f32.mrf.mxu0
    %v1393 = vadd.f32 0.0, %v1392
    %1394 = vmatmul.f32.gmra.mxu0 %v1358
    %v1395 = vpop.f32.mrf.mxu0
    %v1396 = vadd.f32 0.0, %v1395
    %1397 = vdwg.mxu0
    %v1398 = vadd.f32 %v1314, %v1378
    %v1399 = vadd.f32 %v1315, %v1381
    %v1400 = vadd.f32 %v1316, %v1384
    %v1401 = vadd.f32 %v1317, %v1387
    %v1402 = vadd.f32 %v1318, %v1390
    %v1403 = vadd.f32 %v1319, %v1393
    %v1404 = vadd.f32 %v1320, %v1396
    %s1405 = scalar_lea.vmem [#allocation2], 192
    %v1406 = vld [vmem:[%s1405] sm:$0xff]
    %v1407 = vld [vmem:[%s1405 + $0x8] sm:$0xff]
    %v1408 = vld [vmem:[%s1405 + $0x10] sm:$0xff]
    %v1409 = vld [vmem:[%s1405 + $0x18] sm:$0xff]
    %v1416 = vrot.slane %v870, 6
    %v1417 = vrot.slane %v873, 6
    %v1418 = vsel %vm153, %v1416, %v1417
    %v1419 = vrot.slane %v876, 6
    %v1420 = vsel %vm153, %v1417, %v1419
    %v1421 = vrot.slane %v879, 6
    %v1422 = vsel %vm153, %v1419, %v1421
    %v1423 = vrot.slane %v882, 6
    %v1424 = vsel %vm153, %v1421, %v1423
    %v1425 = vrot.slane %v885, 6
    %v1426 = vsel %vm153, %v1423, %v1425
    %v1427 = vrot.slane %v888, 6
    %v1428 = vsel %vm153, %v1425, %v1427
    %v1429 = vsel %vm959, %v1418, 0
    %v1431 = vsel %vm959, %v1420, 0
    %v1433 = vsel %vm959, %v1422, 0
    %v1435 = vsel %vm959, %v1424, 0
    %v1437 = vsel %vm959, %v1426, 0
    %v1439 = vsel %vm959, %v1428, 0
    %v1441 = vsel %vm959, %v1427, 0
    %1443 = vmatpush.msra.mxu0 0.0
    %1444 = vmatpush.msra.mxu0 0.0
    %1445 = vmatpush.msra.mxu0 0.0
    %1446 = vmatpush.msra.mxu0 0.0
    %1447 = vmatpush.msra.mxu0 0.0
    %1448 = vmatpush.msra.mxu0 0.0
    %1449 = vmatpush.msra.mxu0 0.0
    %1450 = vmatpush.msra.mxu0 0.0
    %1451 = vmatpush.msra.mxu0 0.0
    %1452 = vmatpush.msra.mxu0 0.0
    %1453 = vmatpush.msra.mxu0 0.0
    %1454 = vmatpush.msra.mxu0 0.0
    %1455 = vmatpush.msra.mxu0 %v1409
    %1456 = vmatpush.msra.mxu0 %v1408
    %1457 = vmatpush.msra.mxu0 %v1407
    %1458 = vmatpush.msra.mxu0 %v1406
    %1459 = vmatmul.f32.gmra.mxu0 %v1429
    %v1460 = vpop.f32.mrf.mxu0
    %v1461 = vadd.f32 0.0, %v1460
    %1462 = vmatmul.f32.gmra.mxu0 %v1431
    %v1463 = vpop.f32.mrf.mxu0
    %v1464 = vadd.f32 0.0, %v1463
    %1465 = vmatmul.f32.gmra.mxu0 %v1433
    %v1466 = vpop.f32.mrf.mxu0
    %v1467 = vadd.f32 0.0, %v1466
    %1468 = vmatmul.f32.gmra.mxu0 %v1435
    %v1469 = vpop.f32.mrf.mxu0
    %v1470 = vadd.f32 0.0, %v1469
    %1471 = vmatmul.f32.gmra.mxu0 %v1437
    %v1472 = vpop.f32.mrf.mxu0
    %v1473 = vadd.f32 0.0, %v1472
    %1474 = vmatmul.f32.gmra.mxu0 %v1439
    %v1475 = vpop.f32.mrf.mxu0
    %v1476 = vadd.f32 0.0, %v1475
    %1477 = vmatmul.f32.gmra.mxu0 %v1441
    %v1478 = vpop.f32.mrf.mxu0
    %v1479 = vadd.f32 0.0, %v1478
    %1480 = vdwg.mxu0
    %v1481 = vadd.f32 %v1398, %v1461
    %v1482 = vadd.f32 %v1399, %v1464
    %v1483 = vadd.f32 %v1400, %v1467
    %v1484 = vadd.f32 %v1401, %v1470
    %v1485 = vadd.f32 %v1402, %v1473
    %v1486 = vadd.f32 %v1403, %v1476
    %v1487 = vadd.f32 %v1404, %v1479
    %s1488 = scalar_lea.vmem [#allocation2], 224
    %v1489 = vld [vmem:[%s1488] sm:$0xff]
    %v1490 = vld [vmem:[%s1488 + $0x8] sm:$0xff]
    %v1491 = vld [vmem:[%s1488 + $0x10] sm:$0xff]
    %v1492 = vld [vmem:[%s1488 + $0x18] sm:$0xff]
    %vm1499 = vcmask 1040384
    %v1500 = vrot.slane %v888, 7
    %v1501 = vrot.slane %v891, 7
    %v1502 = vsel %vm1499, %v1500, %v1501
    %v1503 = vrot.slane %v894, 7
    %v1504 = vsel %vm1499, %v1501, %v1503
    %v1505 = vrot.slane %v897, 7
    %v1506 = vsel %vm1499, %v1503, %v1505
    %v1507 = vrot.slane %v900, 7
    %v1508 = vsel %vm1499, %v1505, %v1507
    %v1509 = vrot.slane %v903, 7
    %v1510 = vsel %vm1499, %v1507, %v1509
    %v1511 = vrot.slane %v906, 7
    %v1512 = vsel %vm1499, %v1509, %v1511
    %v1513 = vsel %vm959, %v1502, 0
    %v1515 = vsel %vm959, %v1504, 0
    %v1517 = vsel %vm959, %v1506, 0
    %v1519 = vsel %vm959, %v1508, 0
    %v1521 = vsel %vm959, %v1510, 0
    %v1523 = vsel %vm959, %v1512, 0
    %v1525 = vsel %vm959, %v1511, 0
    %1527 = vmatpush.msra.mxu0 0.0
    %1528 = vmatpush.msra.mxu0 0.0
    %1529 = vmatpush.msra.mxu0 0.0
    %1530 = vmatpush.msra.mxu0 0.0
    %1531 = vmatpush.msra.mxu0 0.0
    %1532 = vmatpush.msra.mxu0 0.0
    %1533 = vmatpush.msra.mxu0 0.0
    %1534 = vmatpush.msra.mxu0 0.0
    %1535 = vmatpush.msra.mxu0 0.0
    %1536 = vmatpush.msra.mxu0 0.0
    %1537 = vmatpush.msra.mxu0 0.0
    %1538 = vmatpush.msra.mxu0 0.0
    %1539 = vmatpush.msra.mxu0 %v1492
    %1540 = vmatpush.msra.mxu0 %v1491
    %1541 = vmatpush.msra.mxu0 %v1490
    %1542 = vmatpush.msra.mxu0 %v1489
    %1543 = vmatmul.f32.gmra.mxu0 %v1513
    %v1544 = vpop.f32.mrf.mxu0
    %v1545 = vadd.f32 0.0, %v1544
    %1546 = vmatmul.f32.gmra.mxu0 %v1515
    %v1547 = vpop.f32.mrf.mxu0
    %v1548 = vadd.f32 0.0, %v1547
    %1549 = vmatmul.f32.gmra.mxu0 %v1517
    %v1550 = vpop.f32.mrf.mxu0
    %v1551 = vadd.f32 0.0, %v1550
    %1552 = vmatmul.f32.gmra.mxu0 %v1519
    %v1553 = vpop.f32.mrf.mxu0
    %v1554 = vadd.f32 0.0, %v1553
    %1555 = vmatmul.f32.gmra.mxu0 %v1521
    %v1556 = vpop.f32.mrf.mxu0
    %v1557 = vadd.f32 0.0, %v1556
    %1558 = vmatmul.f32.gmra.mxu0 %v1523
    %v1559 = vpop.f32.mrf.mxu0
    %v1560 = vadd.f32 0.0, %v1559
    %1561 = vmatmul.f32.gmra.mxu0 %v1525
    %v1562 = vpop.f32.mrf.mxu0
    %v1563 = vadd.f32 0.0, %v1562
    %1564 = vdwg.mxu0
    %v1565 = vadd.f32 %v1481, %v1545
    %v1566 = vadd.f32 %v1482, %v1548
    %v1567 = vadd.f32 %v1483, %v1551
    %v1568 = vadd.f32 %v1484, %v1554
    %v1569 = vadd.f32 %v1485, %v1557
    %v1570 = vadd.f32 %v1486, %v1560
    %v1571 = vadd.f32 %v1487, %v1563
    %s1572 = scalar_lea.vmem [#allocation2], 256
    %v1573 = vld [vmem:[%s1572] sm:$0xff]
    %v1574 = vld [vmem:[%s1572 + $0x8] sm:$0xff]
    %v1575 = vld [vmem:[%s1572 + $0x10] sm:$0xff]
    %v1576 = vld [vmem:[%s1572 + $0x18] sm:$0xff]
    %v1578 = vsel %vm959, %v909, 0
    %v1581 = vsel %vm959, %v912, 0
    %v1584 = vsel %vm959, %v915, 0
    %v1587 = vsel %vm959, %v918, 0
    %v1590 = vsel %vm959, %v921, 0
    %v1593 = vsel %vm959, %v924, 0
    %v1596 = vsel %vm959, %v927, 0
    %1598 = vmatpush.msra.mxu0 0.0
    %1599 = vmatpush.msra.mxu0 0.0
    %1600 = vmatpush.msra.mxu0 0.0
    %1601 = vmatpush.msra.mxu0 0.0
    %1602 = vmatpush.msra.mxu0 0.0
    %1603 = vmatpush.msra.mxu0 0.0
    %1604 = vmatpush.msra.mxu0 0.0
    %1605 = vmatpush.msra.mxu0 0.0
    %1606 = vmatpush.msra.mxu0 0.0
    %1607 = vmatpush.msra.mxu0 0.0
    %1608 = vmatpush.msra.mxu0 0.0
    %1609 = vmatpush.msra.mxu0 0.0
    %1610 = vmatpush.msra.mxu0 %v1576
    %1611 = vmatpush.msra.mxu0 %v1575
    %1612 = vmatpush.msra.mxu0 %v1574
    %1613 = vmatpush.msra.mxu0 %v1573
    %1614 = vmatmul.f32.gmra.mxu0 %v1578
    %v1615 = vpop.f32.mrf.mxu0
    %v1616 = vadd.f32 0.0, %v1615
    %1617 = vmatmul.f32.gmra.mxu0 %v1581
    %v1618 = vpop.f32.mrf.mxu0
    %v1619 = vadd.f32 0.0, %v1618
    %1620 = vmatmul.f32.gmra.mxu0 %v1584
    %v1621 = vpop.f32.mrf.mxu0
    %v1622 = vadd.f32 0.0, %v1621
    %1623 = vmatmul.f32.gmra.mxu0 %v1587
    %v1624 = vpop.f32.mrf.mxu0
    %v1625 = vadd.f32 0.0, %v1624
    %1626 = vmatmul.f32.gmra.mxu0 %v1590
    %v1627 = vpop.f32.mrf.mxu0
    %v1628 = vadd.f32 0.0, %v1627
    %1629 = vmatmul.f32.gmra.mxu0 %v1593
    %v1630 = vpop.f32.mrf.mxu0
    %v1631 = vadd.f32 0.0, %v1630
    %1632 = vmatmul.f32.gmra.mxu0 %v1596
    %v1633 = vpop.f32.mrf.mxu0
    %v1634 = vadd.f32 0.0, %v1633
    %1635 = vdwg.mxu0
    %v1636 = vadd.f32 %v1565, %v1616
    %v1637 = vadd.f32 %v1566, %v1619
    %v1638 = vadd.f32 %v1567, %v1622
    %v1639 = vadd.f32 %v1568, %v1625
    %v1640 = vadd.f32 %v1569, %v1628
    %v1641 = vadd.f32 %v1570, %v1631
    %v1642 = vadd.f32 %v1571, %v1634
    %v1643 = vld [vmem:[%s5] sm:$0x1]
    %v1645 = vperm.slane %v1643, 0
    %v1647 = vadd.f32 %v1636, %v1645
    %v1648 = vadd.f32 %v1637, %v1645
    %v1649 = vadd.f32 %v1638, %v1645
    %v1650 = vadd.f32 %v1639, %v1645
    %v1651 = vadd.f32 %v1640, %v1645
    %v1652 = vadd.f32 %v1641, %v1645
    %v1653 = vadd.f32 %v1642, %v1645
    %v1654 = vmax.f32 %v1647, 0.0
    %v1655 = vmax.f32 %v1648, 0.0
    %v1656 = vmax.f32 %v1649, 0.0
    %v1657 = vmax.f32 %v1650, 0.0
    %v1658 = vmax.f32 %v1651, 0.0
    %v1659 = vmax.f32 %v1652, 0.0
    %v1660 = vmax.f32 %v1653, 0.0
    %v1661 = vld [vmem:[%s6] sm:$0xff]
    %v1662 = vld [vmem:[%s6 + $0x8] sm:$0xff]
    %v1663 = vld [vmem:[%s6 + $0x10] sm:$0xff]
    %v1664 = vld [vmem:[%s6 + $0x18] sm:$0xff]
    %v1665 = vld [vmem:[%s6 + $0x20] sm:$0xff]
    %v1666 = vld [vmem:[%s6 + $0x28] sm:$0xff]
    %v1667 = vld [vmem:[%s6 + $0x30] sm:$0xff]
    %v1668 = vld [vmem:[%s6 + $0x38] sm:$0xff]
    %s1669 = scalar_lea.vmem %s6, 64
    %v1670 = vld [vmem:[%s1669] sm:$0xff]
    %v1671 = vld [vmem:[%s1669 + $0x8] sm:$0xff]
    %v1672 = vld [vmem:[%s1669 + $0x10] sm:$0xff]
    %v1673 = vld [vmem:[%s1669 + $0x18] sm:$0xff]
    %v1674 = vld [vmem:[%s1669 + $0x20] sm:$0xff]
    %v1675 = vld [vmem:[%s1669 + $0x28] sm:$0xff]
    %v1676 = vld [vmem:[%s1669 + $0x30] sm:$0xff]
    %v1677 = vld [vmem:[%s1669 + $0x38] sm:$0xff]
    %v1679 = vrot.slane %v1654, 1
    %vm1680 = vcmask 523264
    %v1681 = vsel %vm1680, %v1679, 0
    %1683 = vmatpush.msra.mxu0 0.0
    %1684 = vmatpush.msra.mxu0 0.0
    %1685 = vmatpush.msra.mxu0 0.0
    %1686 = vmatpush.msra.mxu0 0.0
    %1687 = vmatpush.msra.mxu0 0.0
    %1688 = vmatpush.msra.mxu0 0.0
    %1689 = vmatpush.msra.mxu0 0.0
    %1690 = vmatpush.msra.mxu0 0.0
    %1691 = vmatpush.msra.mxu0 %v1677
    %1692 = vmatpush.msra.mxu0 %v1676
    %1693 = vmatpush.msra.mxu0 %v1675
    %1694 = vmatpush.msra.mxu0 %v1674
    %1695 = vmatpush.msra.mxu0 %v1673
    %1696 = vmatpush.msra.mxu0 %v1672
    %1697 = vmatpush.msra.mxu0 %v1671
    %1698 = vmatpush.msra.mxu0 %v1670
    %1699 = vmatmul.f32.gmra.mxu0 %v1681
    %v1700 = vpop.f32.mrf.mxu0
    %v1701 = vadd.f32 0.0, %v1700
    %1702 = vdwg.mxu0
    %v1703 = vsel %vm1680, %v1654, 0
    %1705 = vmatpush.msra.mxu0 0.0
    %1706 = vmatpush.msra.mxu0 0.0
    %1707 = vmatpush.msra.mxu0 0.0
    %1708 = vmatpush.msra.mxu0 0.0
    %1709 = vmatpush.msra.mxu0 0.0
    %1710 = vmatpush.msra.mxu0 0.0
    %1711 = vmatpush.msra.mxu0 0.0
    %1712 = vmatpush.msra.mxu0 0.0
    %1713 = vmatpush.msra.mxu0 %v1668
    %1714 = vmatpush.msra.mxu0 %v1667
    %1715 = vmatpush.msra.mxu0 %v1666
    %1716 = vmatpush.msra.mxu0 %v1665
    %1717 = vmatpush.msra.mxu0 %v1664
    %1718 = vmatpush.msra.mxu0 %v1663
    %1719 = vmatpush.msra.mxu0 %v1662
    %1720 = vmatpush.msra.mxu0 %v1661
    %1721 = vmatmul.f32.gmra.mxu0 %v1703
    %v1722 = vpop.f32.mrf.mxu0
    %v1723 = vadd.f32 %v1701, %v1722
    %1724 = vdwg.mxu0
    %s1725 = scalar_lea.vmem %s6, 128
    %v1726 = vld [vmem:[%s1725] sm:$0xff]
    %v1727 = vld [vmem:[%s1725 + $0x8] sm:$0xff]
    %v1728 = vld [vmem:[%s1725 + $0x10] sm:$0xff]
    %v1729 = vld [vmem:[%s1725 + $0x18] sm:$0xff]
    %v1730 = vld [vmem:[%s1725 + $0x20] sm:$0xff]
    %v1731 = vld [vmem:[%s1725 + $0x28] sm:$0xff]
    %v1732 = vld [vmem:[%s1725 + $0x30] sm:$0xff]
    %v1733 = vld [vmem:[%s1725 + $0x38] sm:$0xff]
    %v1734 = vrot.slane %v1654, 2
    %v1735 = vsel %vm1680, %v1734, 0
    %1737 = vmatpush.msra.mxu0 0.0
    %1738 = vmatpush.msra.mxu0 0.0
    %1739 = vmatpush.msra.mxu0 0.0
    %1740 = vmatpush.msra.mxu0 0.0
    %1741 = vmatpush.msra.mxu0 0.0
    %1742 = vmatpush.msra.mxu0 0.0
    %1743 = vmatpush.msra.mxu0 0.0
    %1744 = vmatpush.msra.mxu0 0.0
    %1745 = vmatpush.msra.mxu0 %v1733
    %1746 = vmatpush.msra.mxu0 %v1732
    %1747 = vmatpush.msra.mxu0 %v1731
    %1748 = vmatpush.msra.mxu0 %v1730
    %1749 = vmatpush.msra.mxu0 %v1729
    %1750 = vmatpush.msra.mxu0 %v1728
    %1751 = vmatpush.msra.mxu0 %v1727
    %1752 = vmatpush.msra.mxu0 %v1726
    %1753 = vmatmul.f32.gmra.mxu0 %v1735
    %v1754 = vpop.f32.mrf.mxu0
    %v1755 = vadd.f32 0.0, %v1754
    %1756 = vdwg.mxu0
    %v1757 = vadd.f32 %v1723, %v1755
    %s1758 = scalar_lea.vmem %s6, 192
    %v1759 = vld [vmem:[%s1758] sm:$0xff]
    %v1760 = vld [vmem:[%s1758 + $0x8] sm:$0xff]
    %v1761 = vld [vmem:[%s1758 + $0x10] sm:$0xff]
    %v1762 = vld [vmem:[%s1758 + $0x18] sm:$0xff]
    %v1763 = vld [vmem:[%s1758 + $0x20] sm:$0xff]
    %v1764 = vld [vmem:[%s1758 + $0x28] sm:$0xff]
    %v1765 = vld [vmem:[%s1758 + $0x30] sm:$0xff]
    %v1766 = vld [vmem:[%s1758 + $0x38] sm:$0xff]
    %v1767 = vrot.slane %v1654, 3
    %v1768 = vsel %vm1680, %v1767, 0
    %1770 = vmatpush.msra.mxu0 0.0
    %1771 = vmatpush.msra.mxu0 0.0
    %1772 = vmatpush.msra.mxu0 0.0
    %1773 = vmatpush.msra.mxu0 0.0
    %1774 = vmatpush.msra.mxu0 0.0
    %1775 = vmatpush.msra.mxu0 0.0
    %1776 = vmatpush.msra.mxu0 0.0
    %1777 = vmatpush.msra.mxu0 0.0
    %1778 = vmatpush.msra.mxu0 %v1766
    %1779 = vmatpush.msra.mxu0 %v1765
    %1780 = vmatpush.msra.mxu0 %v1764
    %1781 = vmatpush.msra.mxu0 %v1763
    %1782 = vmatpush.msra.mxu0 %v1762
    %1783 = vmatpush.msra.mxu0 %v1761
    %1784 = vmatpush.msra.mxu0 %v1760
    %1785 = vmatpush.msra.mxu0 %v1759
    %1786 = vmatmul.f32.gmra.mxu0 %v1768
    %v1787 = vpop.f32.mrf.mxu0
    %v1788 = vadd.f32 0.0, %v1787
    %1789 = vdwg.mxu0
    %v1790 = vadd.f32 %v1757, %v1788
    %s1791 = scalar_lea.vmem %s6, 256
    %v1792 = vld [vmem:[%s1791] sm:$0xff]
    %v1793 = vld [vmem:[%s1791 + $0x8] sm:$0xff]
    %v1794 = vld [vmem:[%s1791 + $0x10] sm:$0xff]
    %v1795 = vld [vmem:[%s1791 + $0x18] sm:$0xff]
    %v1796 = vld [vmem:[%s1791 + $0x20] sm:$0xff]
    %v1797 = vld [vmem:[%s1791 + $0x28] sm:$0xff]
    %v1798 = vld [vmem:[%s1791 + $0x30] sm:$0xff]
    %v1799 = vld [vmem:[%s1791 + $0x38] sm:$0xff]
    %v1800 = vrot.slane %v1654, 4
    %v1801 = vsel %vm1680, %v1800, 0
    %1803 = vmatpush.msra.mxu0 0.0
    %1804 = vmatpush.msra.mxu0 0.0
    %1805 = vmatpush.msra.mxu0 0.0
    %1806 = vmatpush.msra.mxu0 0.0
    %1807 = vmatpush.msra.mxu0 0.0
    %1808 = vmatpush.msra.mxu0 0.0
    %1809 = vmatpush.msra.mxu0 0.0
    %1810 = vmatpush.msra.mxu0 0.0
    %1811 = vmatpush.msra.mxu0 %v1799
    %1812 = vmatpush.msra.mxu0 %v1798
    %1813 = vmatpush.msra.mxu0 %v1797
    %1814 = vmatpush.msra.mxu0 %v1796
    %1815 = vmatpush.msra.mxu0 %v1795
    %1816 = vmatpush.msra.mxu0 %v1794
    %1817 = vmatpush.msra.mxu0 %v1793
    %1818 = vmatpush.msra.mxu0 %v1792
    %1819 = vmatmul.f32.gmra.mxu0 %v1801
    %v1820 = vpop.f32.mrf.mxu0
    %v1821 = vadd.f32 0.0, %v1820
    %1822 = vdwg.mxu0
    %v1823 = vadd.f32 %v1790, %v1821
    %s1824 = scalar_lea.vmem %s6, 320
    %v1825 = vld [vmem:[%s1824] sm:$0xff]
    %v1826 = vld [vmem:[%s1824 + $0x8] sm:$0xff]
    %v1827 = vld [vmem:[%s1824 + $0x10] sm:$0xff]
    %v1828 = vld [vmem:[%s1824 + $0x18] sm:$0xff]
    %v1829 = vld [vmem:[%s1824 + $0x20] sm:$0xff]
    %v1830 = vld [vmem:[%s1824 + $0x28] sm:$0xff]
    %v1831 = vld [vmem:[%s1824 + $0x30] sm:$0xff]
    %v1832 = vld [vmem:[%s1824 + $0x38] sm:$0xff]
    %v1833 = vrot.slane %v1654, 5
    %v1834 = vsel %vm1680, %v1833, 0
    %1836 = vmatpush.msra.mxu0 0.0
    %1837 = vmatpush.msra.mxu0 0.0
    %1838 = vmatpush.msra.mxu0 0.0
    %1839 = vmatpush.msra.mxu0 0.0
    %1840 = vmatpush.msra.mxu0 0.0
    %1841 = vmatpush.msra.mxu0 0.0
    %1842 = vmatpush.msra.mxu0 0.0
    %1843 = vmatpush.msra.mxu0 0.0
    %1844 = vmatpush.msra.mxu0 %v1832
    %1845 = vmatpush.msra.mxu0 %v1831
    %1846 = vmatpush.msra.mxu0 %v1830
    %1847 = vmatpush.msra.mxu0 %v1829
    %1848 = vmatpush.msra.mxu0 %v1828
    %1849 = vmatpush.msra.mxu0 %v1827
    %1850 = vmatpush.msra.mxu0 %v1826
    %1851 = vmatpush.msra.mxu0 %v1825
    %1852 = vmatmul.f32.gmra.mxu0 %v1834
    %v1853 = vpop.f32.mrf.mxu0
    %v1854 = vadd.f32 0.0, %v1853
    %1855 = vdwg.mxu0
    %v1856 = vadd.f32 %v1823, %v1854
    %s1857 = scalar_lea.vmem %s6, 384
    %v1858 = vld [vmem:[%s1857] sm:$0xff]
    %v1859 = vld [vmem:[%s1857 + $0x8] sm:$0xff]
    %v1860 = vld [vmem:[%s1857 + $0x10] sm:$0xff]
    %v1861 = vld [vmem:[%s1857 + $0x18] sm:$0xff]
    %v1862 = vld [vmem:[%s1857 + $0x20] sm:$0xff]
    %v1863 = vld [vmem:[%s1857 + $0x28] sm:$0xff]
    %v1864 = vld [vmem:[%s1857 + $0x30] sm:$0xff]
    %v1865 = vld [vmem:[%s1857 + $0x38] sm:$0xff]
    %v1866 = vrot.slane %v1654, 6
    %v1867 = vsel %vm1680, %v1866, 0
    %1869 = vmatpush.msra.mxu0 0.0
    %1870 = vmatpush.msra.mxu0 0.0
    %1871 = vmatpush.msra.mxu0 0.0
    %1872 = vmatpush.msra.mxu0 0.0
    %1873 = vmatpush.msra.mxu0 0.0
    %1874 = vmatpush.msra.mxu0 0.0
    %1875 = vmatpush.msra.mxu0 0.0
    %1876 = vmatpush.msra.mxu0 0.0
    %1877 = vmatpush.msra.mxu0 %v1865
    %1878 = vmatpush.msra.mxu0 %v1864
    %1879 = vmatpush.msra.mxu0 %v1863
    %1880 = vmatpush.msra.mxu0 %v1862
    %1881 = vmatpush.msra.mxu0 %v1861
    %1882 = vmatpush.msra.mxu0 %v1860
    %1883 = vmatpush.msra.mxu0 %v1859
    %1884 = vmatpush.msra.mxu0 %v1858
    %1885 = vmatmul.f32.gmra.mxu0 %v1867
    %v1886 = vpop.f32.mrf.mxu0
    %v1887 = vadd.f32 0.0, %v1886
    %1888 = vdwg.mxu0
    %v1889 = vadd.f32 %v1856, %v1887
    %s1890 = scalar_lea.vmem %s6, 448
    %v1891 = vld [vmem:[%s1890] sm:$0xff]
    %v1892 = vld [vmem:[%s1890 + $0x8] sm:$0xff]
    %v1893 = vld [vmem:[%s1890 + $0x10] sm:$0xff]
    %v1894 = vld [vmem:[%s1890 + $0x18] sm:$0xff]
    %v1895 = vld [vmem:[%s1890 + $0x20] sm:$0xff]
    %v1896 = vld [vmem:[%s1890 + $0x28] sm:$0xff]
    %v1897 = vld [vmem:[%s1890 + $0x30] sm:$0xff]
    %v1898 = vld [vmem:[%s1890 + $0x38] sm:$0xff]
    %v1899 = vrot.slane %v1654, 7
    %v1900 = vsel %vm1680, %v1899, 0
    %1902 = vmatpush.msra.mxu0 0.0
    %1903 = vmatpush.msra.mxu0 0.0
    %1904 = vmatpush.msra.mxu0 0.0
    %1905 = vmatpush.msra.mxu0 0.0
    %1906 = vmatpush.msra.mxu0 0.0
    %1907 = vmatpush.msra.mxu0 0.0
    %1908 = vmatpush.msra.mxu0 0.0
    %1909 = vmatpush.msra.mxu0 0.0
    %1910 = vmatpush.msra.mxu0 %v1898
    %1911 = vmatpush.msra.mxu0 %v1897
    %1912 = vmatpush.msra.mxu0 %v1896
    %1913 = vmatpush.msra.mxu0 %v1895
    %1914 = vmatpush.msra.mxu0 %v1894
    %1915 = vmatpush.msra.mxu0 %v1893
    %1916 = vmatpush.msra.mxu0 %v1892
    %1917 = vmatpush.msra.mxu0 %v1891
    %1918 = vmatmul.f32.gmra.mxu0 %v1900
    %v1919 = vpop.f32.mrf.mxu0
    %v1920 = vadd.f32 0.0, %v1919
    %1921 = vdwg.mxu0
    %v1922 = vadd.f32 %v1889, %v1920
    %s1923 = scalar_lea.vmem %s6, 512
    %v1924 = vld [vmem:[%s1923] sm:$0xff]
    %v1925 = vld [vmem:[%s1923 + $0x8] sm:$0xff]
    %v1926 = vld [vmem:[%s1923 + $0x10] sm:$0xff]
    %v1927 = vld [vmem:[%s1923 + $0x18] sm:$0xff]
    %v1928 = vld [vmem:[%s1923 + $0x20] sm:$0xff]
    %v1929 = vld [vmem:[%s1923 + $0x28] sm:$0xff]
    %v1930 = vld [vmem:[%s1923 + $0x30] sm:$0xff]
    %v1931 = vld [vmem:[%s1923 + $0x38] sm:$0xff]
    %v1933 = vsel %vm1680, %v1655, 0
    %1935 = vmatpush.msra.mxu0 0.0
    %1936 = vmatpush.msra.mxu0 0.0
    %1937 = vmatpush.msra.mxu0 0.0
    %1938 = vmatpush.msra.mxu0 0.0
    %1939 = vmatpush.msra.mxu0 0.0
    %1940 = vmatpush.msra.mxu0 0.0
    %1941 = vmatpush.msra.mxu0 0.0
    %1942 = vmatpush.msra.mxu0 0.0
    %1943 = vmatpush.msra.mxu0 %v1931
    %1944 = vmatpush.msra.mxu0 %v1930
    %1945 = vmatpush.msra.mxu0 %v1929
    %1946 = vmatpush.msra.mxu0 %v1928
    %1947 = vmatpush.msra.mxu0 %v1927
    %1948 = vmatpush.msra.mxu0 %v1926
    %1949 = vmatpush.msra.mxu0 %v1925
    %1950 = vmatpush.msra.mxu0 %v1924
    %1951 = vmatmul.f32.gmra.mxu0 %v1933
    %v1952 = vpop.f32.mrf.mxu0
    %v1953 = vadd.f32 0.0, %v1952
    %1954 = vdwg.mxu0
    %v1955 = vadd.f32 %v1922, %v1953
    %s1956 = scalar_lea.vmem %s6, 576
    %v1957 = vld [vmem:[%s1956] sm:$0xff]
    %v1958 = vld [vmem:[%s1956 + $0x8] sm:$0xff]
    %v1959 = vld [vmem:[%s1956 + $0x10] sm:$0xff]
    %v1960 = vld [vmem:[%s1956 + $0x18] sm:$0xff]
    %v1961 = vld [vmem:[%s1956 + $0x20] sm:$0xff]
    %v1962 = vld [vmem:[%s1956 + $0x28] sm:$0xff]
    %v1963 = vld [vmem:[%s1956 + $0x30] sm:$0xff]
    %v1964 = vld [vmem:[%s1956 + $0x38] sm:$0xff]
    %v1965 = vrot.slane %v1655, 1
    %v1966 = vsel %vm1680, %v1965, 0
    %1968 = vmatpush.msra.mxu0 0.0
    %1969 = vmatpush.msra.mxu0 0.0
    %1970 = vmatpush.msra.mxu0 0.0
    %1971 = vmatpush.msra.mxu0 0.0
    %1972 = vmatpush.msra.mxu0 0.0
    %1973 = vmatpush.msra.mxu0 0.0
    %1974 = vmatpush.msra.mxu0 0.0
    %1975 = vmatpush.msra.mxu0 0.0
    %1976 = vmatpush.msra.mxu0 %v1964
    %1977 = vmatpush.msra.mxu0 %v1963
    %1978 = vmatpush.msra.mxu0 %v1962
    %1979 = vmatpush.msra.mxu0 %v1961
    %1980 = vmatpush.msra.mxu0 %v1960
    %1981 = vmatpush.msra.mxu0 %v1959
    %1982 = vmatpush.msra.mxu0 %v1958
    %1983 = vmatpush.msra.mxu0 %v1957
    %1984 = vmatmul.f32.gmra.mxu0 %v1966
    %v1985 = vpop.f32.mrf.mxu0
    %v1986 = vadd.f32 0.0, %v1985
    %1987 = vdwg.mxu0
    %v1988 = vadd.f32 %v1955, %v1986
    %s1989 = scalar_lea.vmem %s6, 640
    %v1990 = vld [vmem:[%s1989] sm:$0xff]
    %v1991 = vld [vmem:[%s1989 + $0x8] sm:$0xff]
    %v1992 = vld [vmem:[%s1989 + $0x10] sm:$0xff]
    %v1993 = vld [vmem:[%s1989 + $0x18] sm:$0xff]
    %v1994 = vld [vmem:[%s1989 + $0x20] sm:$0xff]
    %v1995 = vld [vmem:[%s1989 + $0x28] sm:$0xff]
    %v1996 = vld [vmem:[%s1989 + $0x30] sm:$0xff]
    %v1997 = vld [vmem:[%s1989 + $0x38] sm:$0xff]
    %v1998 = vrot.slane %v1655, 2
    %v1999 = vsel %vm1680, %v1998, 0
    %2001 = vmatpush.msra.mxu0 0.0
    %2002 = vmatpush.msra.mxu0 0.0
    %2003 = vmatpush.msra.mxu0 0.0
    %2004 = vmatpush.msra.mxu0 0.0
    %2005 = vmatpush.msra.mxu0 0.0
    %2006 = vmatpush.msra.mxu0 0.0
    %2007 = vmatpush.msra.mxu0 0.0
    %2008 = vmatpush.msra.mxu0 0.0
    %2009 = vmatpush.msra.mxu0 %v1997
    %2010 = vmatpush.msra.mxu0 %v1996
    %2011 = vmatpush.msra.mxu0 %v1995
    %2012 = vmatpush.msra.mxu0 %v1994
    %2013 = vmatpush.msra.mxu0 %v1993
    %2014 = vmatpush.msra.mxu0 %v1992
    %2015 = vmatpush.msra.mxu0 %v1991
    %2016 = vmatpush.msra.mxu0 %v1990
    %2017 = vmatmul.f32.gmra.mxu0 %v1999
    %v2018 = vpop.f32.mrf.mxu0
    %v2019 = vadd.f32 0.0, %v2018
    %2020 = vdwg.mxu0
    %v2021 = vadd.f32 %v1988, %v2019
    %s2022 = scalar_lea.vmem %s6, 704
    %v2023 = vld [vmem:[%s2022] sm:$0xff]
    %v2024 = vld [vmem:[%s2022 + $0x8] sm:$0xff]
    %v2025 = vld [vmem:[%s2022 + $0x10] sm:$0xff]
    %v2026 = vld [vmem:[%s2022 + $0x18] sm:$0xff]
    %v2027 = vld [vmem:[%s2022 + $0x20] sm:$0xff]
    %v2028 = vld [vmem:[%s2022 + $0x28] sm:$0xff]
    %v2029 = vld [vmem:[%s2022 + $0x30] sm:$0xff]
    %v2030 = vld [vmem:[%s2022 + $0x38] sm:$0xff]
    %v2031 = vrot.slane %v1655, 3
    %v2032 = vsel %vm1680, %v2031, 0
    %2034 = vmatpush.msra.mxu0 0.0
    %2035 = vmatpush.msra.mxu0 0.0
    %2036 = vmatpush.msra.mxu0 0.0
    %2037 = vmatpush.msra.mxu0 0.0
    %2038 = vmatpush.msra.mxu0 0.0
    %2039 = vmatpush.msra.mxu0 0.0
    %2040 = vmatpush.msra.mxu0 0.0
    %2041 = vmatpush.msra.mxu0 0.0
    %2042 = vmatpush.msra.mxu0 %v2030
    %2043 = vmatpush.msra.mxu0 %v2029
    %2044 = vmatpush.msra.mxu0 %v2028
    %2045 = vmatpush.msra.mxu0 %v2027
    %2046 = vmatpush.msra.mxu0 %v2026
    %2047 = vmatpush.msra.mxu0 %v2025
    %2048 = vmatpush.msra.mxu0 %v2024
    %2049 = vmatpush.msra.mxu0 %v2023
    %2050 = vmatmul.f32.gmra.mxu0 %v2032
    %v2051 = vpop.f32.mrf.mxu0
    %v2052 = vadd.f32 0.0, %v2051
    %2053 = vdwg.mxu0
    %v2054 = vadd.f32 %v2021, %v2052
    %s2055 = scalar_lea.vmem %s6, 768
    %v2056 = vld [vmem:[%s2055] sm:$0xff]
    %v2057 = vld [vmem:[%s2055 + $0x8] sm:$0xff]
    %v2058 = vld [vmem:[%s2055 + $0x10] sm:$0xff]
    %v2059 = vld [vmem:[%s2055 + $0x18] sm:$0xff]
    %v2060 = vld [vmem:[%s2055 + $0x20] sm:$0xff]
    %v2061 = vld [vmem:[%s2055 + $0x28] sm:$0xff]
    %v2062 = vld [vmem:[%s2055 + $0x30] sm:$0xff]
    %v2063 = vld [vmem:[%s2055 + $0x38] sm:$0xff]
    %v2064 = vrot.slane %v1655, 4
    %v2065 = vsel %vm1680, %v2064, 0
    %2067 = vmatpush.msra.mxu0 0.0
    %2068 = vmatpush.msra.mxu0 0.0
    %2069 = vmatpush.msra.mxu0 0.0
    %2070 = vmatpush.msra.mxu0 0.0
    %2071 = vmatpush.msra.mxu0 0.0
    %2072 = vmatpush.msra.mxu0 0.0
    %2073 = vmatpush.msra.mxu0 0.0
    %2074 = vmatpush.msra.mxu0 0.0
    %2075 = vmatpush.msra.mxu0 %v2063
    %2076 = vmatpush.msra.mxu0 %v2062
    %2077 = vmatpush.msra.mxu0 %v2061
    %2078 = vmatpush.msra.mxu0 %v2060
    %2079 = vmatpush.msra.mxu0 %v2059
    %2080 = vmatpush.msra.mxu0 %v2058
    %2081 = vmatpush.msra.mxu0 %v2057
    %2082 = vmatpush.msra.mxu0 %v2056
    %2083 = vmatmul.f32.gmra.mxu0 %v2065
    %v2084 = vpop.f32.mrf.mxu0
    %v2085 = vadd.f32 0.0, %v2084
    %2086 = vdwg.mxu0
    %v2087 = vadd.f32 %v2054, %v2085
    %s2088 = scalar_lea.vmem %s6, 832
    %v2089 = vld [vmem:[%s2088] sm:$0xff]
    %v2090 = vld [vmem:[%s2088 + $0x8] sm:$0xff]
    %v2091 = vld [vmem:[%s2088 + $0x10] sm:$0xff]
    %v2092 = vld [vmem:[%s2088 + $0x18] sm:$0xff]
    %v2093 = vld [vmem:[%s2088 + $0x20] sm:$0xff]
    %v2094 = vld [vmem:[%s2088 + $0x28] sm:$0xff]
    %v2095 = vld [vmem:[%s2088 + $0x30] sm:$0xff]
    %v2096 = vld [vmem:[%s2088 + $0x38] sm:$0xff]
    %v2097 = vrot.slane %v1655, 5
    %v2098 = vsel %vm1680, %v2097, 0
    %2100 = vmatpush.msra.mxu0 0.0
    %2101 = vmatpush.msra.mxu0 0.0
    %2102 = vmatpush.msra.mxu0 0.0
    %2103 = vmatpush.msra.mxu0 0.0
    %2104 = vmatpush.msra.mxu0 0.0
    %2105 = vmatpush.msra.mxu0 0.0
    %2106 = vmatpush.msra.mxu0 0.0
    %2107 = vmatpush.msra.mxu0 0.0
    %2108 = vmatpush.msra.mxu0 %v2096
    %2109 = vmatpush.msra.mxu0 %v2095
    %2110 = vmatpush.msra.mxu0 %v2094
    %2111 = vmatpush.msra.mxu0 %v2093
    %2112 = vmatpush.msra.mxu0 %v2092
    %2113 = vmatpush.msra.mxu0 %v2091
    %2114 = vmatpush.msra.mxu0 %v2090
    %2115 = vmatpush.msra.mxu0 %v2089
    %2116 = vmatmul.f32.gmra.mxu0 %v2098
    %v2117 = vpop.f32.mrf.mxu0
    %v2118 = vadd.f32 0.0, %v2117
    %2119 = vdwg.mxu0
    %v2120 = vadd.f32 %v2087, %v2118
    %s2121 = scalar_lea.vmem %s6, 896
    %v2122 = vld [vmem:[%s2121] sm:$0xff]
    %v2123 = vld [vmem:[%s2121 + $0x8] sm:$0xff]
    %v2124 = vld [vmem:[%s2121 + $0x10] sm:$0xff]
    %v2125 = vld [vmem:[%s2121 + $0x18] sm:$0xff]
    %v2126 = vld [vmem:[%s2121 + $0x20] sm:$0xff]
    %v2127 = vld [vmem:[%s2121 + $0x28] sm:$0xff]
    %v2128 = vld [vmem:[%s2121 + $0x30] sm:$0xff]
    %v2129 = vld [vmem:[%s2121 + $0x38] sm:$0xff]
    %v2130 = vrot.slane %v1655, 6
    %v2131 = vsel %vm1680, %v2130, 0
    %2133 = vmatpush.msra.mxu0 0.0
    %2134 = vmatpush.msra.mxu0 0.0
    %2135 = vmatpush.msra.mxu0 0.0
    %2136 = vmatpush.msra.mxu0 0.0
    %2137 = vmatpush.msra.mxu0 0.0
    %2138 = vmatpush.msra.mxu0 0.0
    %2139 = vmatpush.msra.mxu0 0.0
    %2140 = vmatpush.msra.mxu0 0.0
    %2141 = vmatpush.msra.mxu0 %v2129
    %2142 = vmatpush.msra.mxu0 %v2128
    %2143 = vmatpush.msra.mxu0 %v2127
    %2144 = vmatpush.msra.mxu0 %v2126
    %2145 = vmatpush.msra.mxu0 %v2125
    %2146 = vmatpush.msra.mxu0 %v2124
    %2147 = vmatpush.msra.mxu0 %v2123
    %2148 = vmatpush.msra.mxu0 %v2122
    %2149 = vmatmul.f32.gmra.mxu0 %v2131
    %v2150 = vpop.f32.mrf.mxu0
    %v2151 = vadd.f32 0.0, %v2150
    %2152 = vdwg.mxu0
    %v2153 = vadd.f32 %v2120, %v2151
    %s2154 = scalar_lea.vmem %s6, 960
    %v2155 = vld [vmem:[%s2154] sm:$0xff]
    %v2156 = vld [vmem:[%s2154 + $0x8] sm:$0xff]
    %v2157 = vld [vmem:[%s2154 + $0x10] sm:$0xff]
    %v2158 = vld [vmem:[%s2154 + $0x18] sm:$0xff]
    %v2159 = vld [vmem:[%s2154 + $0x20] sm:$0xff]
    %v2160 = vld [vmem:[%s2154 + $0x28] sm:$0xff]
    %v2161 = vld [vmem:[%s2154 + $0x30] sm:$0xff]
    %v2162 = vld [vmem:[%s2154 + $0x38] sm:$0xff]
    %v2163 = vrot.slane %v1655, 7
    %v2164 = vsel %vm1680, %v2163, 0
    %2166 = vmatpush.msra.mxu0 0.0
    %2167 = vmatpush.msra.mxu0 0.0
    %2168 = vmatpush.msra.mxu0 0.0
    %2169 = vmatpush.msra.mxu0 0.0
    %2170 = vmatpush.msra.mxu0 0.0
    %2171 = vmatpush.msra.mxu0 0.0
    %2172 = vmatpush.msra.mxu0 0.0
    %2173 = vmatpush.msra.mxu0 0.0
    %2174 = vmatpush.msra.mxu0 %v2162
    %2175 = vmatpush.msra.mxu0 %v2161
    %2176 = vmatpush.msra.mxu0 %v2160
    %2177 = vmatpush.msra.mxu0 %v2159
    %2178 = vmatpush.msra.mxu0 %v2158
    %2179 = vmatpush.msra.mxu0 %v2157
    %2180 = vmatpush.msra.mxu0 %v2156
    %2181 = vmatpush.msra.mxu0 %v2155
    %2182 = vmatmul.f32.gmra.mxu0 %v2164
    %v2183 = vpop.f32.mrf.mxu0
    %v2184 = vadd.f32 0.0, %v2183
    %2185 = vdwg.mxu0
    %v2186 = vadd.f32 %v2153, %v2184
    %s2187 = scalar_lea.vmem %s6, 1024
    %v2188 = vld [vmem:[%s2187] sm:$0xff]
    %v2189 = vld [vmem:[%s2187 + $0x8] sm:$0xff]
    %v2190 = vld [vmem:[%s2187 + $0x10] sm:$0xff]
    %v2191 = vld [vmem:[%s2187 + $0x18] sm:$0xff]
    %v2192 = vld [vmem:[%s2187 + $0x20] sm:$0xff]
    %v2193 = vld [vmem:[%s2187 + $0x28] sm:$0xff]
    %v2194 = vld [vmem:[%s2187 + $0x30] sm:$0xff]
    %v2195 = vld [vmem:[%s2187 + $0x38] sm:$0xff]
    %v2197 = vsel %vm1680, %v1656, 0
    %2199 = vmatpush.msra.mxu0 0.0
    %2200 = vmatpush.msra.mxu0 0.0
    %2201 = vmatpush.msra.mxu0 0.0
    %2202 = vmatpush.msra.mxu0 0.0
    %2203 = vmatpush.msra.mxu0 0.0
    %2204 = vmatpush.msra.mxu0 0.0
    %2205 = vmatpush.msra.mxu0 0.0
    %2206 = vmatpush.msra.mxu0 0.0
    %2207 = vmatpush.msra.mxu0 %v2195
    %2208 = vmatpush.msra.mxu0 %v2194
    %2209 = vmatpush.msra.mxu0 %v2193
    %2210 = vmatpush.msra.mxu0 %v2192
    %2211 = vmatpush.msra.mxu0 %v2191
    %2212 = vmatpush.msra.mxu0 %v2190
    %2213 = vmatpush.msra.mxu0 %v2189
    %2214 = vmatpush.msra.mxu0 %v2188
    %2215 = vmatmul.f32.gmra.mxu0 %v2197
    %v2216 = vpop.f32.mrf.mxu0
    %v2217 = vadd.f32 0.0, %v2216
    %2218 = vdwg.mxu0
    %v2219 = vadd.f32 %v2186, %v2217
    %s2220 = scalar_lea.vmem %s6, 1088
    %v2221 = vld [vmem:[%s2220] sm:$0xff]
    %v2222 = vld [vmem:[%s2220 + $0x8] sm:$0xff]
    %v2223 = vld [vmem:[%s2220 + $0x10] sm:$0xff]
    %v2224 = vld [vmem:[%s2220 + $0x18] sm:$0xff]
    %v2225 = vld [vmem:[%s2220 + $0x20] sm:$0xff]
    %v2226 = vld [vmem:[%s2220 + $0x28] sm:$0xff]
    %v2227 = vld [vmem:[%s2220 + $0x30] sm:$0xff]
    %v2228 = vld [vmem:[%s2220 + $0x38] sm:$0xff]
    %v2229 = vrot.slane %v1656, 1
    %v2230 = vsel %vm1680, %v2229, 0
    %2232 = vmatpush.msra.mxu0 0.0
    %2233 = vmatpush.msra.mxu0 0.0
    %2234 = vmatpush.msra.mxu0 0.0
    %2235 = vmatpush.msra.mxu0 0.0
    %2236 = vmatpush.msra.mxu0 0.0
    %2237 = vmatpush.msra.mxu0 0.0
    %2238 = vmatpush.msra.mxu0 0.0
    %2239 = vmatpush.msra.mxu0 0.0
    %2240 = vmatpush.msra.mxu0 %v2228
    %2241 = vmatpush.msra.mxu0 %v2227
    %2242 = vmatpush.msra.mxu0 %v2226
    %2243 = vmatpush.msra.mxu0 %v2225
    %2244 = vmatpush.msra.mxu0 %v2224
    %2245 = vmatpush.msra.mxu0 %v2223
    %2246 = vmatpush.msra.mxu0 %v2222
    %2247 = vmatpush.msra.mxu0 %v2221
    %2248 = vmatmul.f32.gmra.mxu0 %v2230
    %v2249 = vpop.f32.mrf.mxu0
    %v2250 = vadd.f32 0.0, %v2249
    %2251 = vdwg.mxu0
    %v2252 = vadd.f32 %v2219, %v2250
    %s2253 = scalar_lea.vmem %s6, 1152
    %v2254 = vld [vmem:[%s2253] sm:$0xff]
    %v2255 = vld [vmem:[%s2253 + $0x8] sm:$0xff]
    %v2256 = vld [vmem:[%s2253 + $0x10] sm:$0xff]
    %v2257 = vld [vmem:[%s2253 + $0x18] sm:$0xff]
    %v2258 = vld [vmem:[%s2253 + $0x20] sm:$0xff]
    %v2259 = vld [vmem:[%s2253 + $0x28] sm:$0xff]
    %v2260 = vld [vmem:[%s2253 + $0x30] sm:$0xff]
    %v2261 = vld [vmem:[%s2253 + $0x38] sm:$0xff]
    %v2262 = vrot.slane %v1656, 2
    %v2263 = vsel %vm1680, %v2262, 0
    %2265 = vmatpush.msra.mxu0 0.0
    %2266 = vmatpush.msra.mxu0 0.0
    %2267 = vmatpush.msra.mxu0 0.0
    %2268 = vmatpush.msra.mxu0 0.0
    %2269 = vmatpush.msra.mxu0 0.0
    %2270 = vmatpush.msra.mxu0 0.0
    %2271 = vmatpush.msra.mxu0 0.0
    %2272 = vmatpush.msra.mxu0 0.0
    %2273 = vmatpush.msra.mxu0 %v2261
    %2274 = vmatpush.msra.mxu0 %v2260
    %2275 = vmatpush.msra.mxu0 %v2259
    %2276 = vmatpush.msra.mxu0 %v2258
    %2277 = vmatpush.msra.mxu0 %v2257
    %2278 = vmatpush.msra.mxu0 %v2256
    %2279 = vmatpush.msra.mxu0 %v2255
    %2280 = vmatpush.msra.mxu0 %v2254
    %2281 = vmatmul.f32.gmra.mxu0 %v2263
    %v2282 = vpop.f32.mrf.mxu0
    %v2283 = vadd.f32 0.0, %v2282
    %2284 = vdwg.mxu0
    %v2285 = vadd.f32 %v2252, %v2283
    %s2286 = scalar_lea.vmem %s6, 1216
    %v2287 = vld [vmem:[%s2286] sm:$0xff]
    %v2288 = vld [vmem:[%s2286 + $0x8] sm:$0xff]
    %v2289 = vld [vmem:[%s2286 + $0x10] sm:$0xff]
    %v2290 = vld [vmem:[%s2286 + $0x18] sm:$0xff]
    %v2291 = vld [vmem:[%s2286 + $0x20] sm:$0xff]
    %v2292 = vld [vmem:[%s2286 + $0x28] sm:$0xff]
    %v2293 = vld [vmem:[%s2286 + $0x30] sm:$0xff]
    %v2294 = vld [vmem:[%s2286 + $0x38] sm:$0xff]
    %v2295 = vrot.slane %v1656, 3
    %v2296 = vsel %vm1680, %v2295, 0
    %2298 = vmatpush.msra.mxu0 0.0
    %2299 = vmatpush.msra.mxu0 0.0
    %2300 = vmatpush.msra.mxu0 0.0
    %2301 = vmatpush.msra.mxu0 0.0
    %2302 = vmatpush.msra.mxu0 0.0
    %2303 = vmatpush.msra.mxu0 0.0
    %2304 = vmatpush.msra.mxu0 0.0
    %2305 = vmatpush.msra.mxu0 0.0
    %2306 = vmatpush.msra.mxu0 %v2294
    %2307 = vmatpush.msra.mxu0 %v2293
    %2308 = vmatpush.msra.mxu0 %v2292
    %2309 = vmatpush.msra.mxu0 %v2291
    %2310 = vmatpush.msra.mxu0 %v2290
    %2311 = vmatpush.msra.mxu0 %v2289
    %2312 = vmatpush.msra.mxu0 %v2288
    %2313 = vmatpush.msra.mxu0 %v2287
    %2314 = vmatmul.f32.gmra.mxu0 %v2296
    %v2315 = vpop.f32.mrf.mxu0
    %v2316 = vadd.f32 0.0, %v2315
    %2317 = vdwg.mxu0
    %v2318 = vadd.f32 %v2285, %v2316
    %s2319 = scalar_lea.vmem %s6, 1280
    %v2320 = vld [vmem:[%s2319] sm:$0xff]
    %v2321 = vld [vmem:[%s2319 + $0x8] sm:$0xff]
    %v2322 = vld [vmem:[%s2319 + $0x10] sm:$0xff]
    %v2323 = vld [vmem:[%s2319 + $0x18] sm:$0xff]
    %v2324 = vld [vmem:[%s2319 + $0x20] sm:$0xff]
    %v2325 = vld [vmem:[%s2319 + $0x28] sm:$0xff]
    %v2326 = vld [vmem:[%s2319 + $0x30] sm:$0xff]
    %v2327 = vld [vmem:[%s2319 + $0x38] sm:$0xff]
    %v2328 = vrot.slane %v1656, 4
    %v2329 = vsel %vm1680, %v2328, 0
    %2331 = vmatpush.msra.mxu0 0.0
    %2332 = vmatpush.msra.mxu0 0.0
    %2333 = vmatpush.msra.mxu0 0.0
    %2334 = vmatpush.msra.mxu0 0.0
    %2335 = vmatpush.msra.mxu0 0.0
    %2336 = vmatpush.msra.mxu0 0.0
    %2337 = vmatpush.msra.mxu0 0.0
    %2338 = vmatpush.msra.mxu0 0.0
    %2339 = vmatpush.msra.mxu0 %v2327
    %2340 = vmatpush.msra.mxu0 %v2326
    %2341 = vmatpush.msra.mxu0 %v2325
    %2342 = vmatpush.msra.mxu0 %v2324
    %2343 = vmatpush.msra.mxu0 %v2323
    %2344 = vmatpush.msra.mxu0 %v2322
    %2345 = vmatpush.msra.mxu0 %v2321
    %2346 = vmatpush.msra.mxu0 %v2320
    %2347 = vmatmul.f32.gmra.mxu0 %v2329
    %v2348 = vpop.f32.mrf.mxu0
    %v2349 = vadd.f32 0.0, %v2348
    %2350 = vdwg.mxu0
    %v2351 = vadd.f32 %v2318, %v2349
    %s2352 = scalar_lea.vmem %s6, 1344
    %v2353 = vld [vmem:[%s2352] sm:$0xff]
    %v2354 = vld [vmem:[%s2352 + $0x8] sm:$0xff]
    %v2355 = vld [vmem:[%s2352 + $0x10] sm:$0xff]
    %v2356 = vld [vmem:[%s2352 + $0x18] sm:$0xff]
    %v2357 = vld [vmem:[%s2352 + $0x20] sm:$0xff]
    %v2358 = vld [vmem:[%s2352 + $0x28] sm:$0xff]
    %v2359 = vld [vmem:[%s2352 + $0x30] sm:$0xff]
    %v2360 = vld [vmem:[%s2352 + $0x38] sm:$0xff]
    %v2361 = vrot.slane %v1656, 5
    %v2362 = vsel %vm1680, %v2361, 0
    %2364 = vmatpush.msra.mxu0 0.0
    %2365 = vmatpush.msra.mxu0 0.0
    %2366 = vmatpush.msra.mxu0 0.0
    %2367 = vmatpush.msra.mxu0 0.0
    %2368 = vmatpush.msra.mxu0 0.0
    %2369 = vmatpush.msra.mxu0 0.0
    %2370 = vmatpush.msra.mxu0 0.0
    %2371 = vmatpush.msra.mxu0 0.0
    %2372 = vmatpush.msra.mxu0 %v2360
    %2373 = vmatpush.msra.mxu0 %v2359
    %2374 = vmatpush.msra.mxu0 %v2358
    %2375 = vmatpush.msra.mxu0 %v2357
    %2376 = vmatpush.msra.mxu0 %v2356
    %2377 = vmatpush.msra.mxu0 %v2355
    %2378 = vmatpush.msra.mxu0 %v2354
    %2379 = vmatpush.msra.mxu0 %v2353
    %2380 = vmatmul.f32.gmra.mxu0 %v2362
    %v2381 = vpop.f32.mrf.mxu0
    %v2382 = vadd.f32 0.0, %v2381
    %2383 = vdwg.mxu0
    %v2384 = vadd.f32 %v2351, %v2382
    %s2385 = scalar_lea.vmem %s6, 1408
    %v2386 = vld [vmem:[%s2385] sm:$0xff]
    %v2387 = vld [vmem:[%s2385 + $0x8] sm:$0xff]
    %v2388 = vld [vmem:[%s2385 + $0x10] sm:$0xff]
    %v2389 = vld [vmem:[%s2385 + $0x18] sm:$0xff]
    %v2390 = vld [vmem:[%s2385 + $0x20] sm:$0xff]
    %v2391 = vld [vmem:[%s2385 + $0x28] sm:$0xff]
    %v2392 = vld [vmem:[%s2385 + $0x30] sm:$0xff]
    %v2393 = vld [vmem:[%s2385 + $0x38] sm:$0xff]
    %v2394 = vrot.slane %v1656, 6
    %v2395 = vsel %vm1680, %v2394, 0
    %2397 = vmatpush.msra.mxu0 0.0
    %2398 = vmatpush.msra.mxu0 0.0
    %2399 = vmatpush.msra.mxu0 0.0
    %2400 = vmatpush.msra.mxu0 0.0
    %2401 = vmatpush.msra.mxu0 0.0
    %2402 = vmatpush.msra.mxu0 0.0
    %2403 = vmatpush.msra.mxu0 0.0
    %2404 = vmatpush.msra.mxu0 0.0
    %2405 = vmatpush.msra.mxu0 %v2393
    %2406 = vmatpush.msra.mxu0 %v2392
    %2407 = vmatpush.msra.mxu0 %v2391
    %2408 = vmatpush.msra.mxu0 %v2390
    %2409 = vmatpush.msra.mxu0 %v2389
    %2410 = vmatpush.msra.mxu0 %v2388
    %2411 = vmatpush.msra.mxu0 %v2387
    %2412 = vmatpush.msra.mxu0 %v2386
    %2413 = vmatmul.f32.gmra.mxu0 %v2395
    %v2414 = vpop.f32.mrf.mxu0
    %v2415 = vadd.f32 0.0, %v2414
    %2416 = vdwg.mxu0
    %v2417 = vadd.f32 %v2384, %v2415
    %s2418 = scalar_lea.vmem %s6, 1472
    %v2419 = vld [vmem:[%s2418] sm:$0xff]
    %v2420 = vld [vmem:[%s2418 + $0x8] sm:$0xff]
    %v2421 = vld [vmem:[%s2418 + $0x10] sm:$0xff]
    %v2422 = vld [vmem:[%s2418 + $0x18] sm:$0xff]
    %v2423 = vld [vmem:[%s2418 + $0x20] sm:$0xff]
    %v2424 = vld [vmem:[%s2418 + $0x28] sm:$0xff]
    %v2425 = vld [vmem:[%s2418 + $0x30] sm:$0xff]
    %v2426 = vld [vmem:[%s2418 + $0x38] sm:$0xff]
    %v2427 = vrot.slane %v1656, 7
    %v2428 = vsel %vm1680, %v2427, 0
    %2430 = vmatpush.msra.mxu0 0.0
    %2431 = vmatpush.msra.mxu0 0.0
    %2432 = vmatpush.msra.mxu0 0.0
    %2433 = vmatpush.msra.mxu0 0.0
    %2434 = vmatpush.msra.mxu0 0.0
    %2435 = vmatpush.msra.mxu0 0.0
    %2436 = vmatpush.msra.mxu0 0.0
    %2437 = vmatpush.msra.mxu0 0.0
    %2438 = vmatpush.msra.mxu0 %v2426
    %2439 = vmatpush.msra.mxu0 %v2425
    %2440 = vmatpush.msra.mxu0 %v2424
    %2441 = vmatpush.msra.mxu0 %v2423
    %2442 = vmatpush.msra.mxu0 %v2422
    %2443 = vmatpush.msra.mxu0 %v2421
    %2444 = vmatpush.msra.mxu0 %v2420
    %2445 = vmatpush.msra.mxu0 %v2419
    %2446 = vmatmul.f32.gmra.mxu0 %v2428
    %v2447 = vpop.f32.mrf.mxu0
    %v2448 = vadd.f32 0.0, %v2447
    %2449 = vdwg.mxu0
    %v2450 = vadd.f32 %v2417, %v2448
    %s2451 = scalar_lea.vmem %s6, 1536
    %v2452 = vld [vmem:[%s2451] sm:$0xff]
    %v2453 = vld [vmem:[%s2451 + $0x8] sm:$0xff]
    %v2454 = vld [vmem:[%s2451 + $0x10] sm:$0xff]
    %v2455 = vld [vmem:[%s2451 + $0x18] sm:$0xff]
    %v2456 = vld [vmem:[%s2451 + $0x20] sm:$0xff]
    %v2457 = vld [vmem:[%s2451 + $0x28] sm:$0xff]
    %v2458 = vld [vmem:[%s2451 + $0x30] sm:$0xff]
    %v2459 = vld [vmem:[%s2451 + $0x38] sm:$0xff]
    %v2461 = vsel %vm1680, %v1657, 0
    %2463 = vmatpush.msra.mxu0 0.0
    %2464 = vmatpush.msra.mxu0 0.0
    %2465 = vmatpush.msra.mxu0 0.0
    %2466 = vmatpush.msra.mxu0 0.0
    %2467 = vmatpush.msra.mxu0 0.0
    %2468 = vmatpush.msra.mxu0 0.0
    %2469 = vmatpush.msra.mxu0 0.0
    %2470 = vmatpush.msra.mxu0 0.0
    %2471 = vmatpush.msra.mxu0 %v2459
    %2472 = vmatpush.msra.mxu0 %v2458
    %2473 = vmatpush.msra.mxu0 %v2457
    %2474 = vmatpush.msra.mxu0 %v2456
    %2475 = vmatpush.msra.mxu0 %v2455
    %2476 = vmatpush.msra.mxu0 %v2454
    %2477 = vmatpush.msra.mxu0 %v2453
    %2478 = vmatpush.msra.mxu0 %v2452
    %2479 = vmatmul.f32.gmra.mxu0 %v2461
    %v2480 = vpop.f32.mrf.mxu0
    %v2481 = vadd.f32 0.0, %v2480
    %2482 = vdwg.mxu0
    %v2483 = vadd.f32 %v2450, %v2481
    %s2484 = scalar_lea.vmem %s6, 1600
    %v2485 = vld [vmem:[%s2484] sm:$0xff]
    %v2486 = vld [vmem:[%s2484 + $0x8] sm:$0xff]
    %v2487 = vld [vmem:[%s2484 + $0x10] sm:$0xff]
    %v2488 = vld [vmem:[%s2484 + $0x18] sm:$0xff]
    %v2489 = vld [vmem:[%s2484 + $0x20] sm:$0xff]
    %v2490 = vld [vmem:[%s2484 + $0x28] sm:$0xff]
    %v2491 = vld [vmem:[%s2484 + $0x30] sm:$0xff]
    %v2492 = vld [vmem:[%s2484 + $0x38] sm:$0xff]
    %v2493 = vrot.slane %v1657, 1
    %v2494 = vsel %vm1680, %v2493, 0
    %2496 = vmatpush.msra.mxu0 0.0
    %2497 = vmatpush.msra.mxu0 0.0
    %2498 = vmatpush.msra.mxu0 0.0
    %2499 = vmatpush.msra.mxu0 0.0
    %2500 = vmatpush.msra.mxu0 0.0
    %2501 = vmatpush.msra.mxu0 0.0
    %2502 = vmatpush.msra.mxu0 0.0
    %2503 = vmatpush.msra.mxu0 0.0
    %2504 = vmatpush.msra.mxu0 %v2492
    %2505 = vmatpush.msra.mxu0 %v2491
    %2506 = vmatpush.msra.mxu0 %v2490
    %2507 = vmatpush.msra.mxu0 %v2489
    %2508 = vmatpush.msra.mxu0 %v2488
    %2509 = vmatpush.msra.mxu0 %v2487
    %2510 = vmatpush.msra.mxu0 %v2486
    %2511 = vmatpush.msra.mxu0 %v2485
    %2512 = vmatmul.f32.gmra.mxu0 %v2494
    %v2513 = vpop.f32.mrf.mxu0
    %v2514 = vadd.f32 0.0, %v2513
    %2515 = vdwg.mxu0
    %v2516 = vadd.f32 %v2483, %v2514
    %s2517 = scalar_lea.vmem %s6, 1664
    %v2518 = vld [vmem:[%s2517] sm:$0xff]
    %v2519 = vld [vmem:[%s2517 + $0x8] sm:$0xff]
    %v2520 = vld [vmem:[%s2517 + $0x10] sm:$0xff]
    %v2521 = vld [vmem:[%s2517 + $0x18] sm:$0xff]
    %v2522 = vld [vmem:[%s2517 + $0x20] sm:$0xff]
    %v2523 = vld [vmem:[%s2517 + $0x28] sm:$0xff]
    %v2524 = vld [vmem:[%s2517 + $0x30] sm:$0xff]
    %v2525 = vld [vmem:[%s2517 + $0x38] sm:$0xff]
    %v2526 = vrot.slane %v1657, 2
    %v2527 = vsel %vm1680, %v2526, 0
    %2529 = vmatpush.msra.mxu0 0.0
    %2530 = vmatpush.msra.mxu0 0.0
    %2531 = vmatpush.msra.mxu0 0.0
    %2532 = vmatpush.msra.mxu0 0.0
    %2533 = vmatpush.msra.mxu0 0.0
    %2534 = vmatpush.msra.mxu0 0.0
    %2535 = vmatpush.msra.mxu0 0.0
    %2536 = vmatpush.msra.mxu0 0.0
    %2537 = vmatpush.msra.mxu0 %v2525
    %2538 = vmatpush.msra.mxu0 %v2524
    %2539 = vmatpush.msra.mxu0 %v2523
    %2540 = vmatpush.msra.mxu0 %v2522
    %2541 = vmatpush.msra.mxu0 %v2521
    %2542 = vmatpush.msra.mxu0 %v2520
    %2543 = vmatpush.msra.mxu0 %v2519
    %2544 = vmatpush.msra.mxu0 %v2518
    %2545 = vmatmul.f32.gmra.mxu0 %v2527
    %v2546 = vpop.f32.mrf.mxu0
    %v2547 = vadd.f32 0.0, %v2546
    %2548 = vdwg.mxu0
    %v2549 = vadd.f32 %v2516, %v2547
    %s2550 = scalar_lea.vmem %s6, 1728
    %v2551 = vld [vmem:[%s2550] sm:$0xff]
    %v2552 = vld [vmem:[%s2550 + $0x8] sm:$0xff]
    %v2553 = vld [vmem:[%s2550 + $0x10] sm:$0xff]
    %v2554 = vld [vmem:[%s2550 + $0x18] sm:$0xff]
    %v2555 = vld [vmem:[%s2550 + $0x20] sm:$0xff]
    %v2556 = vld [vmem:[%s2550 + $0x28] sm:$0xff]
    %v2557 = vld [vmem:[%s2550 + $0x30] sm:$0xff]
    %v2558 = vld [vmem:[%s2550 + $0x38] sm:$0xff]
    %v2559 = vrot.slane %v1657, 3
    %v2560 = vsel %vm1680, %v2559, 0
    %2562 = vmatpush.msra.mxu0 0.0
    %2563 = vmatpush.msra.mxu0 0.0
    %2564 = vmatpush.msra.mxu0 0.0
    %2565 = vmatpush.msra.mxu0 0.0
    %2566 = vmatpush.msra.mxu0 0.0
    %2567 = vmatpush.msra.mxu0 0.0
    %2568 = vmatpush.msra.mxu0 0.0
    %2569 = vmatpush.msra.mxu0 0.0
    %2570 = vmatpush.msra.mxu0 %v2558
    %2571 = vmatpush.msra.mxu0 %v2557
    %2572 = vmatpush.msra.mxu0 %v2556
    %2573 = vmatpush.msra.mxu0 %v2555
    %2574 = vmatpush.msra.mxu0 %v2554
    %2575 = vmatpush.msra.mxu0 %v2553
    %2576 = vmatpush.msra.mxu0 %v2552
    %2577 = vmatpush.msra.mxu0 %v2551
    %2578 = vmatmul.f32.gmra.mxu0 %v2560
    %v2579 = vpop.f32.mrf.mxu0
    %v2580 = vadd.f32 0.0, %v2579
    %2581 = vdwg.mxu0
    %v2582 = vadd.f32 %v2549, %v2580
    %s2583 = scalar_lea.vmem %s6, 1792
    %v2584 = vld [vmem:[%s2583] sm:$0xff]
    %v2585 = vld [vmem:[%s2583 + $0x8] sm:$0xff]
    %v2586 = vld [vmem:[%s2583 + $0x10] sm:$0xff]
    %v2587 = vld [vmem:[%s2583 + $0x18] sm:$0xff]
    %v2588 = vld [vmem:[%s2583 + $0x20] sm:$0xff]
    %v2589 = vld [vmem:[%s2583 + $0x28] sm:$0xff]
    %v2590 = vld [vmem:[%s2583 + $0x30] sm:$0xff]
    %v2591 = vld [vmem:[%s2583 + $0x38] sm:$0xff]
    %v2592 = vrot.slane %v1657, 4
    %v2593 = vsel %vm1680, %v2592, 0
    %2595 = vmatpush.msra.mxu0 0.0
    %2596 = vmatpush.msra.mxu0 0.0
    %2597 = vmatpush.msra.mxu0 0.0
    %2598 = vmatpush.msra.mxu0 0.0
    %2599 = vmatpush.msra.mxu0 0.0
    %2600 = vmatpush.msra.mxu0 0.0
    %2601 = vmatpush.msra.mxu0 0.0
    %2602 = vmatpush.msra.mxu0 0.0
    %2603 = vmatpush.msra.mxu0 %v2591
    %2604 = vmatpush.msra.mxu0 %v2590
    %2605 = vmatpush.msra.mxu0 %v2589
    %2606 = vmatpush.msra.mxu0 %v2588
    %2607 = vmatpush.msra.mxu0 %v2587
    %2608 = vmatpush.msra.mxu0 %v2586
    %2609 = vmatpush.msra.mxu0 %v2585
    %2610 = vmatpush.msra.mxu0 %v2584
    %2611 = vmatmul.f32.gmra.mxu0 %v2593
    %v2612 = vpop.f32.mrf.mxu0
    %v2613 = vadd.f32 0.0, %v2612
    %2614 = vdwg.mxu0
    %v2615 = vadd.f32 %v2582, %v2613
    %s2616 = scalar_lea.vmem %s6, 1856
    %v2617 = vld [vmem:[%s2616] sm:$0xff]
    %v2618 = vld [vmem:[%s2616 + $0x8] sm:$0xff]
    %v2619 = vld [vmem:[%s2616 + $0x10] sm:$0xff]
    %v2620 = vld [vmem:[%s2616 + $0x18] sm:$0xff]
    %v2621 = vld [vmem:[%s2616 + $0x20] sm:$0xff]
    %v2622 = vld [vmem:[%s2616 + $0x28] sm:$0xff]
    %v2623 = vld [vmem:[%s2616 + $0x30] sm:$0xff]
    %v2624 = vld [vmem:[%s2616 + $0x38] sm:$0xff]
    %v2625 = vrot.slane %v1657, 5
    %v2626 = vsel %vm1680, %v2625, 0
    %2628 = vmatpush.msra.mxu0 0.0
    %2629 = vmatpush.msra.mxu0 0.0
    %2630 = vmatpush.msra.mxu0 0.0
    %2631 = vmatpush.msra.mxu0 0.0
    %2632 = vmatpush.msra.mxu0 0.0
    %2633 = vmatpush.msra.mxu0 0.0
    %2634 = vmatpush.msra.mxu0 0.0
    %2635 = vmatpush.msra.mxu0 0.0
    %2636 = vmatpush.msra.mxu0 %v2624
    %2637 = vmatpush.msra.mxu0 %v2623
    %2638 = vmatpush.msra.mxu0 %v2622
    %2639 = vmatpush.msra.mxu0 %v2621
    %2640 = vmatpush.msra.mxu0 %v2620
    %2641 = vmatpush.msra.mxu0 %v2619
    %2642 = vmatpush.msra.mxu0 %v2618
    %2643 = vmatpush.msra.mxu0 %v2617
    %2644 = vmatmul.f32.gmra.mxu0 %v2626
    %v2645 = vpop.f32.mrf.mxu0
    %v2646 = vadd.f32 0.0, %v2645
    %2647 = vdwg.mxu0
    %v2648 = vadd.f32 %v2615, %v2646
    %s2649 = scalar_lea.vmem %s6, 1920
    %v2650 = vld [vmem:[%s2649] sm:$0xff]
    %v2651 = vld [vmem:[%s2649 + $0x8] sm:$0xff]
    %v2652 = vld [vmem:[%s2649 + $0x10] sm:$0xff]
    %v2653 = vld [vmem:[%s2649 + $0x18] sm:$0xff]
    %v2654 = vld [vmem:[%s2649 + $0x20] sm:$0xff]
    %v2655 = vld [vmem:[%s2649 + $0x28] sm:$0xff]
    %v2656 = vld [vmem:[%s2649 + $0x30] sm:$0xff]
    %v2657 = vld [vmem:[%s2649 + $0x38] sm:$0xff]
    %v2658 = vrot.slane %v1657, 6
    %v2659 = vsel %vm1680, %v2658, 0
    %2661 = vmatpush.msra.mxu0 0.0
    %2662 = vmatpush.msra.mxu0 0.0
    %2663 = vmatpush.msra.mxu0 0.0
    %2664 = vmatpush.msra.mxu0 0.0
    %2665 = vmatpush.msra.mxu0 0.0
    %2666 = vmatpush.msra.mxu0 0.0
    %2667 = vmatpush.msra.mxu0 0.0
    %2668 = vmatpush.msra.mxu0 0.0
    %2669 = vmatpush.msra.mxu0 %v2657
    %2670 = vmatpush.msra.mxu0 %v2656
    %2671 = vmatpush.msra.mxu0 %v2655
    %2672 = vmatpush.msra.mxu0 %v2654
    %2673 = vmatpush.msra.mxu0 %v2653
    %2674 = vmatpush.msra.mxu0 %v2652
    %2675 = vmatpush.msra.mxu0 %v2651
    %2676 = vmatpush.msra.mxu0 %v2650
    %2677 = vmatmul.f32.gmra.mxu0 %v2659
    %v2678 = vpop.f32.mrf.mxu0
    %v2679 = vadd.f32 0.0, %v2678
    %2680 = vdwg.mxu0
    %v2681 = vadd.f32 %v2648, %v2679
    %s2682 = scalar_lea.vmem %s6, 1984
    %v2683 = vld [vmem:[%s2682] sm:$0xff]
    %v2684 = vld [vmem:[%s2682 + $0x8] sm:$0xff]
    %v2685 = vld [vmem:[%s2682 + $0x10] sm:$0xff]
    %v2686 = vld [vmem:[%s2682 + $0x18] sm:$0xff]
    %v2687 = vld [vmem:[%s2682 + $0x20] sm:$0xff]
    %v2688 = vld [vmem:[%s2682 + $0x28] sm:$0xff]
    %v2689 = vld [vmem:[%s2682 + $0x30] sm:$0xff]
    %v2690 = vld [vmem:[%s2682 + $0x38] sm:$0xff]
    %v2691 = vrot.slane %v1657, 7
    %v2692 = vsel %vm1680, %v2691, 0
    %2694 = vmatpush.msra.mxu0 0.0
    %2695 = vmatpush.msra.mxu0 0.0
    %2696 = vmatpush.msra.mxu0 0.0
    %2697 = vmatpush.msra.mxu0 0.0
    %2698 = vmatpush.msra.mxu0 0.0
    %2699 = vmatpush.msra.mxu0 0.0
    %2700 = vmatpush.msra.mxu0 0.0
    %2701 = vmatpush.msra.mxu0 0.0
    %2702 = vmatpush.msra.mxu0 %v2690
    %2703 = vmatpush.msra.mxu0 %v2689
    %2704 = vmatpush.msra.mxu0 %v2688
    %2705 = vmatpush.msra.mxu0 %v2687
    %2706 = vmatpush.msra.mxu0 %v2686
    %2707 = vmatpush.msra.mxu0 %v2685
    %2708 = vmatpush.msra.mxu0 %v2684
    %2709 = vmatpush.msra.mxu0 %v2683
    %2710 = vmatmul.f32.gmra.mxu0 %v2692
    %v2711 = vpop.f32.mrf.mxu0
    %v2712 = vadd.f32 0.0, %v2711
    %2713 = vdwg.mxu0
    %v2714 = vadd.f32 %v2681, %v2712
    %s2715 = scalar_lea.vmem %s6, 2048
    %v2716 = vld [vmem:[%s2715] sm:$0xff]
    %v2717 = vld [vmem:[%s2715 + $0x8] sm:$0xff]
    %v2718 = vld [vmem:[%s2715 + $0x10] sm:$0xff]
    %v2719 = vld [vmem:[%s2715 + $0x18] sm:$0xff]
    %v2720 = vld [vmem:[%s2715 + $0x20] sm:$0xff]
    %v2721 = vld [vmem:[%s2715 + $0x28] sm:$0xff]
    %v2722 = vld [vmem:[%s2715 + $0x30] sm:$0xff]
    %v2723 = vld [vmem:[%s2715 + $0x38] sm:$0xff]
    %v2725 = vsel %vm1680, %v1658, 0
    %2727 = vmatpush.msra.mxu0 0.0
    %2728 = vmatpush.msra.mxu0 0.0
    %2729 = vmatpush.msra.mxu0 0.0
    %2730 = vmatpush.msra.mxu0 0.0
    %2731 = vmatpush.msra.mxu0 0.0
    %2732 = vmatpush.msra.mxu0 0.0
    %2733 = vmatpush.msra.mxu0 0.0
    %2734 = vmatpush.msra.mxu0 0.0
    %2735 = vmatpush.msra.mxu0 %v2723
    %2736 = vmatpush.msra.mxu0 %v2722
    %2737 = vmatpush.msra.mxu0 %v2721
    %2738 = vmatpush.msra.mxu0 %v2720
    %2739 = vmatpush.msra.mxu0 %v2719
    %2740 = vmatpush.msra.mxu0 %v2718
    %2741 = vmatpush.msra.mxu0 %v2717
    %2742 = vmatpush.msra.mxu0 %v2716
    %2743 = vmatmul.f32.gmra.mxu0 %v2725
    %v2744 = vpop.f32.mrf.mxu0
    %v2745 = vadd.f32 0.0, %v2744
    %2746 = vdwg.mxu0
    %v2747 = vadd.f32 %v2714, %v2745
    %s2748 = scalar_lea.vmem %s6, 2112
    %v2749 = vld [vmem:[%s2748] sm:$0xff]
    %v2750 = vld [vmem:[%s2748 + $0x8] sm:$0xff]
    %v2751 = vld [vmem:[%s2748 + $0x10] sm:$0xff]
    %v2752 = vld [vmem:[%s2748 + $0x18] sm:$0xff]
    %v2753 = vld [vmem:[%s2748 + $0x20] sm:$0xff]
    %v2754 = vld [vmem:[%s2748 + $0x28] sm:$0xff]
    %v2755 = vld [vmem:[%s2748 + $0x30] sm:$0xff]
    %v2756 = vld [vmem:[%s2748 + $0x38] sm:$0xff]
    %v2757 = vrot.slane %v1658, 1
    %v2758 = vsel %vm1680, %v2757, 0
    %2760 = vmatpush.msra.mxu0 0.0
    %2761 = vmatpush.msra.mxu0 0.0
    %2762 = vmatpush.msra.mxu0 0.0
    %2763 = vmatpush.msra.mxu0 0.0
    %2764 = vmatpush.msra.mxu0 0.0
    %2765 = vmatpush.msra.mxu0 0.0
    %2766 = vmatpush.msra.mxu0 0.0
    %2767 = vmatpush.msra.mxu0 0.0
    %2768 = vmatpush.msra.mxu0 %v2756
    %2769 = vmatpush.msra.mxu0 %v2755
    %2770 = vmatpush.msra.mxu0 %v2754
    %2771 = vmatpush.msra.mxu0 %v2753
    %2772 = vmatpush.msra.mxu0 %v2752
    %2773 = vmatpush.msra.mxu0 %v2751
    %2774 = vmatpush.msra.mxu0 %v2750
    %2775 = vmatpush.msra.mxu0 %v2749
    %2776 = vmatmul.f32.gmra.mxu0 %v2758
    %v2777 = vpop.f32.mrf.mxu0
    %v2778 = vadd.f32 0.0, %v2777
    %2779 = vdwg.mxu0
    %v2780 = vadd.f32 %v2747, %v2778
    %s2781 = scalar_lea.vmem %s6, 2176
    %v2782 = vld [vmem:[%s2781] sm:$0xff]
    %v2783 = vld [vmem:[%s2781 + $0x8] sm:$0xff]
    %v2784 = vld [vmem:[%s2781 + $0x10] sm:$0xff]
    %v2785 = vld [vmem:[%s2781 + $0x18] sm:$0xff]
    %v2786 = vld [vmem:[%s2781 + $0x20] sm:$0xff]
    %v2787 = vld [vmem:[%s2781 + $0x28] sm:$0xff]
    %v2788 = vld [vmem:[%s2781 + $0x30] sm:$0xff]
    %v2789 = vld [vmem:[%s2781 + $0x38] sm:$0xff]
    %v2790 = vrot.slane %v1658, 2
    %v2791 = vsel %vm1680, %v2790, 0
    %2793 = vmatpush.msra.mxu0 0.0
    %2794 = vmatpush.msra.mxu0 0.0
    %2795 = vmatpush.msra.mxu0 0.0
    %2796 = vmatpush.msra.mxu0 0.0
    %2797 = vmatpush.msra.mxu0 0.0
    %2798 = vmatpush.msra.mxu0 0.0
    %2799 = vmatpush.msra.mxu0 0.0
    %2800 = vmatpush.msra.mxu0 0.0
    %2801 = vmatpush.msra.mxu0 %v2789
    %2802 = vmatpush.msra.mxu0 %v2788
    %2803 = vmatpush.msra.mxu0 %v2787
    %2804 = vmatpush.msra.mxu0 %v2786
    %2805 = vmatpush.msra.mxu0 %v2785
    %2806 = vmatpush.msra.mxu0 %v2784
    %2807 = vmatpush.msra.mxu0 %v2783
    %2808 = vmatpush.msra.mxu0 %v2782
    %2809 = vmatmul.f32.gmra.mxu0 %v2791
    %v2810 = vpop.f32.mrf.mxu0
    %v2811 = vadd.f32 0.0, %v2810
    %2812 = vdwg.mxu0
    %v2813 = vadd.f32 %v2780, %v2811
    %s2814 = scalar_lea.vmem %s6, 2240
    %v2815 = vld [vmem:[%s2814] sm:$0xff]
    %v2816 = vld [vmem:[%s2814 + $0x8] sm:$0xff]
    %v2817 = vld [vmem:[%s2814 + $0x10] sm:$0xff]
    %v2818 = vld [vmem:[%s2814 + $0x18] sm:$0xff]
    %v2819 = vld [vmem:[%s2814 + $0x20] sm:$0xff]
    %v2820 = vld [vmem:[%s2814 + $0x28] sm:$0xff]
    %v2821 = vld [vmem:[%s2814 + $0x30] sm:$0xff]
    %v2822 = vld [vmem:[%s2814 + $0x38] sm:$0xff]
    %v2823 = vrot.slane %v1658, 3
    %v2824 = vsel %vm1680, %v2823, 0
    %2826 = vmatpush.msra.mxu0 0.0
    %2827 = vmatpush.msra.mxu0 0.0
    %2828 = vmatpush.msra.mxu0 0.0
    %2829 = vmatpush.msra.mxu0 0.0
    %2830 = vmatpush.msra.mxu0 0.0
    %2831 = vmatpush.msra.mxu0 0.0
    %2832 = vmatpush.msra.mxu0 0.0
    %2833 = vmatpush.msra.mxu0 0.0
    %2834 = vmatpush.msra.mxu0 %v2822
    %2835 = vmatpush.msra.mxu0 %v2821
    %2836 = vmatpush.msra.mxu0 %v2820
    %2837 = vmatpush.msra.mxu0 %v2819
    %2838 = vmatpush.msra.mxu0 %v2818
    %2839 = vmatpush.msra.mxu0 %v2817
    %2840 = vmatpush.msra.mxu0 %v2816
    %2841 = vmatpush.msra.mxu0 %v2815
    %2842 = vmatmul.f32.gmra.mxu0 %v2824
    %v2843 = vpop.f32.mrf.mxu0
    %v2844 = vadd.f32 0.0, %v2843
    %2845 = vdwg.mxu0
    %v2846 = vadd.f32 %v2813, %v2844
    %s2847 = scalar_lea.vmem %s6, 2304
    %v2848 = vld [vmem:[%s2847] sm:$0xff]
    %v2849 = vld [vmem:[%s2847 + $0x8] sm:$0xff]
    %v2850 = vld [vmem:[%s2847 + $0x10] sm:$0xff]
    %v2851 = vld [vmem:[%s2847 + $0x18] sm:$0xff]
    %v2852 = vld [vmem:[%s2847 + $0x20] sm:$0xff]
    %v2853 = vld [vmem:[%s2847 + $0x28] sm:$0xff]
    %v2854 = vld [vmem:[%s2847 + $0x30] sm:$0xff]
    %v2855 = vld [vmem:[%s2847 + $0x38] sm:$0xff]
    %v2856 = vrot.slane %v1658, 4
    %v2857 = vsel %vm1680, %v2856, 0
    %2859 = vmatpush.msra.mxu0 0.0
    %2860 = vmatpush.msra.mxu0 0.0
    %2861 = vmatpush.msra.mxu0 0.0
    %2862 = vmatpush.msra.mxu0 0.0
    %2863 = vmatpush.msra.mxu0 0.0
    %2864 = vmatpush.msra.mxu0 0.0
    %2865 = vmatpush.msra.mxu0 0.0
    %2866 = vmatpush.msra.mxu0 0.0
    %2867 = vmatpush.msra.mxu0 %v2855
    %2868 = vmatpush.msra.mxu0 %v2854
    %2869 = vmatpush.msra.mxu0 %v2853
    %2870 = vmatpush.msra.mxu0 %v2852
    %2871 = vmatpush.msra.mxu0 %v2851
    %2872 = vmatpush.msra.mxu0 %v2850
    %2873 = vmatpush.msra.mxu0 %v2849
    %2874 = vmatpush.msra.mxu0 %v2848
    %2875 = vmatmul.f32.gmra.mxu0 %v2857
    %v2876 = vpop.f32.mrf.mxu0
    %v2877 = vadd.f32 0.0, %v2876
    %2878 = vdwg.mxu0
    %v2879 = vadd.f32 %v2846, %v2877
    %s2880 = scalar_lea.vmem %s6, 2368
    %v2881 = vld [vmem:[%s2880] sm:$0xff]
    %v2882 = vld [vmem:[%s2880 + $0x8] sm:$0xff]
    %v2883 = vld [vmem:[%s2880 + $0x10] sm:$0xff]
    %v2884 = vld [vmem:[%s2880 + $0x18] sm:$0xff]
    %v2885 = vld [vmem:[%s2880 + $0x20] sm:$0xff]
    %v2886 = vld [vmem:[%s2880 + $0x28] sm:$0xff]
    %v2887 = vld [vmem:[%s2880 + $0x30] sm:$0xff]
    %v2888 = vld [vmem:[%s2880 + $0x38] sm:$0xff]
    %v2889 = vrot.slane %v1658, 5
    %v2890 = vsel %vm1680, %v2889, 0
    %2892 = vmatpush.msra.mxu0 0.0
    %2893 = vmatpush.msra.mxu0 0.0
    %2894 = vmatpush.msra.mxu0 0.0
    %2895 = vmatpush.msra.mxu0 0.0
    %2896 = vmatpush.msra.mxu0 0.0
    %2897 = vmatpush.msra.mxu0 0.0
    %2898 = vmatpush.msra.mxu0 0.0
    %2899 = vmatpush.msra.mxu0 0.0
    %2900 = vmatpush.msra.mxu0 %v2888
    %2901 = vmatpush.msra.mxu0 %v2887
    %2902 = vmatpush.msra.mxu0 %v2886
    %2903 = vmatpush.msra.mxu0 %v2885
    %2904 = vmatpush.msra.mxu0 %v2884
    %2905 = vmatpush.msra.mxu0 %v2883
    %2906 = vmatpush.msra.mxu0 %v2882
    %2907 = vmatpush.msra.mxu0 %v2881
    %2908 = vmatmul.f32.gmra.mxu0 %v2890
    %v2909 = vpop.f32.mrf.mxu0
    %v2910 = vadd.f32 0.0, %v2909
    %2911 = vdwg.mxu0
    %v2912 = vadd.f32 %v2879, %v2910
    %s2913 = scalar_lea.vmem %s6, 2432
    %v2914 = vld [vmem:[%s2913] sm:$0xff]
    %v2915 = vld [vmem:[%s2913 + $0x8] sm:$0xff]
    %v2916 = vld [vmem:[%s2913 + $0x10] sm:$0xff]
    %v2917 = vld [vmem:[%s2913 + $0x18] sm:$0xff]
    %v2918 = vld [vmem:[%s2913 + $0x20] sm:$0xff]
    %v2919 = vld [vmem:[%s2913 + $0x28] sm:$0xff]
    %v2920 = vld [vmem:[%s2913 + $0x30] sm:$0xff]
    %v2921 = vld [vmem:[%s2913 + $0x38] sm:$0xff]
    %v2922 = vrot.slane %v1658, 6
    %v2923 = vsel %vm1680, %v2922, 0
    %2925 = vmatpush.msra.mxu0 0.0
    %2926 = vmatpush.msra.mxu0 0.0
    %2927 = vmatpush.msra.mxu0 0.0
    %2928 = vmatpush.msra.mxu0 0.0
    %2929 = vmatpush.msra.mxu0 0.0
    %2930 = vmatpush.msra.mxu0 0.0
    %2931 = vmatpush.msra.mxu0 0.0
    %2932 = vmatpush.msra.mxu0 0.0
    %2933 = vmatpush.msra.mxu0 %v2921
    %2934 = vmatpush.msra.mxu0 %v2920
    %2935 = vmatpush.msra.mxu0 %v2919
    %2936 = vmatpush.msra.mxu0 %v2918
    %2937 = vmatpush.msra.mxu0 %v2917
    %2938 = vmatpush.msra.mxu0 %v2916
    %2939 = vmatpush.msra.mxu0 %v2915
    %2940 = vmatpush.msra.mxu0 %v2914
    %2941 = vmatmul.f32.gmra.mxu0 %v2923
    %v2942 = vpop.f32.mrf.mxu0
    %v2943 = vadd.f32 0.0, %v2942
    %2944 = vdwg.mxu0
    %v2945 = vadd.f32 %v2912, %v2943
    %s2946 = scalar_lea.vmem %s6, 2496
    %v2947 = vld [vmem:[%s2946] sm:$0xff]
    %v2948 = vld [vmem:[%s2946 + $0x8] sm:$0xff]
    %v2949 = vld [vmem:[%s2946 + $0x10] sm:$0xff]
    %v2950 = vld [vmem:[%s2946 + $0x18] sm:$0xff]
    %v2951 = vld [vmem:[%s2946 + $0x20] sm:$0xff]
    %v2952 = vld [vmem:[%s2946 + $0x28] sm:$0xff]
    %v2953 = vld [vmem:[%s2946 + $0x30] sm:$0xff]
    %v2954 = vld [vmem:[%s2946 + $0x38] sm:$0xff]
    %v2955 = vrot.slane %v1658, 7
    %v2956 = vsel %vm1680, %v2955, 0
    %2958 = vmatpush.msra.mxu0 0.0
    %2959 = vmatpush.msra.mxu0 0.0
    %2960 = vmatpush.msra.mxu0 0.0
    %2961 = vmatpush.msra.mxu0 0.0
    %2962 = vmatpush.msra.mxu0 0.0
    %2963 = vmatpush.msra.mxu0 0.0
    %2964 = vmatpush.msra.mxu0 0.0
    %2965 = vmatpush.msra.mxu0 0.0
    %2966 = vmatpush.msra.mxu0 %v2954
    %2967 = vmatpush.msra.mxu0 %v2953
    %2968 = vmatpush.msra.mxu0 %v2952
    %2969 = vmatpush.msra.mxu0 %v2951
    %2970 = vmatpush.msra.mxu0 %v2950
    %2971 = vmatpush.msra.mxu0 %v2949
    %2972 = vmatpush.msra.mxu0 %v2948
    %2973 = vmatpush.msra.mxu0 %v2947
    %2974 = vmatmul.f32.gmra.mxu0 %v2956
    %v2975 = vpop.f32.mrf.mxu0
    %v2976 = vadd.f32 0.0, %v2975
    %2977 = vdwg.mxu0
    %v2978 = vadd.f32 %v2945, %v2976
    %s2979 = scalar_lea.vmem %s6, 2560
    %v2980 = vld [vmem:[%s2979] sm:$0xff]
    %v2981 = vld [vmem:[%s2979 + $0x8] sm:$0xff]
    %v2982 = vld [vmem:[%s2979 + $0x10] sm:$0xff]
    %v2983 = vld [vmem:[%s2979 + $0x18] sm:$0xff]
    %v2984 = vld [vmem:[%s2979 + $0x20] sm:$0xff]
    %v2985 = vld [vmem:[%s2979 + $0x28] sm:$0xff]
    %v2986 = vld [vmem:[%s2979 + $0x30] sm:$0xff]
    %v2987 = vld [vmem:[%s2979 + $0x38] sm:$0xff]
    %v2989 = vsel %vm1680, %v1659, 0
    %2991 = vmatpush.msra.mxu0 0.0
    %2992 = vmatpush.msra.mxu0 0.0
    %2993 = vmatpush.msra.mxu0 0.0
    %2994 = vmatpush.msra.mxu0 0.0
    %2995 = vmatpush.msra.mxu0 0.0
    %2996 = vmatpush.msra.mxu0 0.0
    %2997 = vmatpush.msra.mxu0 0.0
    %2998 = vmatpush.msra.mxu0 0.0
    %2999 = vmatpush.msra.mxu0 %v2987
    %3000 = vmatpush.msra.mxu0 %v2986
    %3001 = vmatpush.msra.mxu0 %v2985
    %3002 = vmatpush.msra.mxu0 %v2984
    %3003 = vmatpush.msra.mxu0 %v2983
    %3004 = vmatpush.msra.mxu0 %v2982
    %3005 = vmatpush.msra.mxu0 %v2981
    %3006 = vmatpush.msra.mxu0 %v2980
    %3007 = vmatmul.f32.gmra.mxu0 %v2989
    %v3008 = vpop.f32.mrf.mxu0
    %v3009 = vadd.f32 0.0, %v3008
    %3010 = vdwg.mxu0
    %v3011 = vadd.f32 %v2978, %v3009
    %s3012 = scalar_lea.vmem %s6, 2624
    %v3013 = vld [vmem:[%s3012] sm:$0xff]
    %v3014 = vld [vmem:[%s3012 + $0x8] sm:$0xff]
    %v3015 = vld [vmem:[%s3012 + $0x10] sm:$0xff]
    %v3016 = vld [vmem:[%s3012 + $0x18] sm:$0xff]
    %v3017 = vld [vmem:[%s3012 + $0x20] sm:$0xff]
    %v3018 = vld [vmem:[%s3012 + $0x28] sm:$0xff]
    %v3019 = vld [vmem:[%s3012 + $0x30] sm:$0xff]
    %v3020 = vld [vmem:[%s3012 + $0x38] sm:$0xff]
    %v3021 = vrot.slane %v1659, 1
    %v3022 = vsel %vm1680, %v3021, 0
    %3024 = vmatpush.msra.mxu0 0.0
    %3025 = vmatpush.msra.mxu0 0.0
    %3026 = vmatpush.msra.mxu0 0.0
    %3027 = vmatpush.msra.mxu0 0.0
    %3028 = vmatpush.msra.mxu0 0.0
    %3029 = vmatpush.msra.mxu0 0.0
    %3030 = vmatpush.msra.mxu0 0.0
    %3031 = vmatpush.msra.mxu0 0.0
    %3032 = vmatpush.msra.mxu0 %v3020
    %3033 = vmatpush.msra.mxu0 %v3019
    %3034 = vmatpush.msra.mxu0 %v3018
    %3035 = vmatpush.msra.mxu0 %v3017
    %3036 = vmatpush.msra.mxu0 %v3016
    %3037 = vmatpush.msra.mxu0 %v3015
    %3038 = vmatpush.msra.mxu0 %v3014
    %3039 = vmatpush.msra.mxu0 %v3013
    %3040 = vmatmul.f32.gmra.mxu0 %v3022
    %v3041 = vpop.f32.mrf.mxu0
    %v3042 = vadd.f32 0.0, %v3041
    %3043 = vdwg.mxu0
    %v3044 = vadd.f32 %v3011, %v3042
    %s3045 = scalar_lea.vmem %s6, 2688
    %v3046 = vld [vmem:[%s3045] sm:$0xff]
    %v3047 = vld [vmem:[%s3045 + $0x8] sm:$0xff]
    %v3048 = vld [vmem:[%s3045 + $0x10] sm:$0xff]
    %v3049 = vld [vmem:[%s3045 + $0x18] sm:$0xff]
    %v3050 = vld [vmem:[%s3045 + $0x20] sm:$0xff]
    %v3051 = vld [vmem:[%s3045 + $0x28] sm:$0xff]
    %v3052 = vld [vmem:[%s3045 + $0x30] sm:$0xff]
    %v3053 = vld [vmem:[%s3045 + $0x38] sm:$0xff]
    %v3054 = vrot.slane %v1659, 2
    %v3055 = vsel %vm1680, %v3054, 0
    %3057 = vmatpush.msra.mxu0 0.0
    %3058 = vmatpush.msra.mxu0 0.0
    %3059 = vmatpush.msra.mxu0 0.0
    %3060 = vmatpush.msra.mxu0 0.0
    %3061 = vmatpush.msra.mxu0 0.0
    %3062 = vmatpush.msra.mxu0 0.0
    %3063 = vmatpush.msra.mxu0 0.0
    %3064 = vmatpush.msra.mxu0 0.0
    %3065 = vmatpush.msra.mxu0 %v3053
    %3066 = vmatpush.msra.mxu0 %v3052
    %3067 = vmatpush.msra.mxu0 %v3051
    %3068 = vmatpush.msra.mxu0 %v3050
    %3069 = vmatpush.msra.mxu0 %v3049
    %3070 = vmatpush.msra.mxu0 %v3048
    %3071 = vmatpush.msra.mxu0 %v3047
    %3072 = vmatpush.msra.mxu0 %v3046
    %3073 = vmatmul.f32.gmra.mxu0 %v3055
    %v3074 = vpop.f32.mrf.mxu0
    %v3075 = vadd.f32 0.0, %v3074
    %3076 = vdwg.mxu0
    %v3077 = vadd.f32 %v3044, %v3075
    %s3078 = scalar_lea.vmem %s6, 2752
    %v3079 = vld [vmem:[%s3078] sm:$0xff]
    %v3080 = vld [vmem:[%s3078 + $0x8] sm:$0xff]
    %v3081 = vld [vmem:[%s3078 + $0x10] sm:$0xff]
    %v3082 = vld [vmem:[%s3078 + $0x18] sm:$0xff]
    %v3083 = vld [vmem:[%s3078 + $0x20] sm:$0xff]
    %v3084 = vld [vmem:[%s3078 + $0x28] sm:$0xff]
    %v3085 = vld [vmem:[%s3078 + $0x30] sm:$0xff]
    %v3086 = vld [vmem:[%s3078 + $0x38] sm:$0xff]
    %v3087 = vrot.slane %v1659, 3
    %v3088 = vsel %vm1680, %v3087, 0
    %3090 = vmatpush.msra.mxu0 0.0
    %3091 = vmatpush.msra.mxu0 0.0
    %3092 = vmatpush.msra.mxu0 0.0
    %3093 = vmatpush.msra.mxu0 0.0
    %3094 = vmatpush.msra.mxu0 0.0
    %3095 = vmatpush.msra.mxu0 0.0
    %3096 = vmatpush.msra.mxu0 0.0
    %3097 = vmatpush.msra.mxu0 0.0
    %3098 = vmatpush.msra.mxu0 %v3086
    %3099 = vmatpush.msra.mxu0 %v3085
    %3100 = vmatpush.msra.mxu0 %v3084
    %3101 = vmatpush.msra.mxu0 %v3083
    %3102 = vmatpush.msra.mxu0 %v3082
    %3103 = vmatpush.msra.mxu0 %v3081
    %3104 = vmatpush.msra.mxu0 %v3080
    %3105 = vmatpush.msra.mxu0 %v3079
    %3106 = vmatmul.f32.gmra.mxu0 %v3088
    %v3107 = vpop.f32.mrf.mxu0
    %v3108 = vadd.f32 0.0, %v3107
    %3109 = vdwg.mxu0
    %v3110 = vadd.f32 %v3077, %v3108
    %s3111 = scalar_lea.vmem %s6, 2816
    %v3112 = vld [vmem:[%s3111] sm:$0xff]
    %v3113 = vld [vmem:[%s3111 + $0x8] sm:$0xff]
    %v3114 = vld [vmem:[%s3111 + $0x10] sm:$0xff]
    %v3115 = vld [vmem:[%s3111 + $0x18] sm:$0xff]
    %v3116 = vld [vmem:[%s3111 + $0x20] sm:$0xff]
    %v3117 = vld [vmem:[%s3111 + $0x28] sm:$0xff]
    %v3118 = vld [vmem:[%s3111 + $0x30] sm:$0xff]
    %v3119 = vld [vmem:[%s3111 + $0x38] sm:$0xff]
    %v3120 = vrot.slane %v1659, 4
    %v3121 = vsel %vm1680, %v3120, 0
    %3123 = vmatpush.msra.mxu0 0.0
    %3124 = vmatpush.msra.mxu0 0.0
    %3125 = vmatpush.msra.mxu0 0.0
    %3126 = vmatpush.msra.mxu0 0.0
    %3127 = vmatpush.msra.mxu0 0.0
    %3128 = vmatpush.msra.mxu0 0.0
    %3129 = vmatpush.msra.mxu0 0.0
    %3130 = vmatpush.msra.mxu0 0.0
    %3131 = vmatpush.msra.mxu0 %v3119
    %3132 = vmatpush.msra.mxu0 %v3118
    %3133 = vmatpush.msra.mxu0 %v3117
    %3134 = vmatpush.msra.mxu0 %v3116
    %3135 = vmatpush.msra.mxu0 %v3115
    %3136 = vmatpush.msra.mxu0 %v3114
    %3137 = vmatpush.msra.mxu0 %v3113
    %3138 = vmatpush.msra.mxu0 %v3112
    %3139 = vmatmul.f32.gmra.mxu0 %v3121
    %v3140 = vpop.f32.mrf.mxu0
    %v3141 = vadd.f32 0.0, %v3140
    %3142 = vdwg.mxu0
    %v3143 = vadd.f32 %v3110, %v3141
    %s3144 = scalar_lea.vmem %s6, 2880
    %v3145 = vld [vmem:[%s3144] sm:$0xff]
    %v3146 = vld [vmem:[%s3144 + $0x8] sm:$0xff]
    %v3147 = vld [vmem:[%s3144 + $0x10] sm:$0xff]
    %v3148 = vld [vmem:[%s3144 + $0x18] sm:$0xff]
    %v3149 = vld [vmem:[%s3144 + $0x20] sm:$0xff]
    %v3150 = vld [vmem:[%s3144 + $0x28] sm:$0xff]
    %v3151 = vld [vmem:[%s3144 + $0x30] sm:$0xff]
    %v3152 = vld [vmem:[%s3144 + $0x38] sm:$0xff]
    %v3153 = vrot.slane %v1659, 5
    %v3154 = vsel %vm1680, %v3153, 0
    %3156 = vmatpush.msra.mxu0 0.0
    %3157 = vmatpush.msra.mxu0 0.0
    %3158 = vmatpush.msra.mxu0 0.0
    %3159 = vmatpush.msra.mxu0 0.0
    %3160 = vmatpush.msra.mxu0 0.0
    %3161 = vmatpush.msra.mxu0 0.0
    %3162 = vmatpush.msra.mxu0 0.0
    %3163 = vmatpush.msra.mxu0 0.0
    %3164 = vmatpush.msra.mxu0 %v3152
    %3165 = vmatpush.msra.mxu0 %v3151
    %3166 = vmatpush.msra.mxu0 %v3150
    %3167 = vmatpush.msra.mxu0 %v3149
    %3168 = vmatpush.msra.mxu0 %v3148
    %3169 = vmatpush.msra.mxu0 %v3147
    %3170 = vmatpush.msra.mxu0 %v3146
    %3171 = vmatpush.msra.mxu0 %v3145
    %3172 = vmatmul.f32.gmra.mxu0 %v3154
    %v3173 = vpop.f32.mrf.mxu0
    %v3174 = vadd.f32 0.0, %v3173
    %3175 = vdwg.mxu0
    %v3176 = vadd.f32 %v3143, %v3174
    %s3177 = scalar_lea.vmem %s6, 2944
    %v3178 = vld [vmem:[%s3177] sm:$0xff]
    %v3179 = vld [vmem:[%s3177 + $0x8] sm:$0xff]
    %v3180 = vld [vmem:[%s3177 + $0x10] sm:$0xff]
    %v3181 = vld [vmem:[%s3177 + $0x18] sm:$0xff]
    %v3182 = vld [vmem:[%s3177 + $0x20] sm:$0xff]
    %v3183 = vld [vmem:[%s3177 + $0x28] sm:$0xff]
    %v3184 = vld [vmem:[%s3177 + $0x30] sm:$0xff]
    %v3185 = vld [vmem:[%s3177 + $0x38] sm:$0xff]
    %v3186 = vrot.slane %v1659, 6
    %v3187 = vsel %vm1680, %v3186, 0
    %3189 = vmatpush.msra.mxu0 0.0
    %3190 = vmatpush.msra.mxu0 0.0
    %3191 = vmatpush.msra.mxu0 0.0
    %3192 = vmatpush.msra.mxu0 0.0
    %3193 = vmatpush.msra.mxu0 0.0
    %3194 = vmatpush.msra.mxu0 0.0
    %3195 = vmatpush.msra.mxu0 0.0
    %3196 = vmatpush.msra.mxu0 0.0
    %3197 = vmatpush.msra.mxu0 %v3185
    %3198 = vmatpush.msra.mxu0 %v3184
    %3199 = vmatpush.msra.mxu0 %v3183
    %3200 = vmatpush.msra.mxu0 %v3182
    %3201 = vmatpush.msra.mxu0 %v3181
    %3202 = vmatpush.msra.mxu0 %v3180
    %3203 = vmatpush.msra.mxu0 %v3179
    %3204 = vmatpush.msra.mxu0 %v3178
    %3205 = vmatmul.f32.gmra.mxu0 %v3187
    %v3206 = vpop.f32.mrf.mxu0
    %v3207 = vadd.f32 0.0, %v3206
    %3208 = vdwg.mxu0
    %v3209 = vadd.f32 %v3176, %v3207
    %s3210 = scalar_lea.vmem %s6, 3008
    %v3211 = vld [vmem:[%s3210] sm:$0xff]
    %v3212 = vld [vmem:[%s3210 + $0x8] sm:$0xff]
    %v3213 = vld [vmem:[%s3210 + $0x10] sm:$0xff]
    %v3214 = vld [vmem:[%s3210 + $0x18] sm:$0xff]
    %v3215 = vld [vmem:[%s3210 + $0x20] sm:$0xff]
    %v3216 = vld [vmem:[%s3210 + $0x28] sm:$0xff]
    %v3217 = vld [vmem:[%s3210 + $0x30] sm:$0xff]
    %v3218 = vld [vmem:[%s3210 + $0x38] sm:$0xff]
    %v3219 = vrot.slane %v1659, 7
    %v3220 = vsel %vm1680, %v3219, 0
    %3222 = vmatpush.msra.mxu0 0.0
    %3223 = vmatpush.msra.mxu0 0.0
    %3224 = vmatpush.msra.mxu0 0.0
    %3225 = vmatpush.msra.mxu0 0.0
    %3226 = vmatpush.msra.mxu0 0.0
    %3227 = vmatpush.msra.mxu0 0.0
    %3228 = vmatpush.msra.mxu0 0.0
    %3229 = vmatpush.msra.mxu0 0.0
    %3230 = vmatpush.msra.mxu0 %v3218
    %3231 = vmatpush.msra.mxu0 %v3217
    %3232 = vmatpush.msra.mxu0 %v3216
    %3233 = vmatpush.msra.mxu0 %v3215
    %3234 = vmatpush.msra.mxu0 %v3214
    %3235 = vmatpush.msra.mxu0 %v3213
    %3236 = vmatpush.msra.mxu0 %v3212
    %3237 = vmatpush.msra.mxu0 %v3211
    %3238 = vmatmul.f32.gmra.mxu0 %v3220
    %v3239 = vpop.f32.mrf.mxu0
    %v3240 = vadd.f32 0.0, %v3239
    %3241 = vdwg.mxu0
    %v3242 = vadd.f32 %v3209, %v3240
    %s3243 = scalar_lea.vmem %s6, 3072
    %v3244 = vld [vmem:[%s3243] sm:$0xff]
    %v3245 = vld [vmem:[%s3243 + $0x8] sm:$0xff]
    %v3246 = vld [vmem:[%s3243 + $0x10] sm:$0xff]
    %v3247 = vld [vmem:[%s3243 + $0x18] sm:$0xff]
    %v3248 = vld [vmem:[%s3243 + $0x20] sm:$0xff]
    %v3249 = vld [vmem:[%s3243 + $0x28] sm:$0xff]
    %v3250 = vld [vmem:[%s3243 + $0x30] sm:$0xff]
    %v3251 = vld [vmem:[%s3243 + $0x38] sm:$0xff]
    %v3253 = vsel %vm1680, %v1660, 0
    %3255 = vmatpush.msra.mxu0 0.0
    %3256 = vmatpush.msra.mxu0 0.0
    %3257 = vmatpush.msra.mxu0 0.0
    %3258 = vmatpush.msra.mxu0 0.0
    %3259 = vmatpush.msra.mxu0 0.0
    %3260 = vmatpush.msra.mxu0 0.0
    %3261 = vmatpush.msra.mxu0 0.0
    %3262 = vmatpush.msra.mxu0 0.0
    %3263 = vmatpush.msra.mxu0 %v3251
    %3264 = vmatpush.msra.mxu0 %v3250
    %3265 = vmatpush.msra.mxu0 %v3249
    %3266 = vmatpush.msra.mxu0 %v3248
    %3267 = vmatpush.msra.mxu0 %v3247
    %3268 = vmatpush.msra.mxu0 %v3246
    %3269 = vmatpush.msra.mxu0 %v3245
    %3270 = vmatpush.msra.mxu0 %v3244
    %3271 = vmatmul.f32.gmra.mxu0 %v3253
    %v3272 = vpop.f32.mrf.mxu0
    %v3273 = vadd.f32 0.0, %v3272
    %3274 = vdwg.mxu0
    %v3275 = vadd.f32 %v3242, %v3273
    %v3276 = vld [vmem:[%s7] sm:$0x1]
    %v3277 = vadd.f32 %v3275, %v3276
    %3278 = vst [vmem:[%s8] sm:$0x1] %v3277
    // Predicated region
    $region38: #{convolutional_encoder.1} parent=1 // pred_check
      _
    $region39: #{convolutional_encoder.1} parent=1 // pred_check_branch
      %3280 = sbr.rel (0) target = $region41
    $region40: #{convolutional_encoder.1} parent=1 // pred_region
      _
    $region41: #{convolutional_encoder.1} parent=1 // pred_fallthru
      _
    // Predicated region
    $region42: #{convolutional_encoder.1} parent=1 // pred_check
      _
    $region43: #{convolutional_encoder.1} parent=1 // pred_check_branch
      %3282 = sbr.rel (0) target = $region45
    $region44: #{convolutional_encoder.1} parent=1 // pred_region
      _
    $region45: #{convolutional_encoder.1} parent=1 // pred_fallthru
      _
    %3283 = vsyncpa [#allocation3], 1

</llo_original>
